<compile_context>
chip_gen: v5e
topology: v5e:2x2
jax: 0.10.0
libtpu: 0.0.40
codegen_flags: <defaults>
</compile_context>

<pallas_src>
import math

import jax
import jax.numpy as jnp
import numpy as np
from jax import lax
from jax.experimental import pallas as pl
from jax.experimental.pallas import tpu as pltpu


def _relational_memory_kernel(x_ref, mem0_ref, xmask_ref, hmask_ref, bbias_ref,
                              wqkv_ref, bqkv_ref, wop_ref, bop_ref, wg_ref, bg_ref,
                              out_ref, gx_ref):
    T, R, D = x_ref.shape          # time steps, B*(S+1) rows, d_model
    H = hmask_ref.shape[0]
    f32 = jnp.float32

    # ---- hoisted, state-independent work (off the serial critical path) ----
    # Input-only gate projection for all T steps as one (T*R, D) @ (D, 2D) matmul.
    x_all = x_ref[...].reshape(T * R, D)
    gx = jnp.dot(x_all, wg_ref[:, :2 * D], preferred_element_type=f32) + bg_ref[...]
    gx_ref[...] = gx.reshape(T, R, 2 * D)

    def step(t, state):
        x_rows = x_ref[t]                                        # (R, D): each row = its batch's x_t
        kv = jnp.where(xmask_ref[...] > 0.5, x_rows, state)      # per batch: [mem(S rows); x(1 row)]

        # Fused Q/K/V projection (attention scale folded into the Q columns).
        qkv = jnp.dot(kv, wqkv_ref[...], preferred_element_type=f32) + bqkv_ref[...]
        qp = qkv[:, 0 * D:1 * D]
        kp = qkv[:, 1 * D:2 * D]
        vp = qkv[:, 2 * D:3 * D]

        # Multi-head attention with disjoint 0/1 column masks on Q only:
        # (q*mask_h) @ k^T == q_h @ k_h^T, so K/V never get per-head broadcasts.
        qm = (qp[None, :, :] * hmask_ref[...]).reshape(H * R, D)            # (H*R, D)
        s = lax.dot_general(qm, kp, (((1,), (1,)), ((), ())),               # q @ k^T
                            preferred_element_type=f32)                     # (H*R, R)
        s = s + bbias_ref[...]                                              # kill cross-batch keys
        s = s - jnp.max(s, axis=-1, keepdims=True)
        p = jnp.exp(s)
        # approx=True would land on the EUP but its ~2^-12 rel. error is borderline
        # against the rtol/atol=1e-4 check — keep the exact reciprocal.
        p = p * pl.reciprocal(jnp.sum(p, axis=-1, keepdims=True), approx=False)
        # TODO(synk): attention dropout (p=0.1, training mode) omitted; eval-mode identity.
        ctx2 = jnp.dot(p, vp, preferred_element_type=f32)                   # (H*R, D)
        ctx = jnp.sum(ctx2.reshape(H, R, D) * hmask_ref[...], axis=0)       # (R, D)

        attn_out = (jnp.dot(ctx, wop_ref[:, 0 * D:1 * D], preferred_element_type=f32)
                    + bop_ref[:, 0 * D:1 * D])
        nm = kv + attn_out                                                  # residual
        h1 = jnp.maximum(jnp.dot(nm, wop_ref[:, 1 * D:2 * D], preferred_element_type=f32)
                         + bop_ref[:, 1 * D:2 * D], 0.0)
        h2 = jnp.maximum(jnp.dot(h1, wop_ref[:, 2 * D:3 * D], preferred_element_type=f32)
                         + bop_ref[:, 2 * D:3 * D], 0.0)
        nm = nm + h2

        # Gate: hoisted input part + state-dependent tanh(kv) @ U.
        gates = gx_ref[t] + jnp.dot(jnp.tanh(kv), wg_ref[:, 2 * D:],
                                    preferred_element_type=f32)             # (R, 2D)
        ig = jax.nn.sigmoid(gates[:, :D])
        fg = jax.nn.sigmoid(gates[:, D:])
        new_state = ig * jnp.tanh(nm) + fg * kv                             # x rows are don't-care
        out_ref[t] = new_state                                              # one slab store per step
        return new_state

    # fori_loop carry (not a Python for) bounds per-step live ranges; unroll=True
    # keeps the short recurrence fully visible to the scheduler.
    lax.fori_loop(0, T, step, mem0_ref[...], unroll=True)


def relational_memory_forward(inputs, memory_flat, params, *, num_slots, d_model, num_heads):
    """inputs: (B, T, D) f32, memory_flat: (B, S*D) f32 -> (B, T, S*D) f32."""
    B, T, D = inputs.shape
    assert D == d_model and D % num_heads == 0
    S, H = num_slots, num_heads
    dk = D // H
    Sp1 = S + 1
    R = B * Sp1
    scale = 1.0 / math.sqrt(dk)

    # Layout plumbing (wrapper-side): time-major input, pre-broadcast to the
    # augmented row layout so the kernel never re-broadcasts x over slots.
    x_tbd = jnp.transpose(inputs, (1, 0, 2)).astype(jnp.float32)         # (T, B, D)
    x_rows = jnp.repeat(x_tbd, Sp1, axis=1)                              # (T, R, D)

    mem0 = memory_flat.reshape(B, S, D).astype(jnp.float32)
    mem0_aug = jnp.concatenate([mem0, jnp.zeros((B, 1, D), jnp.float32)],
                               axis=1).reshape(R, D)                     # (R, D)

    p = params
    # Packed weights: Q/K/V fused (scale folded into Q), output/MLP stacked,
    # gate weights stacked [W | U], gate biases summed (they always add).
    wqkv = jnp.concatenate([p['wq'] * scale, p['wk'], p['wv']], axis=1)  # (D, 3D)
    bqkv = jnp.concatenate([p['bq'] * scale, p['bk'], p['bv']], axis=1)  # (1, 3D)
    wop = jnp.concatenate([p['wo'], p['w1'], p['w2']], axis=1)           # (D, 3D)
    bop = jnp.concatenate([p['bo'], p['b1'], p['b2']], axis=1)           # (1, 3D)
    wg = jnp.concatenate([p['ww'], p['wu']], axis=1)                     # (D, 4D)
    bg = p['bw'] + p['bu']                                               # (1, 2D)

    # Static structural constants.
    rows = np.arange(R)
    xmask = (rows[:, None] % Sp1 == S).astype(np.float32)                # (R, 1)
    cols = np.arange(D)
    hmask = (cols[None, None, :] // dk
             == np.arange(H)[:, None, None]).astype(np.float32)          # (H, 1, D)
    same_batch = (rows[:, None] // Sp1) == (rows[None, :] // Sp1)
    bbias_rr = np.where(same_batch, 0.0, -1e9).astype(np.float32)        # (R, R)
    bbias = np.tile(bbias_rr, (H, 1))                                    # (H*R, R), matches score rows

    out = pl.pallas_call(
        _relational_memory_kernel,
        out_shape=jax.ShapeDtypeStruct((T, R, D), jnp.float32),
        scratch_shapes=[pltpu.VMEM((T, R, 2 * D), jnp.float32)],         # hoisted gate(x) buffer
    )(x_rows, mem0_aug, jnp.asarray(xmask), jnp.asarray(hmask), jnp.asarray(bbias),
      wqkv, bqkv, wop, bop, wg, bg)

    out = out.reshape(T, B, Sp1, D)[:, :, :S, :]                         # drop x rows
    return jnp.transpose(out, (1, 0, 2, 3)).reshape(B, T, S * D)


def _reference(inputs, memory_flat, p, S, D, H):
    """Pure-JAX reference mirroring the PyTorch forward (dropout in eval mode)."""
    B, T, _ = inputs.shape
    dk = D // H
    mem = memory_flat.reshape(B, S, D)
    outs = []
    lin = lambda a, w, b: a @ w + b
    for t in range(T):
        x = inputs[:, t]                                               # (B, D)
        kv = jnp.concatenate([mem, x[:, None, :]], axis=1)             # (B, S+1, D)
        qp = lin(mem, p['wq'], p['bq']).reshape(B, S, H, dk).transpose(0, 2, 1, 3)
        kp = lin(kv, p['wk'], p['bk']).reshape(B, S + 1, H, dk).transpose(0, 2, 1, 3)
        vp = lin(kv, p['wv'], p['bv']).reshape(B, S + 1, H, dk).transpose(0, 2, 1, 3)
        sc = jnp.einsum('bhqd,bhkd->bhqk', qp, kp) / math.sqrt(dk)
        pa = jax.nn.softmax(sc, axis=-1)
        ctx = jnp.einsum('bhqk,bhkd->bhqd', pa, vp).transpose(0, 2, 1, 3).reshape(B, S, D)
        attn_out = lin(ctx, p['wo'], p['bo'])
        nm = mem + attn_out
        h1 = jax.nn.relu(lin(nm, p['w1'], p['b1']))
        h2 = jax.nn.relu(lin(h1, p['w2'], p['b2']))
        nm = nm + h2
        gates = lin(x[:, None, :], p['ww'], p['bw']) + lin(jnp.tanh(mem), p['wu'], p['bu'])
        ig = jax.nn.sigmoid(gates[..., :D])
        fg = jax.nn.sigmoid(gates[..., D:])
        nm = ig * jnp.tanh(nm) + fg * mem
        mem = nm
        outs.append(nm.reshape(B, S * D))
    return jnp.stack(outs, axis=1)


def _init_params(key, D):
    names_shapes = [
        ('wq', (D, D)), ('bq', (1, D)), ('wk', (D, D)), ('bk', (1, D)),
        ('wv', (D, D)), ('bv', (1, D)), ('wo', (D, D)), ('bo', (1, D)),
        ('w1', (D, D)), ('b1', (1, D)), ('w2', (D, D)), ('b2', (1, D)),
        ('ww', (D, 2 * D)), ('bw', (1, 2 * D)), ('wu', (D, 2 * D)), ('bu', (1, 2 * D)),
    ]
    keys = jax.random.split(key, len(names_shapes))
    return {n: (0.1 * jax.random.normal(k, s, dtype=jnp.float32))
            for (n, s), k in zip(names_shapes, keys)}


if __name__ == "__main__":
    B, T = 2, 4
    S, D, H = 7, 32, 4          # num_slots, d_model, num_heads

    root = jax.random.PRNGKey(0)
    k_in, k_par = jax.random.split(root)
    inputs = jax.random.normal(k_in, (B, T, D), dtype=jnp.float32)

    # init_memory: batched identity padded with zeros up to d_model, then flattened.
    eye_pad = jnp.concatenate([jnp.eye(S, dtype=jnp.float32),
                               jnp.zeros((S, D - S), dtype=jnp.float32)], axis=-1)
    memory = jnp.broadcast_to(eye_pad, (B, S, D)).reshape(B, S * D)

    params = _init_params(k_par, D)

    out = relational_memory_forward(inputs, memory, params,
                                    num_slots=S, d_model=D, num_heads=H)
    out = jax.block_until_ready(out)

    ref = _reference(inputs, memory, params, S, D, H)
    np.testing.assert_allclose(np.asarray(out), np.asarray(ref), rtol=1e-4, atol=1e-4)
    assert out.shape == (B, T, S * D)

    print("KERNEL_OK")
</pallas_src>

<mosaic_0001>
module attributes {stable_mosaic.version = 11 : i64} {
  func.func @_relational_memory_kernel(%arg0: memref<4x16x32xf32, #tpu.memory_space<vmem>>, %arg1: memref<16x32xf32, #tpu.memory_space<vmem>>, %arg2: memref<16x1xf32, #tpu.memory_space<vmem>>, %arg3: memref<4x1x32xf32, #tpu.memory_space<vmem>>, %arg4: memref<64x16xf32, #tpu.memory_space<vmem>>, %arg5: memref<32x96xf32, #tpu.memory_space<vmem>>, %arg6: memref<1x96xf32, #tpu.memory_space<vmem>>, %arg7: memref<32x96xf32, #tpu.memory_space<vmem>>, %arg8: memref<1x96xf32, #tpu.memory_space<vmem>>, %arg9: memref<32x128xf32, #tpu.memory_space<vmem>>, %arg10: memref<1x64xf32, #tpu.memory_space<vmem>>, %arg11: memref<4x16x32xf32, #tpu.memory_space<vmem>>, %arg12: memref<4x16x64xf32, #tpu.memory_space<vmem>>) attributes {dimension_semantics = [], scalar_prefetch = 0 : i64, scratch_operands = 1 : i64, tpu.core_type = #tpu.core_type<tc>} {
    %c0 = arith.constant 0 : index
    %c0_0 = arith.constant 0 : index
    %c0_1 = arith.constant 0 : index
    %0 = vector.load %arg0[%c0, %c0_0, %c0_1] : memref<4x16x32xf32, #tpu.memory_space<vmem>>, vector<4x16x32xf32>
    %1 = vector.shape_cast %0 : vector<4x16x32xf32> to vector<64x32xf32>
    %c0_2 = arith.constant 0 : index
    %c0_3 = arith.constant 0 : index
    %2 = vector.load %arg9[%c0_2, %c0_3] : memref<32x128xf32, #tpu.memory_space<vmem>>, vector<32x64xf32>
    %cst = arith.constant dense<0.000000e+00> : vector<64x64xf32>
    %3 = tpu.matmul %1, %2, %cst {dimension_numbers = #tpu.dot_dimension_numbers<[1], [0], [0], [1], [0, 0, 1, 1], [], []>} : vector<64x32xf32>, vector<32x64xf32>, vector<64x64xf32> -> vector<64x64xf32>
    %c0_4 = arith.constant 0 : index
    %c0_5 = arith.constant 0 : index
    %4 = vector.load %arg10[%c0_4, %c0_5] : memref<1x64xf32, #tpu.memory_space<vmem>>, vector<1x64xf32>
    %5 = vector.broadcast %4 : vector<1x64xf32> to vector<64x64xf32>
    %6 = arith.addf %3, %5 : vector<64x64xf32>
    %7 = vector.shape_cast %6 : vector<64x64xf32> to vector<4x16x64xf32>
    %c0_6 = arith.constant 0 : index
    %c0_7 = arith.constant 0 : index
    %c0_8 = arith.constant 0 : index
    %8 = vector.load %arg12[%c0_6, %c0_7, %c0_8] : memref<4x16x64xf32, #tpu.memory_space<vmem>>, vector<4x16x64xf32>
    tpu.vector_store %arg12[%c0_6, %c0_7, %c0_8], %7 {strides = array<i32>} : memref<4x16x64xf32, #tpu.memory_space<vmem>>, vector<4x16x64xf32>,
    %c0_9 = arith.constant 0 : index
    %c0_10 = arith.constant 0 : index
    %9 = vector.load %arg1[%c0_9, %c0_10] : memref<16x32xf32, #tpu.memory_space<vmem>>, vector<16x32xf32>
    %c0_i32 = arith.constant 0 : i32
    %10 = arith.index_cast %c0_i32 : i32 to index
    %c0_11 = arith.constant 0 : index
    %c0_12 = arith.constant 0 : index
    %11 = vector.load %arg0[%10, %c0_11, %c0_12] : memref<4x16x32xf32, #tpu.memory_space<vmem>>, vector<1x16x32xf32>
    %12 = vector.shape_cast %11 : vector<1x16x32xf32> to vector<16x32xf32>
    %c0_13 = arith.constant 0 : index
    %c0_14 = arith.constant 0 : index
    %13 = vector.load %arg2[%c0_13, %c0_14] : memref<16x1xf32, #tpu.memory_space<vmem>>, vector<16x1xf32>
    %cst_15 = arith.constant 5.000000e-01 : f32
    %14 = vector.broadcast %cst_15 : f32 to vector<16x1xf32>
    %15 = arith.cmpf ogt, %13, %14 : vector<16x1xf32>
    %16 = vector.shape_cast %15 : vector<16x1xi1> to vector<16x1xi1>
    %17 = vector.broadcast %16 : vector<16x1xi1> to vector<16x32xi1>
    %18 = arith.select %17, %12, %9 : vector<16x32xi1>, vector<16x32xf32>
    %c0_16 = arith.constant 0 : index
    %c0_17 = arith.constant 0 : index
    %19 = vector.load %arg5[%c0_16, %c0_17] : memref<32x96xf32, #tpu.memory_space<vmem>>, vector<32x96xf32>
    %cst_18 = arith.constant dense<0.000000e+00> : vector<16x96xf32>
    %20 = tpu.matmul %18, %19, %cst_18 {dimension_numbers = #tpu.dot_dimension_numbers<[1], [0], [0], [1], [0, 0, 1, 1], [], []>} : vector<16x32xf32>, vector<32x96xf32>, vector<16x96xf32> -> vector<16x96xf32>
    %c0_19 = arith.constant 0 : index
    %c0_20 = arith.constant 0 : index
    %21 = vector.load %arg6[%c0_19, %c0_20] : memref<1x96xf32, #tpu.memory_space<vmem>>, vector<1x96xf32>
    %22 = vector.broadcast %21 : vector<1x96xf32> to vector<16x96xf32>
    %23 = arith.addf %20, %22 : vector<16x96xf32>
    %24 = vector.extract_strided_slice %23 {offsets = [0, 0], sizes = [16, 32], strides = [1, 1]} : vector<16x96xf32> to vector<16x32xf32>
    %25 = vector.extract_strided_slice %23 {offsets = [0, 32], sizes = [16, 32], strides = [1, 1]} : vector<16x96xf32> to vector<16x32xf32>
    %26 = vector.extract_strided_slice %23 {offsets = [0, 64], sizes = [16, 32], strides = [1, 1]} : vector<16x96xf32> to vector<16x32xf32>
    %27 = vector.shape_cast %24 : vector<16x32xf32> to vector<1x16x32xf32>
    %c0_21 = arith.constant 0 : index
    %c0_22 = arith.constant 0 : index
    %c0_23 = arith.constant 0 : index
    %28 = vector.load %arg3[%c0_21, %c0_22, %c0_23] : memref<4x1x32xf32, #tpu.memory_space<vmem>>, vector<4x1x32xf32>
    %29 = vector.broadcast %27 : vector<1x16x32xf32> to vector<4x16x32xf32>
    %30 = vector.broadcast %28 : vector<4x1x32xf32> to vector<4x16x32xf32>
    %31 = arith.mulf %29, %30 : vector<4x16x32xf32>
    %32 = vector.shape_cast %31 : vector<4x16x32xf32> to vector<64x32xf32>
    %cst_24 = arith.constant dense<0.000000e+00> : vector<64x16xf32>
    %33 = tpu.matmul %32, %25, %cst_24 {dimension_numbers = #tpu.dot_dimension_numbers<[1], [1], [0], [0], [0, 0, 1, 0], [], []>} : vector<64x32xf32>, vector<16x32xf32>, vector<64x16xf32> -> vector<64x16xf32>
    %c0_25 = arith.constant 0 : index
    %c0_26 = arith.constant 0 : index
    %34 = vector.load %arg4[%c0_25, %c0_26] : memref<64x16xf32, #tpu.memory_space<vmem>>, vector<64x16xf32>
    %35 = arith.addf %33, %34 : vector<64x16xf32>
    %cst_27 = arith.constant dense<0xFF800000> : vector<64xf32>
    %36 = vector.multi_reduction <maximumf>, %35, %cst_27 [1] : vector<64x16xf32> to vector<64xf32>
    %37 = vector.shape_cast %36 : vector<64xf32> to vector<64x1xf32>
    %38 = vector.broadcast %37 : vector<64x1xf32> to vector<64x16xf32>
    %39 = arith.subf %35, %38 : vector<64x16xf32>
    %40 = math.exp %39 : vector<64x16xf32>
    %cst_28 = arith.constant dense<0.000000e+00> : vector<64xf32>
    %41 = vector.multi_reduction <add>, %40, %cst_28 [1] : vector<64x16xf32> to vector<64xf32>
    %42 = vector.shape_cast %41 : vector<64xf32> to vector<64x1xf32>
    %43 = tpu.reciprocal %42 : vector<64x1xf32> -> vector<64x1xf32>
    %44 = vector.broadcast %43 : vector<64x1xf32> to vector<64x16xf32>
    %45 = arith.mulf %40, %44 : vector<64x16xf32>
    %cst_29 = arith.constant dense<0.000000e+00> : vector<64x32xf32>
    %46 = tpu.matmul %45, %26, %cst_29 {dimension_numbers = #tpu.dot_dimension_numbers<[1], [0], [0], [1], [0, 0, 1, 1], [], []>} : vector<64x16xf32>, vector<16x32xf32>, vector<64x32xf32> -> vector<64x32xf32>
    %47 = vector.shape_cast %46 : vector<64x32xf32> to vector<4x16x32xf32>
    %c0_30 = arith.constant 0 : index
    %c0_31 = arith.constant 0 : index
    %c0_32 = arith.constant 0 : index
    %48 = vector.load %arg3[%c0_30, %c0_31, %c0_32] : memref<4x1x32xf32, #tpu.memory_space<vmem>>, vector<4x1x32xf32>
    %49 = vector.broadcast %48 : vector<4x1x32xf32> to vector<4x16x32xf32>
    %50 = arith.mulf %47, %49 : vector<4x16x32xf32>
    %cst_33 = arith.constant dense<0.000000e+00> : vector<16x32xf32>
    %51 = vector.multi_reduction <add>, %50, %cst_33 [0] : vector<4x16x32xf32> to vector<16x32xf32>
    %c0_34 = arith.constant 0 : index
    %c0_35 = arith.constant 0 : index
    %52 = vector.load %arg7[%c0_34, %c0_35] : memref<32x96xf32, #tpu.memory_space<vmem>>, vector<32x32xf32>
    %cst_36 = arith.constant dense<0.000000e+00> : vector<16x32xf32>
    %53 = tpu.matmul %51, %52, %cst_36 {dimension_numbers = #tpu.dot_dimension_numbers<[1], [0], [0], [1], [0, 0, 1, 1], [], []>} : vector<16x32xf32>, vector<32x32xf32>, vector<16x32xf32> -> vector<16x32xf32>
    %c0_37 = arith.constant 0 : index
    %c0_38 = arith.constant 0 : index
    %54 = vector.load %arg8[%c0_37, %c0_38] : memref<1x96xf32, #tpu.memory_space<vmem>>, vector<1x32xf32>
    %55 = vector.broadcast %54 : vector<1x32xf32> to vector<16x32xf32>
    %56 = arith.addf %53, %55 : vector<16x32xf32>
    %57 = arith.addf %18, %56 : vector<16x32xf32>
    %c0_39 = arith.constant 0 : index
    %c32 = arith.constant 32 : index
    %58 = vector.load %arg7[%c0_39, %c32] : memref<32x96xf32, #tpu.memory_space<vmem>>, vector<32x32xf32>
    %cst_40 = arith.constant dense<0.000000e+00> : vector<16x32xf32>
    %59 = tpu.matmul %57, %58, %cst_40 {dimension_numbers = #tpu.dot_dimension_numbers<[1], [0], [0], [1], [0, 0, 1, 1], [], []>} : vector<16x32xf32>, vector<32x32xf32>, vector<16x32xf32> -> vector<16x32xf32>
    %c0_41 = arith.constant 0 : index
    %c32_42 = arith.constant 32 : index
    %60 = vector.load %arg8[%c0_41, %c32_42] : memref<1x96xf32, #tpu.memory_space<vmem>>, vector<1x32xf32>
    %61 = vector.broadcast %60 : vector<1x32xf32> to vector<16x32xf32>
    %62 = arith.addf %59, %61 : vector<16x32xf32>
    %cst_43 = arith.constant 0.000000e+00 : f32
    %63 = vector.broadcast %cst_43 : f32 to vector<16x32xf32>
    %64 = arith.maximumf %62, %63 : vector<16x32xf32>
    %c0_44 = arith.constant 0 : index
    %c64 = arith.constant 64 : index
    %65 = vector.load %arg7[%c0_44, %c64] : memref<32x96xf32, #tpu.memory_space<vmem>>, vector<32x32xf32>
    %cst_45 = arith.constant dense<0.000000e+00> : vector<16x32xf32>
    %66 = tpu.matmul %64, %65, %cst_45 {dimension_numbers = #tpu.dot_dimension_numbers<[1], [0], [0], [1], [0, 0, 1, 1], [], []>} : vector<16x32xf32>, vector<32x32xf32>, vector<16x32xf32> -> vector<16x32xf32>
    %c0_46 = arith.constant 0 : index
    %c64_47 = arith.constant 64 : index
    %67 = vector.load %arg8[%c0_46, %c64_47] : memref<1x96xf32, #tpu.memory_space<vmem>>, vector<1x32xf32>
    %68 = vector.broadcast %67 : vector<1x32xf32> to vector<16x32xf32>
    %69 = arith.addf %66, %68 : vector<16x32xf32>
    %cst_48 = arith.constant 0.000000e+00 : f32
    %70 = vector.broadcast %cst_48 : f32 to vector<16x32xf32>
    %71 = arith.maximumf %69, %70 : vector<16x32xf32>
    %72 = arith.addf %57, %71 : vector<16x32xf32>
    %73 = arith.index_cast %c0_i32 : i32 to index
    %c0_49 = arith.constant 0 : index
    %c0_50 = arith.constant 0 : index
    %74 = vector.load %arg12[%73, %c0_49, %c0_50] : memref<4x16x64xf32, #tpu.memory_space<vmem>>, vector<1x16x64xf32>
    %75 = vector.shape_cast %74 : vector<1x16x64xf32> to vector<16x64xf32>
    %76 = math.tanh %18 : vector<16x32xf32>
    %c0_51 = arith.constant 0 : index
    %c64_52 = arith.constant 64 : index
    %77 = vector.load %arg9[%c0_51, %c64_52] : memref<32x128xf32, #tpu.memory_space<vmem>>, vector<32x64xf32>
    %cst_53 = arith.constant dense<0.000000e+00> : vector<16x64xf32>
    %78 = tpu.matmul %76, %77, %cst_53 {dimension_numbers = #tpu.dot_dimension_numbers<[1], [0], [0], [1], [0, 0, 1, 1], [], []>} : vector<16x32xf32>, vector<32x64xf32>, vector<16x64xf32> -> vector<16x64xf32>
    %79 = arith.addf %75, %78 : vector<16x64xf32>
    %80 = vector.extract_strided_slice %79 {offsets = [0, 0], sizes = [16, 32], strides = [1, 1]} : vector<16x64xf32> to vector<16x32xf32>
    %81 = arith.negf %80 : vector<16x32xf32>
    %82 = math.exp %81 : vector<16x32xf32>
    %cst_54 = arith.constant 1.000000e+00 : f32
    %83 = vector.broadcast %cst_54 : f32 to vector<16x32xf32>
    %84 = arith.addf %83, %82 : vector<16x32xf32>
    %85 = arith.divf %83, %84 : vector<16x32xf32>
    %86 = vector.extract_strided_slice %79 {offsets = [0, 32], sizes = [16, 32], strides = [1, 1]} : vector<16x64xf32> to vector<16x32xf32>
    %87 = arith.negf %86 : vector<16x32xf32>
    %88 = math.exp %87 : vector<16x32xf32>
    %cst_55 = arith.constant 1.000000e+00 : f32
    %89 = vector.broadcast %cst_55 : f32 to vector<16x32xf32>
    %90 = arith.addf %89, %88 : vector<16x32xf32>
    %91 = arith.divf %89, %90 : vector<16x32xf32>
    %92 = math.tanh %72 : vector<16x32xf32>
    %93 = arith.mulf %85, %92 : vector<16x32xf32>
    %94 = arith.mulf %91, %18 : vector<16x32xf32>
    %95 = arith.addf %93, %94 : vector<16x32xf32>
    %96 = arith.index_cast %c0_i32 : i32 to index
    %c0_56 = arith.constant 0 : index
    %c0_57 = arith.constant 0 : index
    %97 = vector.load %arg11[%96, %c0_56, %c0_57] : memref<4x16x32xf32, #tpu.memory_space<vmem>>, vector<1x16x32xf32>
    %98 = vector.shape_cast %97 : vector<1x16x32xf32> to vector<16x32xf32>
    %99 = vector.shape_cast %95 : vector<16x32xf32> to vector<1x16x32xf32>
    tpu.vector_store %arg11[%96, %c0_56, %c0_57], %99 {strides = array<i32>} : memref<4x16x32xf32, #tpu.memory_space<vmem>>, vector<1x16x32xf32>,
    %c1_i32 = arith.constant 1 : i32
    %100 = arith.index_cast %c1_i32 : i32 to index
    %c0_58 = arith.constant 0 : index
    %c0_59 = arith.constant 0 : index
    %101 = vector.load %arg0[%100, %c0_58, %c0_59] : memref<4x16x32xf32, #tpu.memory_space<vmem>>, vector<1x16x32xf32>
    %102 = vector.shape_cast %101 : vector<1x16x32xf32> to vector<16x32xf32>
    %c0_60 = arith.constant 0 : index
    %c0_61 = arith.constant 0 : index
    %103 = vector.load %arg2[%c0_60, %c0_61] : memref<16x1xf32, #tpu.memory_space<vmem>>, vector<16x1xf32>
    %cst_62 = arith.constant 5.000000e-01 : f32
    %104 = vector.broadcast %cst_62 : f32 to vector<16x1xf32>
    %105 = arith.cmpf ogt, %103, %104 : vector<16x1xf32>
    %106 = vector.shape_cast %105 : vector<16x1xi1> to vector<16x1xi1>
    %107 = vector.broadcast %106 : vector<16x1xi1> to vector<16x32xi1>
    %108 = arith.select %107, %102, %95 : vector<16x32xi1>, vector<16x32xf32>
    %c0_63 = arith.constant 0 : index
    %c0_64 = arith.constant 0 : index
    %109 = vector.load %arg5[%c0_63, %c0_64] : memref<32x96xf32, #tpu.memory_space<vmem>>, vector<32x96xf32>
    %cst_65 = arith.constant dense<0.000000e+00> : vector<16x96xf32>
    %110 = tpu.matmul %108, %109, %cst_65 {dimension_numbers = #tpu.dot_dimension_numbers<[1], [0], [0], [1], [0, 0, 1, 1], [], []>} : vector<16x32xf32>, vector<32x96xf32>, vector<16x96xf32> -> vector<16x96xf32>
    %c0_66 = arith.constant 0 : index
    %c0_67 = arith.constant 0 : index
    %111 = vector.load %arg6[%c0_66, %c0_67] : memref<1x96xf32, #tpu.memory_space<vmem>>, vector<1x96xf32>
    %112 = vector.broadcast %111 : vector<1x96xf32> to vector<16x96xf32>
    %113 = arith.addf %110, %112 : vector<16x96xf32>
    %114 = vector.extract_strided_slice %113 {offsets = [0, 0], sizes = [16, 32], strides = [1, 1]} : vector<16x96xf32> to vector<16x32xf32>
    %115 = vector.extract_strided_slice %113 {offsets = [0, 32], sizes = [16, 32], strides = [1, 1]} : vector<16x96xf32> to vector<16x32xf32>
    %116 = vector.extract_strided_slice %113 {offsets = [0, 64], sizes = [16, 32], strides = [1, 1]} : vector<16x96xf32> to vector<16x32xf32>
    %117 = vector.shape_cast %114 : vector<16x32xf32> to vector<1x16x32xf32>
    %c0_68 = arith.constant 0 : index
    %c0_69 = arith.constant 0 : index
    %c0_70 = arith.constant 0 : index
    %118 = vector.load %arg3[%c0_68, %c0_69, %c0_70] : memref<4x1x32xf32, #tpu.memory_space<vmem>>, vector<4x1x32xf32>
    %119 = vector.broadcast %117 : vector<1x16x32xf32> to vector<4x16x32xf32>
    %120 = vector.broadcast %118 : vector<4x1x32xf32> to vector<4x16x32xf32>
    %121 = arith.mulf %119, %120 : vector<4x16x32xf32>
    %122 = vector.shape_cast %121 : vector<4x16x32xf32> to vector<64x32xf32>
    %cst_71 = arith.constant dense<0.000000e+00> : vector<64x16xf32>
    %123 = tpu.matmul %122, %115, %cst_71 {dimension_numbers = #tpu.dot_dimension_numbers<[1], [1], [0], [0], [0, 0, 1, 0], [], []>} : vector<64x32xf32>, vector<16x32xf32>, vector<64x16xf32> -> vector<64x16xf32>
    %c0_72 = arith.constant 0 : index
    %c0_73 = arith.constant 0 : index
    %124 = vector.load %arg4[%c0_72, %c0_73] : memref<64x16xf32, #tpu.memory_space<vmem>>, vector<64x16xf32>
    %125 = arith.addf %123, %124 : vector<64x16xf32>
    %cst_74 = arith.constant dense<0xFF800000> : vector<64xf32>
    %126 = vector.multi_reduction <maximumf>, %125, %cst_74 [1] : vector<64x16xf32> to vector<64xf32>
    %127 = vector.shape_cast %126 : vector<64xf32> to vector<64x1xf32>
    %128 = vector.broadcast %127 : vector<64x1xf32> to vector<64x16xf32>
    %129 = arith.subf %125, %128 : vector<64x16xf32>
    %130 = math.exp %129 : vector<64x16xf32>
    %cst_75 = arith.constant dense<0.000000e+00> : vector<64xf32>
    %131 = vector.multi_reduction <add>, %130, %cst_75 [1] : vector<64x16xf32> to vector<64xf32>
    %132 = vector.shape_cast %131 : vector<64xf32> to vector<64x1xf32>
    %133 = tpu.reciprocal %132 : vector<64x1xf32> -> vector<64x1xf32>
    %134 = vector.broadcast %133 : vector<64x1xf32> to vector<64x16xf32>
    %135 = arith.mulf %130, %134 : vector<64x16xf32>
    %cst_76 = arith.constant dense<0.000000e+00> : vector<64x32xf32>
    %136 = tpu.matmul %135, %116, %cst_76 {dimension_numbers = #tpu.dot_dimension_numbers<[1], [0], [0], [1], [0, 0, 1, 1], [], []>} : vector<64x16xf32>, vector<16x32xf32>, vector<64x32xf32> -> vector<64x32xf32>
    %137 = vector.shape_cast %136 : vector<64x32xf32> to vector<4x16x32xf32>
    %c0_77 = arith.constant 0 : index
    %c0_78 = arith.constant 0 : index
    %c0_79 = arith.constant 0 : index
    %138 = vector.load %arg3[%c0_77, %c0_78, %c0_79] : memref<4x1x32xf32, #tpu.memory_space<vmem>>, vector<4x1x32xf32>
    %139 = vector.broadcast %138 : vector<4x1x32xf32> to vector<4x16x32xf32>
    %140 = arith.mulf %137, %139 : vector<4x16x32xf32>
    %cst_80 = arith.constant dense<0.000000e+00> : vector<16x32xf32>
    %141 = vector.multi_reduction <add>, %140, %cst_80 [0] : vector<4x16x32xf32> to vector<16x32xf32>
    %c0_81 = arith.constant 0 : index
    %c0_82 = arith.constant 0 : index
    %142 = vector.load %arg7[%c0_81, %c0_82] : memref<32x96xf32, #tpu.memory_space<vmem>>, vector<32x32xf32>
    %cst_83 = arith.constant dense<0.000000e+00> : vector<16x32xf32>
    %143 = tpu.matmul %141, %142, %cst_83 {dimension_numbers = #tpu.dot_dimension_numbers<[1], [0], [0], [1], [0, 0, 1, 1], [], []>} : vector<16x32xf32>, vector<32x32xf32>, vector<16x32xf32> -> vector<16x32xf32>
    %c0_84 = arith.constant 0 : index
    %c0_85 = arith.constant 0 : index
    %144 = vector.load %arg8[%c0_84, %c0_85] : memref<1x96xf32, #tpu.memory_space<vmem>>, vector<1x32xf32>
    %145 = vector.broadcast %144 : vector<1x32xf32> to vector<16x32xf32>
    %146 = arith.addf %143, %145 : vector<16x32xf32>
    %147 = arith.addf %108, %146 : vector<16x32xf32>
    %c0_86 = arith.constant 0 : index
    %c32_87 = arith.constant 32 : index
    %148 = vector.load %arg7[%c0_86, %c32_87] : memref<32x96xf32, #tpu.memory_space<vmem>>, vector<32x32xf32>
    %cst_88 = arith.constant dense<0.000000e+00> : vector<16x32xf32>
    %149 = tpu.matmul %147, %148, %cst_88 {dimension_numbers = #tpu.dot_dimension_numbers<[1], [0], [0], [1], [0, 0, 1, 1], [], []>} : vector<16x32xf32>, vector<32x32xf32>, vector<16x32xf32> -> vector<16x32xf32>
    %c0_89 = arith.constant 0 : index
    %c32_90 = arith.constant 32 : index
    %150 = vector.load %arg8[%c0_89, %c32_90] : memref<1x96xf32, #tpu.memory_space<vmem>>, vector<1x32xf32>
    %151 = vector.broadcast %150 : vector<1x32xf32> to vector<16x32xf32>
    %152 = arith.addf %149, %151 : vector<16x32xf32>
    %cst_91 = arith.constant 0.000000e+00 : f32
    %153 = vector.broadcast %cst_91 : f32 to vector<16x32xf32>
    %154 = arith.maximumf %152, %153 : vector<16x32xf32>
    %c0_92 = arith.constant 0 : index
    %c64_93 = arith.constant 64 : index
    %155 = vector.load %arg7[%c0_92, %c64_93] : memref<32x96xf32, #tpu.memory_space<vmem>>, vector<32x32xf32>
    %cst_94 = arith.constant dense<0.000000e+00> : vector<16x32xf32>
    %156 = tpu.matmul %154, %155, %cst_94 {dimension_numbers = #tpu.dot_dimension_numbers<[1], [0], [0], [1], [0, 0, 1, 1], [], []>} : vector<16x32xf32>, vector<32x32xf32>, vector<16x32xf32> -> vector<16x32xf32>
    %c0_95 = arith.constant 0 : index
    %c64_96 = arith.constant 64 : index
    %157 = vector.load %arg8[%c0_95, %c64_96] : memref<1x96xf32, #tpu.memory_space<vmem>>, vector<1x32xf32>
    %158 = vector.broadcast %157 : vector<1x32xf32> to vector<16x32xf32>
    %159 = arith.addf %156, %158 : vector<16x32xf32>
    %cst_97 = arith.constant 0.000000e+00 : f32
    %160 = vector.broadcast %cst_97 : f32 to vector<16x32xf32>
    %161 = arith.maximumf %159, %160 : vector<16x32xf32>
    %162 = arith.addf %147, %161 : vector<16x32xf32>
    %163 = arith.index_cast %c1_i32 : i32 to index
    %c0_98 = arith.constant 0 : index
    %c0_99 = arith.constant 0 : index
    %164 = vector.load %arg12[%163, %c0_98, %c0_99] : memref<4x16x64xf32, #tpu.memory_space<vmem>>, vector<1x16x64xf32>
    %165 = vector.shape_cast %164 : vector<1x16x64xf32> to vector<16x64xf32>
    %166 = math.tanh %108 : vector<16x32xf32>
    %c0_100 = arith.constant 0 : index
    %c64_101 = arith.constant 64 : index
    %167 = vector.load %arg9[%c0_100, %c64_101] : memref<32x128xf32, #tpu.memory_space<vmem>>, vector<32x64xf32>
    %cst_102 = arith.constant dense<0.000000e+00> : vector<16x64xf32>
    %168 = tpu.matmul %166, %167, %cst_102 {dimension_numbers = #tpu.dot_dimension_numbers<[1], [0], [0], [1], [0, 0, 1, 1], [], []>} : vector<16x32xf32>, vector<32x64xf32>, vector<16x64xf32> -> vector<16x64xf32>
    %169 = arith.addf %165, %168 : vector<16x64xf32>
    %170 = vector.extract_strided_slice %169 {offsets = [0, 0], sizes = [16, 32], strides = [1, 1]} : vector<16x64xf32> to vector<16x32xf32>
    %171 = arith.negf %170 : vector<16x32xf32>
    %172 = math.exp %171 : vector<16x32xf32>
    %cst_103 = arith.constant 1.000000e+00 : f32
    %173 = vector.broadcast %cst_103 : f32 to vector<16x32xf32>
    %174 = arith.addf %173, %172 : vector<16x32xf32>
    %175 = arith.divf %173, %174 : vector<16x32xf32>
    %176 = vector.extract_strided_slice %169 {offsets = [0, 32], sizes = [16, 32], strides = [1, 1]} : vector<16x64xf32> to vector<16x32xf32>
    %177 = arith.negf %176 : vector<16x32xf32>
    %178 = math.exp %177 : vector<16x32xf32>
    %cst_104 = arith.constant 1.000000e+00 : f32
    %179 = vector.broadcast %cst_104 : f32 to vector<16x32xf32>
    %180 = arith.addf %179, %178 : vector<16x32xf32>
    %181 = arith.divf %179, %180 : vector<16x32xf32>
    %182 = math.tanh %162 : vector<16x32xf32>
    %183 = arith.mulf %175, %182 : vector<16x32xf32>
    %184 = arith.mulf %181, %108 : vector<16x32xf32>
    %185 = arith.addf %183, %184 : vector<16x32xf32>
    %186 = arith.index_cast %c1_i32 : i32 to index
    %c0_105 = arith.constant 0 : index
    %c0_106 = arith.constant 0 : index
    %187 = vector.load %arg11[%186, %c0_105, %c0_106] : memref<4x16x32xf32, #tpu.memory_space<vmem>>, vector<1x16x32xf32>
    %188 = vector.shape_cast %187 : vector<1x16x32xf32> to vector<16x32xf32>
    %189 = vector.shape_cast %185 : vector<16x32xf32> to vector<1x16x32xf32>
    tpu.vector_store %arg11[%186, %c0_105, %c0_106], %189 {strides = array<i32>} : memref<4x16x32xf32, #tpu.memory_space<vmem>>, vector<1x16x32xf32>,
    %c2_i32 = arith.constant 2 : i32
    %190 = arith.index_cast %c2_i32 : i32 to index
    %c0_107 = arith.constant 0 : index
    %c0_108 = arith.constant 0 : index
    %191 = vector.load %arg0[%190, %c0_107, %c0_108] : memref<4x16x32xf32, #tpu.memory_space<vmem>>, vector<1x16x32xf32>
    %192 = vector.shape_cast %191 : vector<1x16x32xf32> to vector<16x32xf32>
    %c0_109 = arith.constant 0 : index
    %c0_110 = arith.constant 0 : index
    %193 = vector.load %arg2[%c0_109, %c0_110] : memref<16x1xf32, #tpu.memory_space<vmem>>, vector<16x1xf32>
    %cst_111 = arith.constant 5.000000e-01 : f32
    %194 = vector.broadcast %cst_111 : f32 to vector<16x1xf32>
    %195 = arith.cmpf ogt, %193, %194 : vector<16x1xf32>
    %196 = vector.shape_cast %195 : vector<16x1xi1> to vector<16x1xi1>
    %197 = vector.broadcast %196 : vector<16x1xi1> to vector<16x32xi1>
    %198 = arith.select %197, %192, %185 : vector<16x32xi1>, vector<16x32xf32>
    %c0_112 = arith.constant 0 : index
    %c0_113 = arith.constant 0 : index
    %199 = vector.load %arg5[%c0_112, %c0_113] : memref<32x96xf32, #tpu.memory_space<vmem>>, vector<32x96xf32>
    %cst_114 = arith.constant dense<0.000000e+00> : vector<16x96xf32>
    %200 = tpu.matmul %198, %199, %cst_114 {dimension_numbers = #tpu.dot_dimension_numbers<[1], [0], [0], [1], [0, 0, 1, 1], [], []>} : vector<16x32xf32>, vector<32x96xf32>, vector<16x96xf32> -> vector<16x96xf32>
    %c0_115 = arith.constant 0 : index
    %c0_116 = arith.constant 0 : index
    %201 = vector.load %arg6[%c0_115, %c0_116] : memref<1x96xf32, #tpu.memory_space<vmem>>, vector<1x96xf32>
    %202 = vector.broadcast %201 : vector<1x96xf32> to vector<16x96xf32>
    %203 = arith.addf %200, %202 : vector<16x96xf32>
    %204 = vector.extract_strided_slice %203 {offsets = [0, 0], sizes = [16, 32], strides = [1, 1]} : vector<16x96xf32> to vector<16x32xf32>
    %205 = vector.extract_strided_slice %203 {offsets = [0, 32], sizes = [16, 32], strides = [1, 1]} : vector<16x96xf32> to vector<16x32xf32>
    %206 = vector.extract_strided_slice %203 {offsets = [0, 64], sizes = [16, 32], strides = [1, 1]} : vector<16x96xf32> to vector<16x32xf32>
    %207 = vector.shape_cast %204 : vector<16x32xf32> to vector<1x16x32xf32>
    %c0_117 = arith.constant 0 : index
    %c0_118 = arith.constant 0 : index
    %c0_119 = arith.constant 0 : index
    %208 = vector.load %arg3[%c0_117, %c0_118, %c0_119] : memref<4x1x32xf32, #tpu.memory_space<vmem>>, vector<4x1x32xf32>
    %209 = vector.broadcast %207 : vector<1x16x32xf32> to vector<4x16x32xf32>
    %210 = vector.broadcast %208 : vector<4x1x32xf32> to vector<4x16x32xf32>
    %211 = arith.mulf %209, %210 : vector<4x16x32xf32>
    %212 = vector.shape_cast %211 : vector<4x16x32xf32> to vector<64x32xf32>
    %cst_120 = arith.constant dense<0.000000e+00> : vector<64x16xf32>
    %213 = tpu.matmul %212, %205, %cst_120 {dimension_numbers = #tpu.dot_dimension_numbers<[1], [1], [0], [0], [0, 0, 1, 0], [], []>} : vector<64x32xf32>, vector<16x32xf32>, vector<64x16xf32> -> vector<64x16xf32>
    %c0_121 = arith.constant 0 : index
    %c0_122 = arith.constant 0 : index
    %214 = vector.load %arg4[%c0_121, %c0_122] : memref<64x16xf32, #tpu.memory_space<vmem>>, vector<64x16xf32>
    %215 = arith.addf %213, %214 : vector<64x16xf32>
    %cst_123 = arith.constant dense<0xFF800000> : vector<64xf32>
    %216 = vector.multi_reduction <maximumf>, %215, %cst_123 [1] : vector<64x16xf32> to vector<64xf32>
    %217 = vector.shape_cast %216 : vector<64xf32> to vector<64x1xf32>
    %218 = vector.broadcast %217 : vector<64x1xf32> to vector<64x16xf32>
    %219 = arith.subf %215, %218 : vector<64x16xf32>
    %220 = math.exp %219 : vector<64x16xf32>
    %cst_124 = arith.constant dense<0.000000e+00> : vector<64xf32>
    %221 = vector.multi_reduction <add>, %220, %cst_124 [1] : vector<64x16xf32> to vector<64xf32>
    %222 = vector.shape_cast %221 : vector<64xf32> to vector<64x1xf32>
    %223 = tpu.reciprocal %222 : vector<64x1xf32> -> vector<64x1xf32>
    %224 = vector.broadcast %223 : vector<64x1xf32> to vector<64x16xf32>
    %225 = arith.mulf %220, %224 : vector<64x16xf32>
    %cst_125 = arith.constant dense<0.000000e+00> : vector<64x32xf32>
    %226 = tpu.matmul %225, %206, %cst_125 {dimension_numbers = #tpu.dot_dimension_numbers<[1], [0], [0], [1], [0, 0, 1, 1], [], []>} : vector<64x16xf32>, vector<16x32xf32>, vector<64x32xf32> -> vector<64x32xf32>
    %227 = vector.shape_cast %226 : vector<64x32xf32> to vector<4x16x32xf32>
    %c0_126 = arith.constant 0 : index
    %c0_127 = arith.constant 0 : index
    %c0_128 = arith.constant 0 : index
    %228 = vector.load %arg3[%c0_126, %c0_127, %c0_128] : memref<4x1x32xf32, #tpu.memory_space<vmem>>, vector<4x1x32xf32>
    %229 = vector.broadcast %228 : vector<4x1x32xf32> to vector<4x16x32xf32>
    %230 = arith.mulf %227, %229 : vector<4x16x32xf32>
    %cst_129 = arith.constant dense<0.000000e+00> : vector<16x32xf32>
    %231 = vector.multi_reduction <add>, %230, %cst_129 [0] : vector<4x16x32xf32> to vector<16x32xf32>
    %c0_130 = arith.constant 0 : index
    %c0_131 = arith.constant 0 : index
    %232 = vector.load %arg7[%c0_130, %c0_131] : memref<32x96xf32, #tpu.memory_space<vmem>>, vector<32x32xf32>
    %cst_132 = arith.constant dense<0.000000e+00> : vector<16x32xf32>
    %233 = tpu.matmul %231, %232, %cst_132 {dimension_numbers = #tpu.dot_dimension_numbers<[1], [0], [0], [1], [0, 0, 1, 1], [], []>} : vector<16x32xf32>, vector<32x32xf32>, vector<16x32xf32> -> vector<16x32xf32>
    %c0_133 = arith.constant 0 : index
    %c0_134 = arith.constant 0 : index
    %234 = vector.load %arg8[%c0_133, %c0_134] : memref<1x96xf32, #tpu.memory_space<vmem>>, vector<1x32xf32>
    %235 = vector.broadcast %234 : vector<1x32xf32> to vector<16x32xf32>
    %236 = arith.addf %233, %235 : vector<16x32xf32>
    %237 = arith.addf %198, %236 : vector<16x32xf32>
    %c0_135 = arith.constant 0 : index
    %c32_136 = arith.constant 32 : index
    %238 = vector.load %arg7[%c0_135, %c32_136] : memref<32x96xf32, #tpu.memory_space<vmem>>, vector<32x32xf32>
    %cst_137 = arith.constant dense<0.000000e+00> : vector<16x32xf32>
    %239 = tpu.matmul %237, %238, %cst_137 {dimension_numbers = #tpu.dot_dimension_numbers<[1], [0], [0], [1], [0, 0, 1, 1], [], []>} : vector<16x32xf32>, vector<32x32xf32>, vector<16x32xf32> -> vector<16x32xf32>
    %c0_138 = arith.constant 0 : index
    %c32_139 = arith.constant 32 : index
    %240 = vector.load %arg8[%c0_138, %c32_139] : memref<1x96xf32, #tpu.memory_space<vmem>>, vector<1x32xf32>
    %241 = vector.broadcast %240 : vector<1x32xf32> to vector<16x32xf32>
    %242 = arith.addf %239, %241 : vector<16x32xf32>
    %cst_140 = arith.constant 0.000000e+00 : f32
    %243 = vector.broadcast %cst_140 : f32 to vector<16x32xf32>
    %244 = arith.maximumf %242, %243 : vector<16x32xf32>
    %c0_141 = arith.constant 0 : index
    %c64_142 = arith.constant 64 : index
    %245 = vector.load %arg7[%c0_141, %c64_142] : memref<32x96xf32, #tpu.memory_space<vmem>>, vector<32x32xf32>
    %cst_143 = arith.constant dense<0.000000e+00> : vector<16x32xf32>
    %246 = tpu.matmul %244, %245, %cst_143 {dimension_numbers = #tpu.dot_dimension_numbers<[1], [0], [0], [1], [0, 0, 1, 1], [], []>} : vector<16x32xf32>, vector<32x32xf32>, vector<16x32xf32> -> vector<16x32xf32>
    %c0_144 = arith.constant 0 : index
    %c64_145 = arith.constant 64 : index
    %247 = vector.load %arg8[%c0_144, %c64_145] : memref<1x96xf32, #tpu.memory_space<vmem>>, vector<1x32xf32>
    %248 = vector.broadcast %247 : vector<1x32xf32> to vector<16x32xf32>
    %249 = arith.addf %246, %248 : vector<16x32xf32>
    %cst_146 = arith.constant 0.000000e+00 : f32
    %250 = vector.broadcast %cst_146 : f32 to vector<16x32xf32>
    %251 = arith.maximumf %249, %250 : vector<16x32xf32>
    %252 = arith.addf %237, %251 : vector<16x32xf32>
    %253 = arith.index_cast %c2_i32 : i32 to index
    %c0_147 = arith.constant 0 : index
    %c0_148 = arith.constant 0 : index
    %254 = vector.load %arg12[%253, %c0_147, %c0_148] : memref<4x16x64xf32, #tpu.memory_space<vmem>>, vector<1x16x64xf32>
    %255 = vector.shape_cast %254 : vector<1x16x64xf32> to vector<16x64xf32>
    %256 = math.tanh %198 : vector<16x32xf32>
    %c0_149 = arith.constant 0 : index
    %c64_150 = arith.constant 64 : index
    %257 = vector.load %arg9[%c0_149, %c64_150] : memref<32x128xf32, #tpu.memory_space<vmem>>, vector<32x64xf32>
    %cst_151 = arith.constant dense<0.000000e+00> : vector<16x64xf32>
    %258 = tpu.matmul %256, %257, %cst_151 {dimension_numbers = #tpu.dot_dimension_numbers<[1], [0], [0], [1], [0, 0, 1, 1], [], []>} : vector<16x32xf32>, vector<32x64xf32>, vector<16x64xf32> -> vector<16x64xf32>
    %259 = arith.addf %255, %258 : vector<16x64xf32>
    %260 = vector.extract_strided_slice %259 {offsets = [0, 0], sizes = [16, 32], strides = [1, 1]} : vector<16x64xf32> to vector<16x32xf32>
    %261 = arith.negf %260 : vector<16x32xf32>
    %262 = math.exp %261 : vector<16x32xf32>
    %cst_152 = arith.constant 1.000000e+00 : f32
    %263 = vector.broadcast %cst_152 : f32 to vector<16x32xf32>
    %264 = arith.addf %263, %262 : vector<16x32xf32>
    %265 = arith.divf %263, %264 : vector<16x32xf32>
    %266 = vector.extract_strided_slice %259 {offsets = [0, 32], sizes = [16, 32], strides = [1, 1]} : vector<16x64xf32> to vector<16x32xf32>
    %267 = arith.negf %266 : vector<16x32xf32>
    %268 = math.exp %267 : vector<16x32xf32>
    %cst_153 = arith.constant 1.000000e+00 : f32
    %269 = vector.broadcast %cst_153 : f32 to vector<16x32xf32>
    %270 = arith.addf %269, %268 : vector<16x32xf32>
    %271 = arith.divf %269, %270 : vector<16x32xf32>
    %272 = math.tanh %252 : vector<16x32xf32>
    %273 = arith.mulf %265, %272 : vector<16x32xf32>
    %274 = arith.mulf %271, %198 : vector<16x32xf32>
    %275 = arith.addf %273, %274 : vector<16x32xf32>
    %276 = arith.index_cast %c2_i32 : i32 to index
    %c0_154 = arith.constant 0 : index
    %c0_155 = arith.constant 0 : index
    %277 = vector.load %arg11[%276, %c0_154, %c0_155] : memref<4x16x32xf32, #tpu.memory_space<vmem>>, vector<1x16x32xf32>
    %278 = vector.shape_cast %277 : vector<1x16x32xf32> to vector<16x32xf32>
    %279 = vector.shape_cast %275 : vector<16x32xf32> to vector<1x16x32xf32>
    tpu.vector_store %arg11[%276, %c0_154, %c0_155], %279 {strides = array<i32>} : memref<4x16x32xf32, #tpu.memory_space<vmem>>, vector<1x16x32xf32>,
    %c3_i32 = arith.constant 3 : i32
    %280 = arith.index_cast %c3_i32 : i32 to index
    %c0_156 = arith.constant 0 : index
    %c0_157 = arith.constant 0 : index
    %281 = vector.load %arg0[%280, %c0_156, %c0_157] : memref<4x16x32xf32, #tpu.memory_space<vmem>>, vector<1x16x32xf32>
    %282 = vector.shape_cast %281 : vector<1x16x32xf32> to vector<16x32xf32>
    %c0_158 = arith.constant 0 : index
    %c0_159 = arith.constant 0 : index
    %283 = vector.load %arg2[%c0_158, %c0_159] : memref<16x1xf32, #tpu.memory_space<vmem>>, vector<16x1xf32>
    %cst_160 = arith.constant 5.000000e-01 : f32
    %284 = vector.broadcast %cst_160 : f32 to vector<16x1xf32>
    %285 = arith.cmpf ogt, %283, %284 : vector<16x1xf32>
    %286 = vector.shape_cast %285 : vector<16x1xi1> to vector<16x1xi1>
    %287 = vector.broadcast %286 : vector<16x1xi1> to vector<16x32xi1>
    %288 = arith.select %287, %282, %275 : vector<16x32xi1>, vector<16x32xf32>
    %c0_161 = arith.constant 0 : index
    %c0_162 = arith.constant 0 : index
    %289 = vector.load %arg5[%c0_161, %c0_162] : memref<32x96xf32, #tpu.memory_space<vmem>>, vector<32x96xf32>
    %cst_163 = arith.constant dense<0.000000e+00> : vector<16x96xf32>
    %290 = tpu.matmul %288, %289, %cst_163 {dimension_numbers = #tpu.dot_dimension_numbers<[1], [0], [0], [1], [0, 0, 1, 1], [], []>} : vector<16x32xf32>, vector<32x96xf32>, vector<16x96xf32> -> vector<16x96xf32>
    %c0_164 = arith.constant 0 : index
    %c0_165 = arith.constant 0 : index
    %291 = vector.load %arg6[%c0_164, %c0_165] : memref<1x96xf32, #tpu.memory_space<vmem>>, vector<1x96xf32>
    %292 = vector.broadcast %291 : vector<1x96xf32> to vector<16x96xf32>
    %293 = arith.addf %290, %292 : vector<16x96xf32>
    %294 = vector.extract_strided_slice %293 {offsets = [0, 0], sizes = [16, 32], strides = [1, 1]} : vector<16x96xf32> to vector<16x32xf32>
    %295 = vector.extract_strided_slice %293 {offsets = [0, 32], sizes = [16, 32], strides = [1, 1]} : vector<16x96xf32> to vector<16x32xf32>
    %296 = vector.extract_strided_slice %293 {offsets = [0, 64], sizes = [16, 32], strides = [1, 1]} : vector<16x96xf32> to vector<16x32xf32>
    %297 = vector.shape_cast %294 : vector<16x32xf32> to vector<1x16x32xf32>
    %c0_166 = arith.constant 0 : index
    %c0_167 = arith.constant 0 : index
    %c0_168 = arith.constant 0 : index
    %298 = vector.load %arg3[%c0_166, %c0_167, %c0_168] : memref<4x1x32xf32, #tpu.memory_space<vmem>>, vector<4x1x32xf32>
    %299 = vector.broadcast %297 : vector<1x16x32xf32> to vector<4x16x32xf32>
    %300 = vector.broadcast %298 : vector<4x1x32xf32> to vector<4x16x32xf32>
    %301 = arith.mulf %299, %300 : vector<4x16x32xf32>
    %302 = vector.shape_cast %301 : vector<4x16x32xf32> to vector<64x32xf32>
    %cst_169 = arith.constant dense<0.000000e+00> : vector<64x16xf32>
    %303 = tpu.matmul %302, %295, %cst_169 {dimension_numbers = #tpu.dot_dimension_numbers<[1], [1], [0], [0], [0, 0, 1, 0], [], []>} : vector<64x32xf32>, vector<16x32xf32>, vector<64x16xf32> -> vector<64x16xf32>
    %c0_170 = arith.constant 0 : index
    %c0_171 = arith.constant 0 : index
    %304 = vector.load %arg4[%c0_170, %c0_171] : memref<64x16xf32, #tpu.memory_space<vmem>>, vector<64x16xf32>
    %305 = arith.addf %303, %304 : vector<64x16xf32>
    %cst_172 = arith.constant dense<0xFF800000> : vector<64xf32>
    %306 = vector.multi_reduction <maximumf>, %305, %cst_172 [1] : vector<64x16xf32> to vector<64xf32>
    %307 = vector.shape_cast %306 : vector<64xf32> to vector<64x1xf32>
    %308 = vector.broadcast %307 : vector<64x1xf32> to vector<64x16xf32>
    %309 = arith.subf %305, %308 : vector<64x16xf32>
    %310 = math.exp %309 : vector<64x16xf32>
    %cst_173 = arith.constant dense<0.000000e+00> : vector<64xf32>
    %311 = vector.multi_reduction <add>, %310, %cst_173 [1] : vector<64x16xf32> to vector<64xf32>
    %312 = vector.shape_cast %311 : vector<64xf32> to vector<64x1xf32>
    %313 = tpu.reciprocal %312 : vector<64x1xf32> -> vector<64x1xf32>
    %314 = vector.broadcast %313 : vector<64x1xf32> to vector<64x16xf32>
    %315 = arith.mulf %310, %314 : vector<64x16xf32>
    %cst_174 = arith.constant dense<0.000000e+00> : vector<64x32xf32>
    %316 = tpu.matmul %315, %296, %cst_174 {dimension_numbers = #tpu.dot_dimension_numbers<[1], [0], [0], [1], [0, 0, 1, 1], [], []>} : vector<64x16xf32>, vector<16x32xf32>, vector<64x32xf32> -> vector<64x32xf32>
    %317 = vector.shape_cast %316 : vector<64x32xf32> to vector<4x16x32xf32>
    %c0_175 = arith.constant 0 : index
    %c0_176 = arith.constant 0 : index
    %c0_177 = arith.constant 0 : index
    %318 = vector.load %arg3[%c0_175, %c0_176, %c0_177] : memref<4x1x32xf32, #tpu.memory_space<vmem>>, vector<4x1x32xf32>
    %319 = vector.broadcast %318 : vector<4x1x32xf32> to vector<4x16x32xf32>
    %320 = arith.mulf %317, %319 : vector<4x16x32xf32>
    %cst_178 = arith.constant dense<0.000000e+00> : vector<16x32xf32>
    %321 = vector.multi_reduction <add>, %320, %cst_178 [0] : vector<4x16x32xf32> to vector<16x32xf32>
    %c0_179 = arith.constant 0 : index
    %c0_180 = arith.constant 0 : index
    %322 = vector.load %arg7[%c0_179, %c0_180] : memref<32x96xf32, #tpu.memory_space<vmem>>, vector<32x32xf32>
    %cst_181 = arith.constant dense<0.000000e+00> : vector<16x32xf32>
    %323 = tpu.matmul %321, %322, %cst_181 {dimension_numbers = #tpu.dot_dimension_numbers<[1], [0], [0], [1], [0, 0, 1, 1], [], []>} : vector<16x32xf32>, vector<32x32xf32>, vector<16x32xf32> -> vector<16x32xf32>
    %c0_182 = arith.constant 0 : index
    %c0_183 = arith.constant 0 : index
    %324 = vector.load %arg8[%c0_182, %c0_183] : memref<1x96xf32, #tpu.memory_space<vmem>>, vector<1x32xf32>
    %325 = vector.broadcast %324 : vector<1x32xf32> to vector<16x32xf32>
    %326 = arith.addf %323, %325 : vector<16x32xf32>
    %327 = arith.addf %288, %326 : vector<16x32xf32>
    %c0_184 = arith.constant 0 : index
    %c32_185 = arith.constant 32 : index
    %328 = vector.load %arg7[%c0_184, %c32_185] : memref<32x96xf32, #tpu.memory_space<vmem>>, vector<32x32xf32>
    %cst_186 = arith.constant dense<0.000000e+00> : vector<16x32xf32>
    %329 = tpu.matmul %327, %328, %cst_186 {dimension_numbers = #tpu.dot_dimension_numbers<[1], [0], [0], [1], [0, 0, 1, 1], [], []>} : vector<16x32xf32>, vector<32x32xf32>, vector<16x32xf32> -> vector<16x32xf32>
    %c0_187 = arith.constant 0 : index
    %c32_188 = arith.constant 32 : index
    %330 = vector.load %arg8[%c0_187, %c32_188] : memref<1x96xf32, #tpu.memory_space<vmem>>, vector<1x32xf32>
    %331 = vector.broadcast %330 : vector<1x32xf32> to vector<16x32xf32>
    %332 = arith.addf %329, %331 : vector<16x32xf32>
    %cst_189 = arith.constant 0.000000e+00 : f32
    %333 = vector.broadcast %cst_189 : f32 to vector<16x32xf32>
    %334 = arith.maximumf %332, %333 : vector<16x32xf32>
    %c0_190 = arith.constant 0 : index
    %c64_191 = arith.constant 64 : index
    %335 = vector.load %arg7[%c0_190, %c64_191] : memref<32x96xf32, #tpu.memory_space<vmem>>, vector<32x32xf32>
    %cst_192 = arith.constant dense<0.000000e+00> : vector<16x32xf32>
    %336 = tpu.matmul %334, %335, %cst_192 {dimension_numbers = #tpu.dot_dimension_numbers<[1], [0], [0], [1], [0, 0, 1, 1], [], []>} : vector<16x32xf32>, vector<32x32xf32>, vector<16x32xf32> -> vector<16x32xf32>
    %c0_193 = arith.constant 0 : index
    %c64_194 = arith.constant 64 : index
    %337 = vector.load %arg8[%c0_193, %c64_194] : memref<1x96xf32, #tpu.memory_space<vmem>>, vector<1x32xf32>
    %338 = vector.broadcast %337 : vector<1x32xf32> to vector<16x32xf32>
    %339 = arith.addf %336, %338 : vector<16x32xf32>
    %cst_195 = arith.constant 0.000000e+00 : f32
    %340 = vector.broadcast %cst_195 : f32 to vector<16x32xf32>
    %341 = arith.maximumf %339, %340 : vector<16x32xf32>
    %342 = arith.addf %327, %341 : vector<16x32xf32>
    %343 = arith.index_cast %c3_i32 : i32 to index
    %c0_196 = arith.constant 0 : index
    %c0_197 = arith.constant 0 : index
    %344 = vector.load %arg12[%343, %c0_196, %c0_197] : memref<4x16x64xf32, #tpu.memory_space<vmem>>, vector<1x16x64xf32>
    %345 = vector.shape_cast %344 : vector<1x16x64xf32> to vector<16x64xf32>
    %346 = math.tanh %288 : vector<16x32xf32>
    %c0_198 = arith.constant 0 : index
    %c64_199 = arith.constant 64 : index
    %347 = vector.load %arg9[%c0_198, %c64_199] : memref<32x128xf32, #tpu.memory_space<vmem>>, vector<32x64xf32>
    %cst_200 = arith.constant dense<0.000000e+00> : vector<16x64xf32>
    %348 = tpu.matmul %346, %347, %cst_200 {dimension_numbers = #tpu.dot_dimension_numbers<[1], [0], [0], [1], [0, 0, 1, 1], [], []>} : vector<16x32xf32>, vector<32x64xf32>, vector<16x64xf32> -> vector<16x64xf32>
    %349 = arith.addf %345, %348 : vector<16x64xf32>
    %350 = vector.extract_strided_slice %349 {offsets = [0, 0], sizes = [16, 32], strides = [1, 1]} : vector<16x64xf32> to vector<16x32xf32>
    %351 = arith.negf %350 : vector<16x32xf32>
    %352 = math.exp %351 : vector<16x32xf32>
    %cst_201 = arith.constant 1.000000e+00 : f32
    %353 = vector.broadcast %cst_201 : f32 to vector<16x32xf32>
    %354 = arith.addf %353, %352 : vector<16x32xf32>
    %355 = arith.divf %353, %354 : vector<16x32xf32>
    %356 = vector.extract_strided_slice %349 {offsets = [0, 32], sizes = [16, 32], strides = [1, 1]} : vector<16x64xf32> to vector<16x32xf32>
    %357 = arith.negf %356 : vector<16x32xf32>
    %358 = math.exp %357 : vector<16x32xf32>
    %cst_202 = arith.constant 1.000000e+00 : f32
    %359 = vector.broadcast %cst_202 : f32 to vector<16x32xf32>
    %360 = arith.addf %359, %358 : vector<16x32xf32>
    %361 = arith.divf %359, %360 : vector<16x32xf32>
    %362 = math.tanh %342 : vector<16x32xf32>
    %363 = arith.mulf %355, %362 : vector<16x32xf32>
    %364 = arith.mulf %361, %288 : vector<16x32xf32>
    %365 = arith.addf %363, %364 : vector<16x32xf32>
    %366 = arith.index_cast %c3_i32 : i32 to index
    %c0_203 = arith.constant 0 : index
    %c0_204 = arith.constant 0 : index
    %367 = vector.load %arg11[%366, %c0_203, %c0_204] : memref<4x16x32xf32, #tpu.memory_space<vmem>>, vector<1x16x32xf32>
    %368 = vector.shape_cast %367 : vector<1x16x32xf32> to vector<16x32xf32>
    %369 = vector.shape_cast %365 : vector<16x32xf32> to vector<1x16x32xf32>
    tpu.vector_store %arg11[%366, %c0_203, %c0_204], %369 {strides = array<i32>} : memref<4x16x32xf32, #tpu.memory_space<vmem>>, vector<1x16x32xf32>,
    %c4_i32 = arith.constant 4 : i32
    return
  }
}

</mosaic_0001>

<llo_original>
// kernel: tpu_custom_call.1
$region0: #{tpu_custom_call.1}
  #allocation0 [shape = 'u32[]', space=smem, size = 0x4, offset = 0x4, fixed_abs, tag = 'smem constant byte address 0x4 - core index']
  #allocation1 [shape = 'u32[72,128]{1,0:T(1,128)}', space=vmem, size = 0x9000, scoped, tag = 'internal scratch']
  #allocation2 [shape = 'f32[4,16,64]{2,1,0:T(8,128)}', space=vmem, size = 0x8000, scoped, tag = 'scratch operand']
  %s0 = inlined_call_operand.vmem [shape: f32[4,16,32], index: 0, kind: input, shape index: {}]
  %s1 = inlined_call_operand.vmem [shape: f32[16,32], index: 1, kind: input, shape index: {}]
  %s2 = inlined_call_operand.vmem [shape: f32[16,1], index: 2, kind: input, shape index: {}]
  %s3 = inlined_call_operand.vmem [shape: f32[4,1,32], index: 3, kind: input, shape index: {}]
  %s4 = inlined_call_operand.vmem [shape: f32[64,16], index: 4, kind: input, shape index: {}]
  %s5 = inlined_call_operand.hbm [shape: f32[32,96], index: 5, kind: input, shape index: {}]
  %s6 = inlined_call_operand.vmem [shape: f32[1,96], index: 6, kind: input, shape index: {}]
  %s7 = inlined_call_operand.hbm [shape: f32[32,96], index: 7, kind: input, shape index: {}]
  %s8 = inlined_call_operand.vmem [shape: f32[1,96], index: 8, kind: input, shape index: {}]
  %s9 = inlined_call_operand.hbm [shape: f32[32,128], index: 9, kind: input, shape index: {}]
  %s10 = inlined_call_operand.vmem [shape: f32[1,64], index: 10, kind: input, shape index: {}]
  %s11 = inlined_call_operand.hbm [shape: f32[4,16,32], index: 11, kind: output, shape index: {}]
  %s12 = sld [smem:[#allocation0]]
  $region66: #{tpu_custom_call.1} parent=0
    _
  %s14 = ssub.s32 1, %s12
  %s15 = scalar_select 0, %s14, %s12
  $region1: #{tpu_custom_call.1} parent=0
    #allocation3 [shape = 'u8[16384]{0}', space=vmem, size = 0x4000, scoped, tag = 'input window, operand 5, single buffered']
    #allocation4 [shape = 's32[1]{0}', space=sflag, size = 0x4, scoped, tag = 'scoped memory for tpu_custom_call.1']
    #allocation5 [shape = 's32[1]{0}', space=sflag, size = 0x4, scoped, tag = 'scoped memory for tpu_custom_call.1']
    #allocation6 [shape = 'u8[16384]{0}', space=vmem, size = 0x4000, scoped, tag = 'input window, operand 7, single buffered']
    #allocation7 [shape = 's32[1]{0}', space=sflag, size = 0x4, scoped, tag = 'scoped memory for tpu_custom_call.1']
    #allocation8 [shape = 'u8[16384]{0}', space=vmem, size = 0x4000, scoped, tag = 'input window, operand 9, single buffered']
    #allocation9 [shape = 'u8[32768]{0}', space=vmem, size = 0x8000, scoped, tag = 'output window, operand 0, single buffered']
    %16 = vsyncpa [#allocation4], 0
    %17 = vsyncpa [#allocation7], 0
    %18 = vsyncpa [#allocation5], 0
    // Predicated region
    $region2: #{tpu_custom_call.1} parent=1 // pred_check
      _
    $region3: #{tpu_custom_call.1} parent=1 // pred_check_branch
      %20 = sbr.rel (0) target = $region5
    $region4: #{tpu_custom_call.1} parent=1 // pred_region
      _
    $region5: #{tpu_custom_call.1} parent=1 // pred_fallthru
      _
    // Predicated region
    $region6: #{tpu_custom_call.1} parent=1 // pred_check
      _
    $region7: #{tpu_custom_call.1} parent=1 // pred_check_branch
      %22 = sbr.rel (0) target = $region9
    $region8: #{tpu_custom_call.1} parent=1 // pred_region
      _
    $region9: #{tpu_custom_call.1} parent=1 // pred_fallthru
      _
    // Predicated region
    $region10: #{tpu_custom_call.1} parent=1 // pred_check
      _
    $region11: #{tpu_custom_call.1} parent=1 // pred_check_branch
      %24 = sbr.rel (0) target = $region13
    $region12: #{tpu_custom_call.1} parent=1 // pred_region
      _
    $region13: #{tpu_custom_call.1} parent=1 // pred_fallthru
      _
    // Predicated region
    $region14: #{tpu_custom_call.1} parent=1 // pred_check
      _
    $region15: #{tpu_custom_call.1} parent=1 // pred_check_branch
      %26 = sbr.rel (0) target = $region17
    $region16: #{tpu_custom_call.1} parent=1 // pred_region
      _
    $region17: #{tpu_custom_call.1} parent=1 // pred_fallthru
      _
    // Predicated region
    $region18: #{tpu_custom_call.1} parent=1 // pred_check
      _
    $region19: #{tpu_custom_call.1} parent=1 // pred_check_branch
      %28 = sbr.rel (0) target = $region21
    $region20: #{tpu_custom_call.1} parent=1 // pred_region
      _
    $region21: #{tpu_custom_call.1} parent=1 // pred_fallthru
      _
    // Predicated region
    $region22: #{tpu_custom_call.1} parent=1 // pred_check
      _
    $region23: #{tpu_custom_call.1} parent=1 // pred_check_branch
      %30 = sbr.rel (0) target = $region25
    $region24: #{tpu_custom_call.1} parent=1 // pred_region
      %32 = vsyncadd [#allocation4], 0
      %s33 = sshll.u32 %s5, 4
      %s34 = int_to_ptr.hbm [resolvable:$true] %s33
      %s35 = sshll.u32 [#allocation3], 4
      %s36 = int_to_ptr.vmem [resolvable:$true] %s35
      %41 = dma.hbm_to_vmem [thread:$0]  %s34, 512, %s36, [#allocation4], 128, 128, 8
    $region25: #{tpu_custom_call.1} parent=1 // pred_fallthru
      _
    // Predicated region
    $region26: #{tpu_custom_call.1} parent=1 // pred_check
      _
    $region27: #{tpu_custom_call.1} parent=1 // pred_check_branch
      %43 = sbr.rel (0) target = $region29
    $region28: #{tpu_custom_call.1} parent=1 // pred_region
      _
    $region29: #{tpu_custom_call.1} parent=1 // pred_fallthru
      _
    // Predicated region
    $region30: #{tpu_custom_call.1} parent=1 // pred_check
      _
    $region31: #{tpu_custom_call.1} parent=1 // pred_check_branch
      %45 = sbr.rel (0) target = $region33
    $region32: #{tpu_custom_call.1} parent=1 // pred_region
      %47 = vsyncadd [#allocation7], 0
      %s48 = sshll.u32 %s7, 4
      %s49 = int_to_ptr.hbm [resolvable:$true] %s48
      %s50 = sshll.u32 [#allocation6], 4
      %s51 = int_to_ptr.vmem [resolvable:$true] %s50
      %56 = dma.hbm_to_vmem [thread:$0]  %s49, 512, %s51, [#allocation7], 128, 128, 8
    $region33: #{tpu_custom_call.1} parent=1 // pred_fallthru
      _
    // Predicated region
    $region34: #{tpu_custom_call.1} parent=1 // pred_check
      _
    $region35: #{tpu_custom_call.1} parent=1 // pred_check_branch
      %58 = sbr.rel (0) target = $region37
    $region36: #{tpu_custom_call.1} parent=1 // pred_region
      _
    $region37: #{tpu_custom_call.1} parent=1 // pred_fallthru
      _
    // Predicated region
    $region38: #{tpu_custom_call.1} parent=1 // pred_check
      _
    $region39: #{tpu_custom_call.1} parent=1 // pred_check_branch
      %60 = sbr.rel (0) target = $region41
    $region40: #{tpu_custom_call.1} parent=1 // pred_region
      %62 = vsyncadd [#allocation7], 0
      %s63 = sshll.u32 %s9, 4
      %s64 = int_to_ptr.hbm [resolvable:$true] %s63
      %s65 = sshll.u32 [#allocation8], 4
      %s66 = int_to_ptr.vmem [resolvable:$true] %s65
      %71 = dma.hbm_to_vmem [thread:$0]  %s64, 512, %s66, [#allocation7], 128, 128, 8
    $region41: #{tpu_custom_call.1} parent=1 // pred_fallthru
      _
    // Predicated region
    $region42: #{tpu_custom_call.1} parent=1 // pred_check
      _
    $region43: #{tpu_custom_call.1} parent=1 // pred_check_branch
      %73 = sbr.rel (0) target = $region45
    $region44: #{tpu_custom_call.1} parent=1 // pred_region
      _
    $region45: #{tpu_custom_call.1} parent=1 // pred_fallthru
      _
    // Predicated region
    $region46: #{tpu_custom_call.1} parent=1 // pred_check
      _
    $region47: #{tpu_custom_call.1} parent=1 // pred_check_branch
      %75 = sbr.rel (0) target = $region49
    $region48: #{tpu_custom_call.1} parent=1 // pred_region
      %77 = dma.done [#allocation4], 512
    $region49: #{tpu_custom_call.1} parent=1 // pred_fallthru
      _
    // Predicated region
    $region50: #{tpu_custom_call.1} parent=1 // pred_check
      _
    $region51: #{tpu_custom_call.1} parent=1 // pred_check_branch
      %79 = sbr.rel (0) target = $region53
    $region52: #{tpu_custom_call.1} parent=1 // pred_region
      %81 = dma.done [#allocation7], 512
    $region53: #{tpu_custom_call.1} parent=1 // pred_fallthru
      _
    // Predicated region
    $region54: #{tpu_custom_call.1} parent=1 // pred_check
      _
    $region55: #{tpu_custom_call.1} parent=1 // pred_check_branch
      %83 = sbr.rel (0) target = $region57
    $region56: #{tpu_custom_call.1} parent=1 // pred_region
      %85 = dma.done [#allocation7], 512
    $region57: #{tpu_custom_call.1} parent=1 // pred_fallthru
      _
    %v86 = vld [vmem:[%s0] sm:$0xff]
    %v87 = vld [vmem:[%s0 + $0x8] sm:$0xff]
    %v88 = vld [vmem:[%s0 + $0x10] sm:$0xff]
    %v89 = vld [vmem:[%s0 + $0x18] sm:$0xff]
    %v90 = vld [vmem:[%s0 + $0x20] sm:$0xff]
    %v91 = vld [vmem:[%s0 + $0x28] sm:$0xff]
    %v92 = vld [vmem:[%s0 + $0x30] sm:$0xff]
    %v93 = vld [vmem:[%s0 + $0x38] sm:$0xff]
    %v94 = vld [vmem:[#allocation8] sm:$0xff]
    %v95 = vld [vmem:[#allocation8 + $0x8] sm:$0xff]
    %v96 = vld [vmem:[#allocation8 + $0x10] sm:$0xff]
    %v97 = vld [vmem:[#allocation8 + $0x18] sm:$0xff]
    %v98 = vld [vmem:[%s10] sm:$0x1]
    %v100 = vperm.slane %v98, 0
    %vm102 = vcmask 261120
    %v104 = vsel %vm102, %v86, 0
    %v107 = vsel %vm102, %v87, 0
    %v110 = vsel %vm102, %v88, 0
    %v113 = vsel %vm102, %v89, 0
    %v116 = vsel %vm102, %v90, 0
    %v119 = vsel %vm102, %v91, 0
    %v122 = vsel %vm102, %v92, 0
    %v125 = vsel %vm102, %v93, 0
    %127 = vmatpush.msra.mxu0 0.0
    %128 = vmatpush.msra.mxu0 0.0
    %129 = vmatpush.msra.mxu0 0.0
    %130 = vmatpush.msra.mxu0 0.0
    %131 = vmatpush.msra.mxu0 0.0
    %132 = vmatpush.msra.mxu0 0.0
    %133 = vmatpush.msra.mxu0 0.0
    %134 = vmatpush.msra.mxu0 0.0
    %135 = vmatpush.msra.mxu0 0.0
    %136 = vmatpush.msra.mxu0 0.0
    %137 = vmatpush.msra.mxu0 0.0
    %138 = vmatpush.msra.mxu0 0.0
    %139 = vmatpush.msra.mxu0 %v97
    %140 = vmatpush.msra.mxu0 %v96
    %141 = vmatpush.msra.mxu0 %v95
    %142 = vmatpush.msra.mxu0 %v94
    %143 = vmatmul.f32.gmra.mxu0 %v104
    %v144 = vpop.f32.mrf.mxu0
    %v145 = vadd.f32 %v100, %v144
    %146 = vmatmul.f32.gmra.mxu0 %v107
    %v147 = vpop.f32.mrf.mxu0
    %v148 = vadd.f32 %v100, %v147
    %149 = vmatmul.f32.gmra.mxu0 %v110
    %v150 = vpop.f32.mrf.mxu0
    %v151 = vadd.f32 %v100, %v150
    %152 = vmatmul.f32.gmra.mxu0 %v113
    %v153 = vpop.f32.mrf.mxu0
    %v154 = vadd.f32 %v100, %v153
    %155 = vmatmul.f32.gmra.mxu0 %v116
    %v156 = vpop.f32.mrf.mxu0
    %v157 = vadd.f32 %v100, %v156
    %158 = vmatmul.f32.gmra.mxu0 %v119
    %v159 = vpop.f32.mrf.mxu0
    %v160 = vadd.f32 %v100, %v159
    %161 = vmatmul.f32.gmra.mxu0 %v122
    %v162 = vpop.f32.mrf.mxu0
    %v163 = vadd.f32 %v100, %v162
    %164 = vmatmul.f32.gmra.mxu0 %v125
    %v165 = vpop.f32.mrf.mxu0
    %v166 = vadd.f32 %v100, %v165
    %167 = vdwg.mxu0
    %vm168 = vcmask 523264
    %169 = vst.msk [vmem:[#allocation2] sm:$0xff] %vm168, %v145
    %170 = vst.msk [vmem:[#allocation2 + $0x8] sm:$0xff] %vm168, %v148
    %171 = vst.msk [vmem:[#allocation2 + $0x10] sm:$0xff] %vm168, %v151
    %172 = vst.msk [vmem:[#allocation2 + $0x18] sm:$0xff] %vm168, %v154
    %173 = vst.msk [vmem:[#allocation2 + $0x20] sm:$0xff] %vm168, %v157
    %174 = vst.msk [vmem:[#allocation2 + $0x28] sm:$0xff] %vm168, %v160
    %175 = vst.msk [vmem:[#allocation2 + $0x30] sm:$0xff] %vm168, %v163
    %176 = vst.msk [vmem:[#allocation2 + $0x38] sm:$0xff] %vm168, %v166
    %v177 = vld [vmem:[%s1] sm:$0xff]
    %v178 = vld [vmem:[%s1 + $0x8] sm:$0xff]
    %v179 = vld [vmem:[%s0] sm:$0xff]
    %v180 = vld [vmem:[%s0 + $0x8] sm:$0xff]
    %v181 = vld [vmem:[%s2] sm:$0xff]
    %v182 = vld [vmem:[%s2 + $0x8] sm:$0xff]
    %vm183 = vcmp.gt.f32.partialorder %v181, 0.5
    %vm184 = vcmp.gt.f32.partialorder %v182, 0.5
    %v185 = vsel %vm183, 1, 0
    %v186 = vsel %vm184, 1, 0
    %187 = vset.pattern.permute.xlu0 0
    %188 = vperm.xlu0 %187, %v185
    %v189 = vpop.permute.xlu0 %188
    %190 = vset.pattern.permute.xlu0 0
    %191 = vperm.xlu0 %190, %v186
    %v192 = vpop.permute.xlu0 %191
    %vm193 = vcmp.eq.s32.totalorder %v189, 1
    %vm194 = vcmp.eq.s32.totalorder %v192, 1
    %v195 = vsel %vm193, %v179, %v177
    %v196 = vsel %vm194, %v180, %v178
    %v197 = vld [vmem:[#allocation3] sm:$0xff]
    %v198 = vld [vmem:[#allocation3 + $0x8] sm:$0xff]
    %v199 = vld [vmem:[#allocation3 + $0x10] sm:$0xff]
    %v200 = vld [vmem:[#allocation3 + $0x18] sm:$0xff]
    %v201 = vld [vmem:[%s6] sm:$0x1]
    %v203 = vperm.slane %v201, 0
    %v206 = vsel %vm102, %v195, 0
    %v209 = vsel %vm102, %v196, 0
    %211 = vmatpush.msra.mxu0 0.0
    %212 = vmatpush.msra.mxu0 0.0
    %213 = vmatpush.msra.mxu0 0.0
    %214 = vmatpush.msra.mxu0 0.0
    %215 = vmatpush.msra.mxu0 0.0
    %216 = vmatpush.msra.mxu0 0.0
    %217 = vmatpush.msra.mxu0 0.0
    %218 = vmatpush.msra.mxu0 0.0
    %219 = vmatpush.msra.mxu0 0.0
    %220 = vmatpush.msra.mxu0 0.0
    %221 = vmatpush.msra.mxu0 0.0
    %222 = vmatpush.msra.mxu0 0.0
    %223 = vmatpush.msra.mxu0 %v200
    %224 = vmatpush.msra.mxu0 %v199
    %225 = vmatpush.msra.mxu0 %v198
    %226 = vmatpush.msra.mxu0 %v197
    %227 = vmatmul.f32.gmra.mxu0 %v206
    %v228 = vpop.f32.mrf.mxu0
    %v229 = vadd.f32 %v203, %v228
    %230 = vmatmul.f32.gmra.mxu0 %v209
    %v231 = vpop.f32.mrf.mxu0
    %v232 = vadd.f32 %v203, %v231
    %233 = vdwg.mxu0
    %v234 = vld [vmem:[%s3] sm:$0x1]
    %v235 = vld [vmem:[%s3 + $0x1] sm:$0x1]
    %v236 = vld [vmem:[%s3 + $0x2] sm:$0x1]
    %v237 = vld [vmem:[%s3 + $0x3] sm:$0x1]
    %v242 = vperm.slane %v234, 0
    %v243 = vperm.slane %v235, 0
    %v244 = vperm.slane %v236, 0
    %v245 = vperm.slane %v237, 0
    %v250 = vmul.f32 %v229, %v242
    %v251 = vmul.f32 %v232, %v242
    %v252 = vmul.f32 %v229, %v243
    %v253 = vmul.f32 %v232, %v243
    %v254 = vmul.f32 %v229, %v244
    %v255 = vmul.f32 %v232, %v244
    %v256 = vmul.f32 %v229, %v245
    %v257 = vmul.f32 %v232, %v245
    %v258 = vld [vmem:[%s4] sm:$0xff]
    %v259 = vld [vmem:[%s4 + $0x8] sm:$0xff]
    %v260 = vld [vmem:[%s4 + $0x10] sm:$0xff]
    %v261 = vld [vmem:[%s4 + $0x18] sm:$0xff]
    %v262 = vld [vmem:[%s4 + $0x20] sm:$0xff]
    %v263 = vld [vmem:[%s4 + $0x28] sm:$0xff]
    %v264 = vld [vmem:[%s4 + $0x30] sm:$0xff]
    %v265 = vld [vmem:[%s4 + $0x38] sm:$0xff]
    %268 = vrot.lane.b32.xlu0 %v229, 96
    %v269 = vpop.permute.xlu0 %268
    %270 = vrot.lane.b32.xlu0 %v232, 96
    %v271 = vpop.permute.xlu0 %270
    %v273 = vsel %vm102, %v250, 0
    %v276 = vsel %vm102, %v251, 0
    %v279 = vsel %vm102, %v252, 0
    %v282 = vsel %vm102, %v253, 0
    %v285 = vsel %vm102, %v254, 0
    %v288 = vsel %vm102, %v255, 0
    %v291 = vsel %vm102, %v256, 0
    %v294 = vsel %vm102, %v257, 0
    %v296 = vsel %vm102, %v269, 0
    %v298 = vsel %vm102, %v271, 0
    %300 = vmatpush.xpose.msra.mxu0 0.0
    %301 = vmatpush.xpose.msra.mxu0 0.0
    %302 = vmatpush.xpose.msra.mxu0 0.0
    %303 = vmatpush.xpose.msra.mxu0 0.0
    %304 = vmatpush.xpose.msra.mxu0 0.0
    %305 = vmatpush.xpose.msra.mxu0 0.0
    %306 = vmatpush.xpose.msra.mxu0 0.0
    %307 = vmatpush.xpose.msra.mxu0 0.0
    %308 = vmatpush.xpose.msra.mxu0 0.0
    %309 = vmatpush.xpose.msra.mxu0 0.0
    %310 = vmatpush.xpose.msra.mxu0 0.0
    %311 = vmatpush.xpose.msra.mxu0 0.0
    %312 = vmatpush.xpose.msra.mxu0 0.0
    %313 = vmatpush.xpose.msra.mxu0 0.0
    %314 = vmatpush.xpose.msra.mxu0 %v298
    %315 = vmatpush.xpose.msra.mxu0 %v296
    %316 = vmatmul.f32.gmra.mxu0 %v273
    %v317 = vpop.f32.mrf.mxu0
    %v318 = vadd.f32 %v258, %v317
    %319 = vmatmul.f32.gmra.mxu0 %v276
    %v320 = vpop.f32.mrf.mxu0
    %v321 = vadd.f32 %v259, %v320
    %322 = vmatmul.f32.gmra.mxu0 %v279
    %v323 = vpop.f32.mrf.mxu0
    %v324 = vadd.f32 %v260, %v323
    %325 = vmatmul.f32.gmra.mxu0 %v282
    %v326 = vpop.f32.mrf.mxu0
    %v327 = vadd.f32 %v261, %v326
    %328 = vmatmul.f32.gmra.mxu0 %v285
    %v329 = vpop.f32.mrf.mxu0
    %v330 = vadd.f32 %v262, %v329
    %331 = vmatmul.f32.gmra.mxu0 %v288
    %v332 = vpop.f32.mrf.mxu0
    %v333 = vadd.f32 %v263, %v332
    %334 = vmatmul.f32.gmra.mxu0 %v291
    %v335 = vpop.f32.mrf.mxu0
    %v336 = vadd.f32 %v264, %v335
    %337 = vmatmul.f32.gmra.mxu0 %v294
    %v338 = vpop.f32.mrf.mxu0
    %v339 = vadd.f32 %v265, %v338
    %340 = vdwg.mxu0
    %vm341 = vcmask 130048
    %v342 = vsel %vm341, %v318, -inf
    %343 = vmax.xlane.f32.xlu0 %v342
    %v344 = vpop.xlane.xlu0 %343
    %v345 = vsel %vm341, %v321, -inf
    %346 = vmax.xlane.f32.xlu0 %v345
    %v347 = vpop.xlane.xlu0 %346
    %v348 = vsel %vm341, %v324, -inf
    %349 = vmax.xlane.f32.xlu0 %v348
    %v350 = vpop.xlane.xlu0 %349
    %v351 = vsel %vm341, %v327, -inf
    %352 = vmax.xlane.f32.xlu0 %v351
    %v353 = vpop.xlane.xlu0 %352
    %v354 = vsel %vm341, %v330, -inf
    %355 = vmax.xlane.f32.xlu0 %v354
    %v356 = vpop.xlane.xlu0 %355
    %v357 = vsel %vm341, %v333, -inf
    %358 = vmax.xlane.f32.xlu0 %v357
    %v359 = vpop.xlane.xlu0 %358
    %v360 = vsel %vm341, %v336, -inf
    %361 = vmax.xlane.f32.xlu0 %v360
    %v362 = vpop.xlane.xlu0 %361
    %v363 = vsel %vm341, %v339, -inf
    %364 = vmax.xlane.f32.xlu0 %v363
    %v365 = vpop.xlane.xlu0 %364
    %v366 = vsub.f32 %v318, %v344
    %v367 = vsub.f32 %v321, %v347
    %v368 = vsub.f32 %v324, %v350
    %v369 = vsub.f32 %v327, %v353
    %v370 = vsub.f32 %v330, %v356
    %v371 = vsub.f32 %v333, %v359
    %v372 = vsub.f32 %v336, %v362
    %v373 = vsub.f32 %v339, %v365
    %v374 = vmul.f32 %v366, 1.442695
    %v375 = vpow.pop %v374
    %v376 = vmul.f32 %v367, 1.442695
    %v377 = vpow.pop %v376
    %v378 = vmul.f32 %v368, 1.442695
    %v379 = vpow.pop %v378
    %v380 = vmul.f32 %v369, 1.442695
    %v381 = vpow.pop %v380
    %v382 = vmul.f32 %v370, 1.442695
    %v383 = vpow.pop %v382
    %v384 = vmul.f32 %v371, 1.442695
    %v385 = vpow.pop %v384
    %v386 = vmul.f32 %v372, 1.442695
    %v387 = vpow.pop %v386
    %v388 = vmul.f32 %v373, 1.442695
    %v389 = vpow.pop %v388
    %v390 = vsel %vm341, %v375, 0.0
    %391 = vadd.xlane.f32.xlu0 %v390
    %v392 = vpop.xlane.xlu0 %391
    %v393 = vsel %vm341, %v377, 0.0
    %394 = vadd.xlane.f32.xlu0 %v393
    %v395 = vpop.xlane.xlu0 %394
    %v396 = vsel %vm341, %v379, 0.0
    %397 = vadd.xlane.f32.xlu0 %v396
    %v398 = vpop.xlane.xlu0 %397
    %v399 = vsel %vm341, %v381, 0.0
    %400 = vadd.xlane.f32.xlu0 %v399
    %v401 = vpop.xlane.xlu0 %400
    %v402 = vsel %vm341, %v383, 0.0
    %403 = vadd.xlane.f32.xlu0 %v402
    %v404 = vpop.xlane.xlu0 %403
    %v405 = vsel %vm341, %v385, 0.0
    %406 = vadd.xlane.f32.xlu0 %v405
    %v407 = vpop.xlane.xlu0 %406
    %v408 = vsel %vm341, %v387, 0.0
    %409 = vadd.xlane.f32.xlu0 %v408
    %v410 = vpop.xlane.xlu0 %409
    %v411 = vsel %vm341, %v389, 0.0
    %412 = vadd.xlane.f32.xlu0 %v411
    %v413 = vpop.xlane.xlu0 %412
    %v414 = vrcp.pop %v392
    %v415 = vmul.f32 %v392, %v414
    %v416 = vsub.f32 1.0, %v415
    %v417 = vmul.f32 %v414, %v416
    %v418 = vadd.f32 %v414, %v417
    %vm419 = vweird.f32 %v392
    %vm420 = vweird.f32 %v414
    %vm421 = vmor %vm419, %vm420
    %v422 = vsel %vm421, %v414, %v418
    %v423 = vand.u32 2147483647, %v392
    %vm424 = vcmp.eq.f32.partialorder %v423, 8.507059e+37
    %v425 = vand.u32 %v392, 2147483648
    %v426 = vor.u32 1.1754944e-38, %v425
    %v427 = vsel %vm424, %v426, %v422
    %v428 = vrcp.pop %v395
    %v429 = vmul.f32 %v395, %v428
    %v430 = vsub.f32 1.0, %v429
    %v431 = vmul.f32 %v428, %v430
    %v432 = vadd.f32 %v428, %v431
    %vm433 = vweird.f32 %v395
    %vm434 = vweird.f32 %v428
    %vm435 = vmor %vm433, %vm434
    %v436 = vsel %vm435, %v428, %v432
    %v437 = vand.u32 2147483647, %v395
    %vm438 = vcmp.eq.f32.partialorder %v437, 8.507059e+37
    %v439 = vand.u32 %v395, 2147483648
    %v440 = vor.u32 1.1754944e-38, %v439
    %v441 = vsel %vm438, %v440, %v436
    %v442 = vrcp.pop %v398
    %v443 = vmul.f32 %v398, %v442
    %v444 = vsub.f32 1.0, %v443
    %v445 = vmul.f32 %v442, %v444
    %v446 = vadd.f32 %v442, %v445
    %vm447 = vweird.f32 %v398
    %vm448 = vweird.f32 %v442
    %vm449 = vmor %vm447, %vm448
    %v450 = vsel %vm449, %v442, %v446
    %v451 = vand.u32 2147483647, %v398
    %vm452 = vcmp.eq.f32.partialorder %v451, 8.507059e+37
    %v453 = vand.u32 %v398, 2147483648
    %v454 = vor.u32 1.1754944e-38, %v453
    %v455 = vsel %vm452, %v454, %v450
    %v456 = vrcp.pop %v401
    %v457 = vmul.f32 %v401, %v456
    %v458 = vsub.f32 1.0, %v457
    %v459 = vmul.f32 %v456, %v458
    %v460 = vadd.f32 %v456, %v459
    %vm461 = vweird.f32 %v401
    %vm462 = vweird.f32 %v456
    %vm463 = vmor %vm461, %vm462
    %v464 = vsel %vm463, %v456, %v460
    %v465 = vand.u32 2147483647, %v401
    %vm466 = vcmp.eq.f32.partialorder %v465, 8.507059e+37
    %v467 = vand.u32 %v401, 2147483648
    %v468 = vor.u32 1.1754944e-38, %v467
    %v469 = vsel %vm466, %v468, %v464
    %v470 = vrcp.pop %v404
    %v471 = vmul.f32 %v404, %v470
    %v472 = vsub.f32 1.0, %v471
    %v473 = vmul.f32 %v470, %v472
    %v474 = vadd.f32 %v470, %v473
    %vm475 = vweird.f32 %v404
    %vm476 = vweird.f32 %v470
    %vm477 = vmor %vm475, %vm476
    %v478 = vsel %vm477, %v470, %v474
    %v479 = vand.u32 2147483647, %v404
    %vm480 = vcmp.eq.f32.partialorder %v479, 8.507059e+37
    %v481 = vand.u32 %v404, 2147483648
    %v482 = vor.u32 1.1754944e-38, %v481
    %v483 = vsel %vm480, %v482, %v478
    %v484 = vrcp.pop %v407
    %v485 = vmul.f32 %v407, %v484
    %v486 = vsub.f32 1.0, %v485
    %v487 = vmul.f32 %v484, %v486
    %v488 = vadd.f32 %v484, %v487
    %vm489 = vweird.f32 %v407
    %vm490 = vweird.f32 %v484
    %vm491 = vmor %vm489, %vm490
    %v492 = vsel %vm491, %v484, %v488
    %v493 = vand.u32 2147483647, %v407
    %vm494 = vcmp.eq.f32.partialorder %v493, 8.507059e+37
    %v495 = vand.u32 %v407, 2147483648
    %v496 = vor.u32 1.1754944e-38, %v495
    %v497 = vsel %vm494, %v496, %v492
    %v498 = vrcp.pop %v410
    %v499 = vmul.f32 %v410, %v498
    %v500 = vsub.f32 1.0, %v499
    %v501 = vmul.f32 %v498, %v500
    %v502 = vadd.f32 %v498, %v501
    %vm503 = vweird.f32 %v410
    %vm504 = vweird.f32 %v498
    %vm505 = vmor %vm503, %vm504
    %v506 = vsel %vm505, %v498, %v502
    %v507 = vand.u32 2147483647, %v410
    %vm508 = vcmp.eq.f32.partialorder %v507, 8.507059e+37
    %v509 = vand.u32 %v410, 2147483648
    %v510 = vor.u32 1.1754944e-38, %v509
    %v511 = vsel %vm508, %v510, %v506
    %v512 = vrcp.pop %v413
    %v513 = vmul.f32 %v413, %v512
    %v514 = vsub.f32 1.0, %v513
    %v515 = vmul.f32 %v512, %v514
    %v516 = vadd.f32 %v512, %v515
    %vm517 = vweird.f32 %v413
    %vm518 = vweird.f32 %v512
    %vm519 = vmor %vm517, %vm518
    %v520 = vsel %vm519, %v512, %v516
    %v521 = vand.u32 2147483647, %v413
    %vm522 = vcmp.eq.f32.partialorder %v521, 8.507059e+37
    %v523 = vand.u32 %v413, 2147483648
    %v524 = vor.u32 1.1754944e-38, %v523
    %v525 = vsel %vm522, %v524, %v520
    %v526 = vmul.f32 %v375, %v427
    %v527 = vmul.f32 %v377, %v441
    %v528 = vmul.f32 %v379, %v455
    %v529 = vmul.f32 %v381, %v469
    %v530 = vmul.f32 %v383, %v483
    %v531 = vmul.f32 %v385, %v497
    %v532 = vmul.f32 %v387, %v511
    %v533 = vmul.f32 %v389, %v525
    %534 = vrot.lane.b32.xlu0 %v229, 64
    %v535 = vpop.permute.xlu0 %534
    %536 = vrot.lane.b32.xlu0 %v232, 64
    %v537 = vpop.permute.xlu0 %536
    %v541 = vsel %vm341, %v526, 0
    %v544 = vsel %vm341, %v527, 0
    %v547 = vsel %vm341, %v528, 0
    %v550 = vsel %vm341, %v529, 0
    %v553 = vsel %vm341, %v530, 0
    %v556 = vsel %vm341, %v531, 0
    %v559 = vsel %vm341, %v532, 0
    %v562 = vsel %vm341, %v533, 0
    %564 = vmatpush.msra.mxu0 0.0
    %565 = vmatpush.msra.mxu0 0.0
    %566 = vmatpush.msra.mxu0 0.0
    %567 = vmatpush.msra.mxu0 0.0
    %568 = vmatpush.msra.mxu0 0.0
    %569 = vmatpush.msra.mxu0 0.0
    %570 = vmatpush.msra.mxu0 0.0
    %571 = vmatpush.msra.mxu0 0.0
    %572 = vmatpush.msra.mxu0 0.0
    %573 = vmatpush.msra.mxu0 0.0
    %574 = vmatpush.msra.mxu0 0.0
    %575 = vmatpush.msra.mxu0 0.0
    %576 = vmatpush.msra.mxu0 0.0
    %577 = vmatpush.msra.mxu0 0.0
    %578 = vmatpush.msra.mxu0 %v537
    %579 = vmatpush.msra.mxu0 %v535
    %580 = vmatmul.f32.gmra.mxu0 %v541
    %v581 = vpop.f32.mrf.mxu0
    %v582 = vadd.f32 0.0, %v581
    %583 = vmatmul.f32.gmra.mxu0 %v544
    %v584 = vpop.f32.mrf.mxu0
    %v585 = vadd.f32 0.0, %v584
    %586 = vmatmul.f32.gmra.mxu0 %v547
    %v587 = vpop.f32.mrf.mxu0
    %v588 = vadd.f32 0.0, %v587
    %589 = vmatmul.f32.gmra.mxu0 %v550
    %v590 = vpop.f32.mrf.mxu0
    %v591 = vadd.f32 0.0, %v590
    %592 = vmatmul.f32.gmra.mxu0 %v553
    %v593 = vpop.f32.mrf.mxu0
    %v594 = vadd.f32 0.0, %v593
    %595 = vmatmul.f32.gmra.mxu0 %v556
    %v596 = vpop.f32.mrf.mxu0
    %v597 = vadd.f32 0.0, %v596
    %598 = vmatmul.f32.gmra.mxu0 %v559
    %v599 = vpop.f32.mrf.mxu0
    %v600 = vadd.f32 0.0, %v599
    %601 = vmatmul.f32.gmra.mxu0 %v562
    %v602 = vpop.f32.mrf.mxu0
    %v603 = vadd.f32 0.0, %v602
    %604 = vdwg.mxu0
    %v605 = vmul.f32 %v582, %v242
    %v606 = vmul.f32 %v585, %v242
    %v607 = vmul.f32 %v588, %v243
    %v608 = vmul.f32 %v591, %v243
    %v609 = vmul.f32 %v594, %v244
    %v610 = vmul.f32 %v597, %v244
    %v611 = vmul.f32 %v600, %v245
    %v612 = vmul.f32 %v603, %v245
    %v613 = vsel %vm102, %v605, 0.0
    %v614 = vsel %vm102, %v607, 0.0
    %v615 = vadd.f32 %v613, %v614
    %v616 = vsel %vm102, %v609, 0.0
    %v617 = vadd.f32 %v615, %v616
    %v618 = vsel %vm102, %v611, 0.0
    %v619 = vadd.f32 %v617, %v618
    %v620 = vsel %vm102, %v606, 0.0
    %v621 = vsel %vm102, %v608, 0.0
    %v622 = vadd.f32 %v620, %v621
    %v623 = vsel %vm102, %v610, 0.0
    %v624 = vadd.f32 %v622, %v623
    %v625 = vsel %vm102, %v612, 0.0
    %v626 = vadd.f32 %v624, %v625
    %v627 = vld [vmem:[#allocation6] sm:$0xff]
    %v628 = vld [vmem:[#allocation6 + $0x8] sm:$0xff]
    %v629 = vld [vmem:[#allocation6 + $0x10] sm:$0xff]
    %v630 = vld [vmem:[#allocation6 + $0x18] sm:$0xff]
    %v631 = vld [vmem:[%s8] sm:$0x1]
    %v633 = vperm.slane %v631, 0
    %v636 = vsel %vm102, %v619, 0
    %v639 = vsel %vm102, %v626, 0
    %641 = vmatpush.msra.mxu0 0.0
    %642 = vmatpush.msra.mxu0 0.0
    %643 = vmatpush.msra.mxu0 0.0
    %644 = vmatpush.msra.mxu0 0.0
    %645 = vmatpush.msra.mxu0 0.0
    %646 = vmatpush.msra.mxu0 0.0
    %647 = vmatpush.msra.mxu0 0.0
    %648 = vmatpush.msra.mxu0 0.0
    %649 = vmatpush.msra.mxu0 0.0
    %650 = vmatpush.msra.mxu0 0.0
    %651 = vmatpush.msra.mxu0 0.0
    %652 = vmatpush.msra.mxu0 0.0
    %653 = vmatpush.msra.mxu0 %v630
    %654 = vmatpush.msra.mxu0 %v629
    %655 = vmatpush.msra.mxu0 %v628
    %656 = vmatpush.msra.mxu0 %v627
    %657 = vmatmul.f32.gmra.mxu0 %v636
    %v658 = vpop.f32.mrf.mxu0
    %v659 = vadd.f32 %v633, %v658
    %660 = vmatmul.f32.gmra.mxu0 %v639
    %v661 = vpop.f32.mrf.mxu0
    %v662 = vadd.f32 %v633, %v661
    %663 = vdwg.mxu0
    %v664 = vadd.f32 %v195, %v659
    %v665 = vadd.f32 %v196, %v662
    %670 = vrot.lane.b32.xlu0 %v627, 96
    %v671 = vpop.permute.xlu0 %670
    %672 = vrot.lane.b32.xlu0 %v628, 96
    %v673 = vpop.permute.xlu0 %672
    %674 = vrot.lane.b32.xlu0 %v629, 96
    %v675 = vpop.permute.xlu0 %674
    %676 = vrot.lane.b32.xlu0 %v630, 96
    %v677 = vpop.permute.xlu0 %676
    %682 = vrot.lane.b32.xlu0 %v633, 96
    %v683 = vpop.permute.xlu0 %682
    %v686 = vsel %vm102, %v664, 0
    %v689 = vsel %vm102, %v665, 0
    %691 = vmatpush.msra.mxu0 0.0
    %692 = vmatpush.msra.mxu0 0.0
    %693 = vmatpush.msra.mxu0 0.0
    %694 = vmatpush.msra.mxu0 0.0
    %695 = vmatpush.msra.mxu0 0.0
    %696 = vmatpush.msra.mxu0 0.0
    %697 = vmatpush.msra.mxu0 0.0
    %698 = vmatpush.msra.mxu0 0.0
    %699 = vmatpush.msra.mxu0 0.0
    %700 = vmatpush.msra.mxu0 0.0
    %701 = vmatpush.msra.mxu0 0.0
    %702 = vmatpush.msra.mxu0 0.0
    %703 = vmatpush.msra.mxu0 %v677
    %704 = vmatpush.msra.mxu0 %v675
    %705 = vmatpush.msra.mxu0 %v673
    %706 = vmatpush.msra.mxu0 %v671
    %707 = vmatmul.f32.gmra.mxu0 %v686
    %v708 = vpop.f32.mrf.mxu0
    %v709 = vadd.f32 %v683, %v708
    %710 = vmatmul.f32.gmra.mxu0 %v689
    %v711 = vpop.f32.mrf.mxu0
    %v712 = vadd.f32 %v683, %v711
    %713 = vdwg.mxu0
    %v714 = vmax.f32 %v709, 0.0
    %v715 = vmax.f32 %v712, 0.0
    %716 = vrot.lane.b32.xlu0 %v627, 64
    %v717 = vpop.permute.xlu0 %716
    %718 = vrot.lane.b32.xlu0 %v628, 64
    %v719 = vpop.permute.xlu0 %718
    %720 = vrot.lane.b32.xlu0 %v629, 64
    %v721 = vpop.permute.xlu0 %720
    %722 = vrot.lane.b32.xlu0 %v630, 64
    %v723 = vpop.permute.xlu0 %722
    %728 = vrot.lane.b32.xlu0 %v633, 64
    %v729 = vpop.permute.xlu0 %728
    %v732 = vsel %vm102, %v714, 0
    %v735 = vsel %vm102, %v715, 0
    %737 = vmatpush.msra.mxu0 0.0
    %738 = vmatpush.msra.mxu0 0.0
    %739 = vmatpush.msra.mxu0 0.0
    %740 = vmatpush.msra.mxu0 0.0
    %741 = vmatpush.msra.mxu0 0.0
    %742 = vmatpush.msra.mxu0 0.0
    %743 = vmatpush.msra.mxu0 0.0
    %744 = vmatpush.msra.mxu0 0.0
    %745 = vmatpush.msra.mxu0 0.0
    %746 = vmatpush.msra.mxu0 0.0
    %747 = vmatpush.msra.mxu0 0.0
    %748 = vmatpush.msra.mxu0 0.0
    %749 = vmatpush.msra.mxu0 %v723
    %750 = vmatpush.msra.mxu0 %v721
    %751 = vmatpush.msra.mxu0 %v719
    %752 = vmatpush.msra.mxu0 %v717
    %753 = vmatmul.f32.gmra.mxu0 %v732
    %v754 = vpop.f32.mrf.mxu0
    %v755 = vadd.f32 %v729, %v754
    %756 = vmatmul.f32.gmra.mxu0 %v735
    %v757 = vpop.f32.mrf.mxu0
    %v758 = vadd.f32 %v729, %v757
    %759 = vdwg.mxu0
    %v760 = vmax.f32 %v755, 0.0
    %v761 = vmax.f32 %v758, 0.0
    %v762 = vadd.f32 %v664, %v760
    %v763 = vadd.f32 %v665, %v761
    %v764 = vld [vmem:[#allocation2] sm:$0xff]
    %v765 = vld [vmem:[#allocation2 + $0x8] sm:$0xff]
    %v766 = vtanh.pop %v195
    %v767 = vtanh.pop %v196
    %v768 = vld [vmem:[#allocation8] sm:$0xff]
    %v769 = vld [vmem:[#allocation8 + $0x8] sm:$0xff]
    %v770 = vld [vmem:[#allocation8 + $0x10] sm:$0xff]
    %v771 = vld [vmem:[#allocation8 + $0x18] sm:$0xff]
    %776 = vrot.lane.b32.xlu0 %v768, 64
    %v777 = vpop.permute.xlu0 %776
    %778 = vrot.lane.b32.xlu0 %v769, 64
    %v779 = vpop.permute.xlu0 %778
    %780 = vrot.lane.b32.xlu0 %v770, 64
    %v781 = vpop.permute.xlu0 %780
    %782 = vrot.lane.b32.xlu0 %v771, 64
    %v783 = vpop.permute.xlu0 %782
    %v789 = vsel %vm102, %v766, 0
    %v792 = vsel %vm102, %v767, 0
    %794 = vmatpush.msra.mxu0 0.0
    %795 = vmatpush.msra.mxu0 0.0
    %796 = vmatpush.msra.mxu0 0.0
    %797 = vmatpush.msra.mxu0 0.0
    %798 = vmatpush.msra.mxu0 0.0
    %799 = vmatpush.msra.mxu0 0.0
    %800 = vmatpush.msra.mxu0 0.0
    %801 = vmatpush.msra.mxu0 0.0
    %802 = vmatpush.msra.mxu0 0.0
    %803 = vmatpush.msra.mxu0 0.0
    %804 = vmatpush.msra.mxu0 0.0
    %805 = vmatpush.msra.mxu0 0.0
    %806 = vmatpush.msra.mxu0 %v783
    %807 = vmatpush.msra.mxu0 %v781
    %808 = vmatpush.msra.mxu0 %v779
    %809 = vmatpush.msra.mxu0 %v777
    %810 = vmatmul.f32.gmra.mxu0 %v789
    %v811 = vpop.f32.mrf.mxu0
    %v812 = vadd.f32 0.0, %v811
    %813 = vmatmul.f32.gmra.mxu0 %v792
    %v814 = vpop.f32.mrf.mxu0
    %v815 = vadd.f32 0.0, %v814
    %816 = vdwg.mxu0
    %v817 = vadd.f32 %v764, %v812
    %v818 = vadd.f32 %v765, %v815
    %v819 = vxor.u32 %v817, 2147483648
    %v820 = vxor.u32 %v818, 2147483648
    %v821 = vmul.f32 %v819, 1.442695
    %v822 = vpow.pop %v821
    %v823 = vmul.f32 %v820, 1.442695
    %v824 = vpow.pop %v823
    %v825 = vadd.f32 %v822, 1.0
    %v826 = vadd.f32 %v824, 1.0
    %v827 = vrcp.pop %v825
    %v828 = vmul.f32 %v825, %v827
    %v829 = vsub.f32 1.0, %v828
    %v830 = vmul.f32 %v827, %v829
    %v831 = vadd.f32 %v827, %v830
    %vm832 = vweird.f32 %v825
    %vm833 = vweird.f32 %v827
    %vm834 = vmor %vm832, %vm833
    %v835 = vsel %vm834, %v827, %v831
    %v836 = vand.u32 2147483647, %v825
    %vm837 = vcmp.eq.f32.partialorder %v836, 8.507059e+37
    %v838 = vand.u32 %v825, 2147483648
    %v839 = vor.u32 1.1754944e-38, %v838
    %v840 = vsel %vm837, %v839, %v835
    %v841 = vmul.f32 1.0, %v840
    %v842 = vrcp.pop %v826
    %v843 = vmul.f32 %v826, %v842
    %v844 = vsub.f32 1.0, %v843
    %v845 = vmul.f32 %v842, %v844
    %v846 = vadd.f32 %v842, %v845
    %vm847 = vweird.f32 %v826
    %vm848 = vweird.f32 %v842
    %vm849 = vmor %vm847, %vm848
    %v850 = vsel %vm849, %v842, %v846
    %v851 = vand.u32 2147483647, %v826
    %vm852 = vcmp.eq.f32.partialorder %v851, 8.507059e+37
    %v853 = vand.u32 %v826, 2147483648
    %v854 = vor.u32 1.1754944e-38, %v853
    %v855 = vsel %vm852, %v854, %v850
    %v856 = vmul.f32 1.0, %v855
    %v857 = vtanh.pop %v762
    %v858 = vtanh.pop %v763
    %v859 = vmul.f32 %v841, %v857
    %v860 = vmul.f32 %v856, %v858
    %861 = vrot.lane.b32.xlu0 %v195, 32
    %v862 = vpop.permute.xlu0 %861
    %863 = vrot.lane.b32.xlu0 %v196, 32
    %v864 = vpop.permute.xlu0 %863
    %v867 = vmul.f32 %v841, %v862
    %v868 = vmul.f32 %v856, %v864
    %871 = vrot.lane.b32.xlu0 %v867, 96
    %v872 = vpop.permute.xlu0 %871
    %873 = vrot.lane.b32.xlu0 %v868, 96
    %v874 = vpop.permute.xlu0 %873
    %v877 = vadd.f32 %v859, %v872
    %v878 = vadd.f32 %v860, %v874
    %879 = vst.msk [vmem:[#allocation9] sm:$0xff] %vm102, %v877
    %880 = vst.msk [vmem:[#allocation9 + $0x8] sm:$0xff] %vm102, %v878
    %s881 = scalar_lea.vmem %s0, 16
    %v882 = vld [vmem:[%s881] sm:$0xff]
    %v883 = vld [vmem:[%s881 + $0x8] sm:$0xff]
    %v884 = vld [vmem:[%s2] sm:$0xff]
    %v885 = vld [vmem:[%s2 + $0x8] sm:$0xff]
    %vm886 = vcmp.gt.f32.partialorder %v884, 0.5
    %vm887 = vcmp.gt.f32.partialorder %v885, 0.5
    %v888 = vsel %vm886, 1, 0
    %v889 = vsel %vm887, 1, 0
    %890 = vset.pattern.permute.xlu0 0
    %891 = vperm.xlu0 %890, %v888
    %v892 = vpop.permute.xlu0 %891
    %893 = vset.pattern.permute.xlu0 0
    %894 = vperm.xlu0 %893, %v889
    %v895 = vpop.permute.xlu0 %894
    %vm896 = vcmp.eq.s32.totalorder %v892, 1
    %vm897 = vcmp.eq.s32.totalorder %v895, 1
    %v898 = vsel %vm896, %v882, %v877
    %v899 = vsel %vm897, %v883, %v878
    %v900 = vld [vmem:[#allocation3] sm:$0xff]
    %v901 = vld [vmem:[#allocation3 + $0x8] sm:$0xff]
    %v902 = vld [vmem:[#allocation3 + $0x10] sm:$0xff]
    %v903 = vld [vmem:[#allocation3 + $0x18] sm:$0xff]
    %v904 = vld [vmem:[%s6] sm:$0x1]
    %v906 = vperm.slane %v904, 0
    %v909 = vsel %vm102, %v898, 0
    %v912 = vsel %vm102, %v899, 0
    %914 = vmatpush.msra.mxu0 0.0
    %915 = vmatpush.msra.mxu0 0.0
    %916 = vmatpush.msra.mxu0 0.0
    %917 = vmatpush.msra.mxu0 0.0
    %918 = vmatpush.msra.mxu0 0.0
    %919 = vmatpush.msra.mxu0 0.0
    %920 = vmatpush.msra.mxu0 0.0
    %921 = vmatpush.msra.mxu0 0.0
    %922 = vmatpush.msra.mxu0 0.0
    %923 = vmatpush.msra.mxu0 0.0
    %924 = vmatpush.msra.mxu0 0.0
    %925 = vmatpush.msra.mxu0 0.0
    %926 = vmatpush.msra.mxu0 %v903
    %927 = vmatpush.msra.mxu0 %v902
    %928 = vmatpush.msra.mxu0 %v901
    %929 = vmatpush.msra.mxu0 %v900
    %930 = vmatmul.f32.gmra.mxu0 %v909
    %v931 = vpop.f32.mrf.mxu0
    %v932 = vadd.f32 %v906, %v931
    %933 = vmatmul.f32.gmra.mxu0 %v912
    %v934 = vpop.f32.mrf.mxu0
    %v935 = vadd.f32 %v906, %v934
    %936 = vdwg.mxu0
    %v937 = vld [vmem:[%s3] sm:$0x1]
    %v938 = vld [vmem:[%s3 + $0x1] sm:$0x1]
    %v939 = vld [vmem:[%s3 + $0x2] sm:$0x1]
    %v940 = vld [vmem:[%s3 + $0x3] sm:$0x1]
    %v945 = vperm.slane %v937, 0
    %v946 = vperm.slane %v938, 0
    %v947 = vperm.slane %v939, 0
    %v948 = vperm.slane %v940, 0
    %v953 = vmul.f32 %v932, %v945
    %v954 = vmul.f32 %v935, %v945
    %v955 = vmul.f32 %v932, %v946
    %v956 = vmul.f32 %v935, %v946
    %v957 = vmul.f32 %v932, %v947
    %v958 = vmul.f32 %v935, %v947
    %v959 = vmul.f32 %v932, %v948
    %v960 = vmul.f32 %v935, %v948
    %v961 = vld [vmem:[%s4] sm:$0xff]
    %v962 = vld [vmem:[%s4 + $0x8] sm:$0xff]
    %v963 = vld [vmem:[%s4 + $0x10] sm:$0xff]
    %v964 = vld [vmem:[%s4 + $0x18] sm:$0xff]
    %v965 = vld [vmem:[%s4 + $0x20] sm:$0xff]
    %v966 = vld [vmem:[%s4 + $0x28] sm:$0xff]
    %v967 = vld [vmem:[%s4 + $0x30] sm:$0xff]
    %v968 = vld [vmem:[%s4 + $0x38] sm:$0xff]
    %971 = vrot.lane.b32.xlu0 %v932, 96
    %v972 = vpop.permute.xlu0 %971
    %973 = vrot.lane.b32.xlu0 %v935, 96
    %v974 = vpop.permute.xlu0 %973
    %v976 = vsel %vm102, %v953, 0
    %v979 = vsel %vm102, %v954, 0
    %v982 = vsel %vm102, %v955, 0
    %v985 = vsel %vm102, %v956, 0
    %v988 = vsel %vm102, %v957, 0
    %v991 = vsel %vm102, %v958, 0
    %v994 = vsel %vm102, %v959, 0
    %v997 = vsel %vm102, %v960, 0
    %v999 = vsel %vm102, %v972, 0
    %v1001 = vsel %vm102, %v974, 0
    %1003 = vmatpush.xpose.msra.mxu0 0.0
    %1004 = vmatpush.xpose.msra.mxu0 0.0
    %1005 = vmatpush.xpose.msra.mxu0 0.0
    %1006 = vmatpush.xpose.msra.mxu0 0.0
    %1007 = vmatpush.xpose.msra.mxu0 0.0
    %1008 = vmatpush.xpose.msra.mxu0 0.0
    %1009 = vmatpush.xpose.msra.mxu0 0.0
    %1010 = vmatpush.xpose.msra.mxu0 0.0
    %1011 = vmatpush.xpose.msra.mxu0 0.0
    %1012 = vmatpush.xpose.msra.mxu0 0.0
    %1013 = vmatpush.xpose.msra.mxu0 0.0
    %1014 = vmatpush.xpose.msra.mxu0 0.0
    %1015 = vmatpush.xpose.msra.mxu0 0.0
    %1016 = vmatpush.xpose.msra.mxu0 0.0
    %1017 = vmatpush.xpose.msra.mxu0 %v1001
    %1018 = vmatpush.xpose.msra.mxu0 %v999
    %1019 = vmatmul.f32.gmra.mxu0 %v976
    %v1020 = vpop.f32.mrf.mxu0
    %v1021 = vadd.f32 %v961, %v1020
    %1022 = vmatmul.f32.gmra.mxu0 %v979
    %v1023 = vpop.f32.mrf.mxu0
    %v1024 = vadd.f32 %v962, %v1023
    %1025 = vmatmul.f32.gmra.mxu0 %v982
    %v1026 = vpop.f32.mrf.mxu0
    %v1027 = vadd.f32 %v963, %v1026
    %1028 = vmatmul.f32.gmra.mxu0 %v985
    %v1029 = vpop.f32.mrf.mxu0
    %v1030 = vadd.f32 %v964, %v1029
    %1031 = vmatmul.f32.gmra.mxu0 %v988
    %v1032 = vpop.f32.mrf.mxu0
    %v1033 = vadd.f32 %v965, %v1032
    %1034 = vmatmul.f32.gmra.mxu0 %v991
    %v1035 = vpop.f32.mrf.mxu0
    %v1036 = vadd.f32 %v966, %v1035
    %1037 = vmatmul.f32.gmra.mxu0 %v994
    %v1038 = vpop.f32.mrf.mxu0
    %v1039 = vadd.f32 %v967, %v1038
    %1040 = vmatmul.f32.gmra.mxu0 %v997
    %v1041 = vpop.f32.mrf.mxu0
    %v1042 = vadd.f32 %v968, %v1041
    %1043 = vdwg.mxu0
    %v1044 = vsel %vm341, %v1021, -inf
    %1045 = vmax.xlane.f32.xlu0 %v1044
    %v1046 = vpop.xlane.xlu0 %1045
    %v1047 = vsel %vm341, %v1024, -inf
    %1048 = vmax.xlane.f32.xlu0 %v1047
    %v1049 = vpop.xlane.xlu0 %1048
    %v1050 = vsel %vm341, %v1027, -inf
    %1051 = vmax.xlane.f32.xlu0 %v1050
    %v1052 = vpop.xlane.xlu0 %1051
    %v1053 = vsel %vm341, %v1030, -inf
    %1054 = vmax.xlane.f32.xlu0 %v1053
    %v1055 = vpop.xlane.xlu0 %1054
    %v1056 = vsel %vm341, %v1033, -inf
    %1057 = vmax.xlane.f32.xlu0 %v1056
    %v1058 = vpop.xlane.xlu0 %1057
    %v1059 = vsel %vm341, %v1036, -inf
    %1060 = vmax.xlane.f32.xlu0 %v1059
    %v1061 = vpop.xlane.xlu0 %1060
    %v1062 = vsel %vm341, %v1039, -inf
    %1063 = vmax.xlane.f32.xlu0 %v1062
    %v1064 = vpop.xlane.xlu0 %1063
    %v1065 = vsel %vm341, %v1042, -inf
    %1066 = vmax.xlane.f32.xlu0 %v1065
    %v1067 = vpop.xlane.xlu0 %1066
    %v1068 = vsub.f32 %v1021, %v1046
    %v1069 = vsub.f32 %v1024, %v1049
    %v1070 = vsub.f32 %v1027, %v1052
    %v1071 = vsub.f32 %v1030, %v1055
    %v1072 = vsub.f32 %v1033, %v1058
    %v1073 = vsub.f32 %v1036, %v1061
    %v1074 = vsub.f32 %v1039, %v1064
    %v1075 = vsub.f32 %v1042, %v1067
    %v1076 = vmul.f32 %v1068, 1.442695
    %v1077 = vpow.pop %v1076
    %v1078 = vmul.f32 %v1069, 1.442695
    %v1079 = vpow.pop %v1078
    %v1080 = vmul.f32 %v1070, 1.442695
    %v1081 = vpow.pop %v1080
    %v1082 = vmul.f32 %v1071, 1.442695
    %v1083 = vpow.pop %v1082
    %v1084 = vmul.f32 %v1072, 1.442695
    %v1085 = vpow.pop %v1084
    %v1086 = vmul.f32 %v1073, 1.442695
    %v1087 = vpow.pop %v1086
    %v1088 = vmul.f32 %v1074, 1.442695
    %v1089 = vpow.pop %v1088
    %v1090 = vmul.f32 %v1075, 1.442695
    %v1091 = vpow.pop %v1090
    %v1092 = vsel %vm341, %v1077, 0.0
    %1093 = vadd.xlane.f32.xlu0 %v1092
    %v1094 = vpop.xlane.xlu0 %1093
    %v1095 = vsel %vm341, %v1079, 0.0
    %1096 = vadd.xlane.f32.xlu0 %v1095
    %v1097 = vpop.xlane.xlu0 %1096
    %v1098 = vsel %vm341, %v1081, 0.0
    %1099 = vadd.xlane.f32.xlu0 %v1098
    %v1100 = vpop.xlane.xlu0 %1099
    %v1101 = vsel %vm341, %v1083, 0.0
    %1102 = vadd.xlane.f32.xlu0 %v1101
    %v1103 = vpop.xlane.xlu0 %1102
    %v1104 = vsel %vm341, %v1085, 0.0
    %1105 = vadd.xlane.f32.xlu0 %v1104
    %v1106 = vpop.xlane.xlu0 %1105
    %v1107 = vsel %vm341, %v1087, 0.0
    %1108 = vadd.xlane.f32.xlu0 %v1107
    %v1109 = vpop.xlane.xlu0 %1108
    %v1110 = vsel %vm341, %v1089, 0.0
    %1111 = vadd.xlane.f32.xlu0 %v1110
    %v1112 = vpop.xlane.xlu0 %1111
    %v1113 = vsel %vm341, %v1091, 0.0
    %1114 = vadd.xlane.f32.xlu0 %v1113
    %v1115 = vpop.xlane.xlu0 %1114
    %v1116 = vrcp.pop %v1094
    %v1117 = vmul.f32 %v1094, %v1116
    %v1118 = vsub.f32 1.0, %v1117
    %v1119 = vmul.f32 %v1116, %v1118
    %v1120 = vadd.f32 %v1116, %v1119
    %vm1121 = vweird.f32 %v1094
    %vm1122 = vweird.f32 %v1116
    %vm1123 = vmor %vm1121, %vm1122
    %v1124 = vsel %vm1123, %v1116, %v1120
    %v1125 = vand.u32 2147483647, %v1094
    %vm1126 = vcmp.eq.f32.partialorder %v1125, 8.507059e+37
    %v1127 = vand.u32 %v1094, 2147483648
    %v1128 = vor.u32 1.1754944e-38, %v1127
    %v1129 = vsel %vm1126, %v1128, %v1124
    %v1130 = vrcp.pop %v1097
    %v1131 = vmul.f32 %v1097, %v1130
    %v1132 = vsub.f32 1.0, %v1131
    %v1133 = vmul.f32 %v1130, %v1132
    %v1134 = vadd.f32 %v1130, %v1133
    %vm1135 = vweird.f32 %v1097
    %vm1136 = vweird.f32 %v1130
    %vm1137 = vmor %vm1135, %vm1136
    %v1138 = vsel %vm1137, %v1130, %v1134
    %v1139 = vand.u32 2147483647, %v1097
    %vm1140 = vcmp.eq.f32.partialorder %v1139, 8.507059e+37
    %v1141 = vand.u32 %v1097, 2147483648
    %v1142 = vor.u32 1.1754944e-38, %v1141
    %v1143 = vsel %vm1140, %v1142, %v1138
    %v1144 = vrcp.pop %v1100
    %v1145 = vmul.f32 %v1100, %v1144
    %v1146 = vsub.f32 1.0, %v1145
    %v1147 = vmul.f32 %v1144, %v1146
    %v1148 = vadd.f32 %v1144, %v1147
    %vm1149 = vweird.f32 %v1100
    %vm1150 = vweird.f32 %v1144
    %vm1151 = vmor %vm1149, %vm1150
    %v1152 = vsel %vm1151, %v1144, %v1148
    %v1153 = vand.u32 2147483647, %v1100
    %vm1154 = vcmp.eq.f32.partialorder %v1153, 8.507059e+37
    %v1155 = vand.u32 %v1100, 2147483648
    %v1156 = vor.u32 1.1754944e-38, %v1155
    %v1157 = vsel %vm1154, %v1156, %v1152
    %v1158 = vrcp.pop %v1103
    %v1159 = vmul.f32 %v1103, %v1158
    %v1160 = vsub.f32 1.0, %v1159
    %v1161 = vmul.f32 %v1158, %v1160
    %v1162 = vadd.f32 %v1158, %v1161
    %vm1163 = vweird.f32 %v1103
    %vm1164 = vweird.f32 %v1158
    %vm1165 = vmor %vm1163, %vm1164
    %v1166 = vsel %vm1165, %v1158, %v1162
    %v1167 = vand.u32 2147483647, %v1103
    %vm1168 = vcmp.eq.f32.partialorder %v1167, 8.507059e+37
    %v1169 = vand.u32 %v1103, 2147483648
    %v1170 = vor.u32 1.1754944e-38, %v1169
    %v1171 = vsel %vm1168, %v1170, %v1166
    %v1172 = vrcp.pop %v1106
    %v1173 = vmul.f32 %v1106, %v1172
    %v1174 = vsub.f32 1.0, %v1173
    %v1175 = vmul.f32 %v1172, %v1174
    %v1176 = vadd.f32 %v1172, %v1175
    %vm1177 = vweird.f32 %v1106
    %vm1178 = vweird.f32 %v1172
    %vm1179 = vmor %vm1177, %vm1178
    %v1180 = vsel %vm1179, %v1172, %v1176
    %v1181 = vand.u32 2147483647, %v1106
    %vm1182 = vcmp.eq.f32.partialorder %v1181, 8.507059e+37
    %v1183 = vand.u32 %v1106, 2147483648
    %v1184 = vor.u32 1.1754944e-38, %v1183
    %v1185 = vsel %vm1182, %v1184, %v1180
    %v1186 = vrcp.pop %v1109
    %v1187 = vmul.f32 %v1109, %v1186
    %v1188 = vsub.f32 1.0, %v1187
    %v1189 = vmul.f32 %v1186, %v1188
    %v1190 = vadd.f32 %v1186, %v1189
    %vm1191 = vweird.f32 %v1109
    %vm1192 = vweird.f32 %v1186
    %vm1193 = vmor %vm1191, %vm1192
    %v1194 = vsel %vm1193, %v1186, %v1190
    %v1195 = vand.u32 2147483647, %v1109
    %vm1196 = vcmp.eq.f32.partialorder %v1195, 8.507059e+37
    %v1197 = vand.u32 %v1109, 2147483648
    %v1198 = vor.u32 1.1754944e-38, %v1197
    %v1199 = vsel %vm1196, %v1198, %v1194
    %v1200 = vrcp.pop %v1112
    %v1201 = vmul.f32 %v1112, %v1200
    %v1202 = vsub.f32 1.0, %v1201
    %v1203 = vmul.f32 %v1200, %v1202
    %v1204 = vadd.f32 %v1200, %v1203
    %vm1205 = vweird.f32 %v1112
    %vm1206 = vweird.f32 %v1200
    %vm1207 = vmor %vm1205, %vm1206
    %v1208 = vsel %vm1207, %v1200, %v1204
    %v1209 = vand.u32 2147483647, %v1112
    %vm1210 = vcmp.eq.f32.partialorder %v1209, 8.507059e+37
    %v1211 = vand.u32 %v1112, 2147483648
    %v1212 = vor.u32 1.1754944e-38, %v1211
    %v1213 = vsel %vm1210, %v1212, %v1208
    %v1214 = vrcp.pop %v1115
    %v1215 = vmul.f32 %v1115, %v1214
    %v1216 = vsub.f32 1.0, %v1215
    %v1217 = vmul.f32 %v1214, %v1216
    %v1218 = vadd.f32 %v1214, %v1217
    %vm1219 = vweird.f32 %v1115
    %vm1220 = vweird.f32 %v1214
    %vm1221 = vmor %vm1219, %vm1220
    %v1222 = vsel %vm1221, %v1214, %v1218
    %v1223 = vand.u32 2147483647, %v1115
    %vm1224 = vcmp.eq.f32.partialorder %v1223, 8.507059e+37
    %v1225 = vand.u32 %v1115, 2147483648
    %v1226 = vor.u32 1.1754944e-38, %v1225
    %v1227 = vsel %vm1224, %v1226, %v1222
    %v1228 = vmul.f32 %v1077, %v1129
    %v1229 = vmul.f32 %v1079, %v1143
    %v1230 = vmul.f32 %v1081, %v1157
    %v1231 = vmul.f32 %v1083, %v1171
    %v1232 = vmul.f32 %v1085, %v1185
    %v1233 = vmul.f32 %v1087, %v1199
    %v1234 = vmul.f32 %v1089, %v1213
    %v1235 = vmul.f32 %v1091, %v1227
    %1236 = vrot.lane.b32.xlu0 %v932, 64
    %v1237 = vpop.permute.xlu0 %1236
    %1238 = vrot.lane.b32.xlu0 %v935, 64
    %v1239 = vpop.permute.xlu0 %1238
    %v1243 = vsel %vm341, %v1228, 0
    %v1246 = vsel %vm341, %v1229, 0
    %v1249 = vsel %vm341, %v1230, 0
    %v1252 = vsel %vm341, %v1231, 0
    %v1255 = vsel %vm341, %v1232, 0
    %v1258 = vsel %vm341, %v1233, 0
    %v1261 = vsel %vm341, %v1234, 0
    %v1264 = vsel %vm341, %v1235, 0
    %1266 = vmatpush.msra.mxu0 0.0
    %1267 = vmatpush.msra.mxu0 0.0
    %1268 = vmatpush.msra.mxu0 0.0
    %1269 = vmatpush.msra.mxu0 0.0
    %1270 = vmatpush.msra.mxu0 0.0
    %1271 = vmatpush.msra.mxu0 0.0
    %1272 = vmatpush.msra.mxu0 0.0
    %1273 = vmatpush.msra.mxu0 0.0
    %1274 = vmatpush.msra.mxu0 0.0
    %1275 = vmatpush.msra.mxu0 0.0
    %1276 = vmatpush.msra.mxu0 0.0
    %1277 = vmatpush.msra.mxu0 0.0
    %1278 = vmatpush.msra.mxu0 0.0
    %1279 = vmatpush.msra.mxu0 0.0
    %1280 = vmatpush.msra.mxu0 %v1239
    %1281 = vmatpush.msra.mxu0 %v1237
    %1282 = vmatmul.f32.gmra.mxu0 %v1243
    %v1283 = vpop.f32.mrf.mxu0
    %v1284 = vadd.f32 0.0, %v1283
    %1285 = vmatmul.f32.gmra.mxu0 %v1246
    %v1286 = vpop.f32.mrf.mxu0
    %v1287 = vadd.f32 0.0, %v1286
    %1288 = vmatmul.f32.gmra.mxu0 %v1249
    %v1289 = vpop.f32.mrf.mxu0
    %v1290 = vadd.f32 0.0, %v1289
    %1291 = vmatmul.f32.gmra.mxu0 %v1252
    %v1292 = vpop.f32.mrf.mxu0
    %v1293 = vadd.f32 0.0, %v1292
    %1294 = vmatmul.f32.gmra.mxu0 %v1255
    %v1295 = vpop.f32.mrf.mxu0
    %v1296 = vadd.f32 0.0, %v1295
    %1297 = vmatmul.f32.gmra.mxu0 %v1258
    %v1298 = vpop.f32.mrf.mxu0
    %v1299 = vadd.f32 0.0, %v1298
    %1300 = vmatmul.f32.gmra.mxu0 %v1261
    %v1301 = vpop.f32.mrf.mxu0
    %v1302 = vadd.f32 0.0, %v1301
    %1303 = vmatmul.f32.gmra.mxu0 %v1264
    %v1304 = vpop.f32.mrf.mxu0
    %v1305 = vadd.f32 0.0, %v1304
    %1306 = vdwg.mxu0
    %v1307 = vmul.f32 %v1284, %v945
    %v1308 = vmul.f32 %v1287, %v945
    %v1309 = vmul.f32 %v1290, %v946
    %v1310 = vmul.f32 %v1293, %v946
    %v1311 = vmul.f32 %v1296, %v947
    %v1312 = vmul.f32 %v1299, %v947
    %v1313 = vmul.f32 %v1302, %v948
    %v1314 = vmul.f32 %v1305, %v948
    %v1315 = vsel %vm102, %v1307, 0.0
    %v1316 = vsel %vm102, %v1309, 0.0
    %v1317 = vadd.f32 %v1315, %v1316
    %v1318 = vsel %vm102, %v1311, 0.0
    %v1319 = vadd.f32 %v1317, %v1318
    %v1320 = vsel %vm102, %v1313, 0.0
    %v1321 = vadd.f32 %v1319, %v1320
    %v1322 = vsel %vm102, %v1308, 0.0
    %v1323 = vsel %vm102, %v1310, 0.0
    %v1324 = vadd.f32 %v1322, %v1323
    %v1325 = vsel %vm102, %v1312, 0.0
    %v1326 = vadd.f32 %v1324, %v1325
    %v1327 = vsel %vm102, %v1314, 0.0
    %v1328 = vadd.f32 %v1326, %v1327
    %v1329 = vld [vmem:[#allocation6] sm:$0xff]
    %v1330 = vld [vmem:[#allocation6 + $0x8] sm:$0xff]
    %v1331 = vld [vmem:[#allocation6 + $0x10] sm:$0xff]
    %v1332 = vld [vmem:[#allocation6 + $0x18] sm:$0xff]
    %v1333 = vld [vmem:[%s8] sm:$0x1]
    %v1335 = vperm.slane %v1333, 0
    %v1338 = vsel %vm102, %v1321, 0
    %v1341 = vsel %vm102, %v1328, 0
    %1343 = vmatpush.msra.mxu0 0.0
    %1344 = vmatpush.msra.mxu0 0.0
    %1345 = vmatpush.msra.mxu0 0.0
    %1346 = vmatpush.msra.mxu0 0.0
    %1347 = vmatpush.msra.mxu0 0.0
    %1348 = vmatpush.msra.mxu0 0.0
    %1349 = vmatpush.msra.mxu0 0.0
    %1350 = vmatpush.msra.mxu0 0.0
    %1351 = vmatpush.msra.mxu0 0.0
    %1352 = vmatpush.msra.mxu0 0.0
    %1353 = vmatpush.msra.mxu0 0.0
    %1354 = vmatpush.msra.mxu0 0.0
    %1355 = vmatpush.msra.mxu0 %v1332
    %1356 = vmatpush.msra.mxu0 %v1331
    %1357 = vmatpush.msra.mxu0 %v1330
    %1358 = vmatpush.msra.mxu0 %v1329
    %1359 = vmatmul.f32.gmra.mxu0 %v1338
    %v1360 = vpop.f32.mrf.mxu0
    %v1361 = vadd.f32 %v1335, %v1360
    %1362 = vmatmul.f32.gmra.mxu0 %v1341
    %v1363 = vpop.f32.mrf.mxu0
    %v1364 = vadd.f32 %v1335, %v1363
    %1365 = vdwg.mxu0
    %v1366 = vadd.f32 %v898, %v1361
    %v1367 = vadd.f32 %v899, %v1364
    %1372 = vrot.lane.b32.xlu0 %v1329, 96
    %v1373 = vpop.permute.xlu0 %1372
    %1374 = vrot.lane.b32.xlu0 %v1330, 96
    %v1375 = vpop.permute.xlu0 %1374
    %1376 = vrot.lane.b32.xlu0 %v1331, 96
    %v1377 = vpop.permute.xlu0 %1376
    %1378 = vrot.lane.b32.xlu0 %v1332, 96
    %v1379 = vpop.permute.xlu0 %1378
    %1384 = vrot.lane.b32.xlu0 %v1335, 96
    %v1385 = vpop.permute.xlu0 %1384
    %v1388 = vsel %vm102, %v1366, 0
    %v1391 = vsel %vm102, %v1367, 0
    %1393 = vmatpush.msra.mxu0 0.0
    %1394 = vmatpush.msra.mxu0 0.0
    %1395 = vmatpush.msra.mxu0 0.0
    %1396 = vmatpush.msra.mxu0 0.0
    %1397 = vmatpush.msra.mxu0 0.0
    %1398 = vmatpush.msra.mxu0 0.0
    %1399 = vmatpush.msra.mxu0 0.0
    %1400 = vmatpush.msra.mxu0 0.0
    %1401 = vmatpush.msra.mxu0 0.0
    %1402 = vmatpush.msra.mxu0 0.0
    %1403 = vmatpush.msra.mxu0 0.0
    %1404 = vmatpush.msra.mxu0 0.0
    %1405 = vmatpush.msra.mxu0 %v1379
    %1406 = vmatpush.msra.mxu0 %v1377
    %1407 = vmatpush.msra.mxu0 %v1375
    %1408 = vmatpush.msra.mxu0 %v1373
    %1409 = vmatmul.f32.gmra.mxu0 %v1388
    %v1410 = vpop.f32.mrf.mxu0
    %v1411 = vadd.f32 %v1385, %v1410
    %1412 = vmatmul.f32.gmra.mxu0 %v1391
    %v1413 = vpop.f32.mrf.mxu0
    %v1414 = vadd.f32 %v1385, %v1413
    %1415 = vdwg.mxu0
    %v1416 = vmax.f32 %v1411, 0.0
    %v1417 = vmax.f32 %v1414, 0.0
    %1418 = vrot.lane.b32.xlu0 %v1329, 64
    %v1419 = vpop.permute.xlu0 %1418
    %1420 = vrot.lane.b32.xlu0 %v1330, 64
    %v1421 = vpop.permute.xlu0 %1420
    %1422 = vrot.lane.b32.xlu0 %v1331, 64
    %v1423 = vpop.permute.xlu0 %1422
    %1424 = vrot.lane.b32.xlu0 %v1332, 64
    %v1425 = vpop.permute.xlu0 %1424
    %1430 = vrot.lane.b32.xlu0 %v1335, 64
    %v1431 = vpop.permute.xlu0 %1430
    %v1434 = vsel %vm102, %v1416, 0
    %v1437 = vsel %vm102, %v1417, 0
    %1439 = vmatpush.msra.mxu0 0.0
    %1440 = vmatpush.msra.mxu0 0.0
    %1441 = vmatpush.msra.mxu0 0.0
    %1442 = vmatpush.msra.mxu0 0.0
    %1443 = vmatpush.msra.mxu0 0.0
    %1444 = vmatpush.msra.mxu0 0.0
    %1445 = vmatpush.msra.mxu0 0.0
    %1446 = vmatpush.msra.mxu0 0.0
    %1447 = vmatpush.msra.mxu0 0.0
    %1448 = vmatpush.msra.mxu0 0.0
    %1449 = vmatpush.msra.mxu0 0.0
    %1450 = vmatpush.msra.mxu0 0.0
    %1451 = vmatpush.msra.mxu0 %v1425
    %1452 = vmatpush.msra.mxu0 %v1423
    %1453 = vmatpush.msra.mxu0 %v1421
    %1454 = vmatpush.msra.mxu0 %v1419
    %1455 = vmatmul.f32.gmra.mxu0 %v1434
    %v1456 = vpop.f32.mrf.mxu0
    %v1457 = vadd.f32 %v1431, %v1456
    %1458 = vmatmul.f32.gmra.mxu0 %v1437
    %v1459 = vpop.f32.mrf.mxu0
    %v1460 = vadd.f32 %v1431, %v1459
    %1461 = vdwg.mxu0
    %v1462 = vmax.f32 %v1457, 0.0
    %v1463 = vmax.f32 %v1460, 0.0
    %v1464 = vadd.f32 %v1366, %v1462
    %v1465 = vadd.f32 %v1367, %v1463
    %s1466 = scalar_lea.vmem [#allocation2], 16
    %v1467 = vld [vmem:[%s1466] sm:$0xff]
    %v1468 = vld [vmem:[%s1466 + $0x8] sm:$0xff]
    %v1469 = vtanh.pop %v898
    %v1470 = vtanh.pop %v899
    %v1471 = vld [vmem:[#allocation8] sm:$0xff]
    %v1472 = vld [vmem:[#allocation8 + $0x8] sm:$0xff]
    %v1473 = vld [vmem:[#allocation8 + $0x10] sm:$0xff]
    %v1474 = vld [vmem:[#allocation8 + $0x18] sm:$0xff]
    %1479 = vrot.lane.b32.xlu0 %v1471, 64
    %v1480 = vpop.permute.xlu0 %1479
    %1481 = vrot.lane.b32.xlu0 %v1472, 64
    %v1482 = vpop.permute.xlu0 %1481
    %1483 = vrot.lane.b32.xlu0 %v1473, 64
    %v1484 = vpop.permute.xlu0 %1483
    %1485 = vrot.lane.b32.xlu0 %v1474, 64
    %v1486 = vpop.permute.xlu0 %1485
    %v1492 = vsel %vm102, %v1469, 0
    %v1495 = vsel %vm102, %v1470, 0
    %1497 = vmatpush.msra.mxu0 0.0
    %1498 = vmatpush.msra.mxu0 0.0
    %1499 = vmatpush.msra.mxu0 0.0
    %1500 = vmatpush.msra.mxu0 0.0
    %1501 = vmatpush.msra.mxu0 0.0
    %1502 = vmatpush.msra.mxu0 0.0
    %1503 = vmatpush.msra.mxu0 0.0
    %1504 = vmatpush.msra.mxu0 0.0
    %1505 = vmatpush.msra.mxu0 0.0
    %1506 = vmatpush.msra.mxu0 0.0
    %1507 = vmatpush.msra.mxu0 0.0
    %1508 = vmatpush.msra.mxu0 0.0
    %1509 = vmatpush.msra.mxu0 %v1486
    %1510 = vmatpush.msra.mxu0 %v1484
    %1511 = vmatpush.msra.mxu0 %v1482
    %1512 = vmatpush.msra.mxu0 %v1480
    %1513 = vmatmul.f32.gmra.mxu0 %v1492
    %v1514 = vpop.f32.mrf.mxu0
    %v1515 = vadd.f32 0.0, %v1514
    %1516 = vmatmul.f32.gmra.mxu0 %v1495
    %v1517 = vpop.f32.mrf.mxu0
    %v1518 = vadd.f32 0.0, %v1517
    %1519 = vdwg.mxu0
    %v1520 = vadd.f32 %v1467, %v1515
    %v1521 = vadd.f32 %v1468, %v1518
    %v1522 = vxor.u32 %v1520, 2147483648
    %v1523 = vxor.u32 %v1521, 2147483648
    %v1524 = vmul.f32 %v1522, 1.442695
    %v1525 = vpow.pop %v1524
    %v1526 = vmul.f32 %v1523, 1.442695
    %v1527 = vpow.pop %v1526
    %v1528 = vadd.f32 %v1525, 1.0
    %v1529 = vadd.f32 %v1527, 1.0
    %v1530 = vrcp.pop %v1528
    %v1531 = vmul.f32 %v1528, %v1530
    %v1532 = vsub.f32 1.0, %v1531
    %v1533 = vmul.f32 %v1530, %v1532
    %v1534 = vadd.f32 %v1530, %v1533
    %vm1535 = vweird.f32 %v1528
    %vm1536 = vweird.f32 %v1530
    %vm1537 = vmor %vm1535, %vm1536
    %v1538 = vsel %vm1537, %v1530, %v1534
    %v1539 = vand.u32 2147483647, %v1528
    %vm1540 = vcmp.eq.f32.partialorder %v1539, 8.507059e+37
    %v1541 = vand.u32 %v1528, 2147483648
    %v1542 = vor.u32 1.1754944e-38, %v1541
    %v1543 = vsel %vm1540, %v1542, %v1538
    %v1544 = vmul.f32 1.0, %v1543
    %v1545 = vrcp.pop %v1529
    %v1546 = vmul.f32 %v1529, %v1545
    %v1547 = vsub.f32 1.0, %v1546
    %v1548 = vmul.f32 %v1545, %v1547
    %v1549 = vadd.f32 %v1545, %v1548
    %vm1550 = vweird.f32 %v1529
    %vm1551 = vweird.f32 %v1545
    %vm1552 = vmor %vm1550, %vm1551
    %v1553 = vsel %vm1552, %v1545, %v1549
    %v1554 = vand.u32 2147483647, %v1529
    %vm1555 = vcmp.eq.f32.partialorder %v1554, 8.507059e+37
    %v1556 = vand.u32 %v1529, 2147483648
    %v1557 = vor.u32 1.1754944e-38, %v1556
    %v1558 = vsel %vm1555, %v1557, %v1553
    %v1559 = vmul.f32 1.0, %v1558
    %v1560 = vtanh.pop %v1464
    %v1561 = vtanh.pop %v1465
    %v1562 = vmul.f32 %v1544, %v1560
    %v1563 = vmul.f32 %v1559, %v1561
    %1564 = vrot.lane.b32.xlu0 %v898, 32
    %v1565 = vpop.permute.xlu0 %1564
    %1566 = vrot.lane.b32.xlu0 %v899, 32
    %v1567 = vpop.permute.xlu0 %1566
    %v1570 = vmul.f32 %v1544, %v1565
    %v1571 = vmul.f32 %v1559, %v1567
    %1574 = vrot.lane.b32.xlu0 %v1570, 96
    %v1575 = vpop.permute.xlu0 %1574
    %1576 = vrot.lane.b32.xlu0 %v1571, 96
    %v1577 = vpop.permute.xlu0 %1576
    %v1580 = vadd.f32 %v1562, %v1575
    %v1581 = vadd.f32 %v1563, %v1577
    %s1582 = scalar_lea.vmem [#allocation9], 16
    %1583 = vst.msk [vmem:[%s1582] sm:$0xff] %vm102, %v1580
    %1584 = vst.msk [vmem:[%s1582 + $0x8] sm:$0xff] %vm102, %v1581
    %s1585 = scalar_lea.vmem %s0, 32
    %v1586 = vld [vmem:[%s1585] sm:$0xff]
    %v1587 = vld [vmem:[%s1585 + $0x8] sm:$0xff]
    %v1588 = vld [vmem:[%s2] sm:$0xff]
    %v1589 = vld [vmem:[%s2 + $0x8] sm:$0xff]
    %vm1590 = vcmp.gt.f32.partialorder %v1588, 0.5
    %vm1591 = vcmp.gt.f32.partialorder %v1589, 0.5
    %v1592 = vsel %vm1590, 1, 0
    %v1593 = vsel %vm1591, 1, 0
    %1594 = vset.pattern.permute.xlu0 0
    %1595 = vperm.xlu0 %1594, %v1592
    %v1596 = vpop.permute.xlu0 %1595
    %1597 = vset.pattern.permute.xlu0 0
    %1598 = vperm.xlu0 %1597, %v1593
    %v1599 = vpop.permute.xlu0 %1598
    %vm1600 = vcmp.eq.s32.totalorder %v1596, 1
    %vm1601 = vcmp.eq.s32.totalorder %v1599, 1
    %v1602 = vsel %vm1600, %v1586, %v1580
    %v1603 = vsel %vm1601, %v1587, %v1581
    %v1604 = vld [vmem:[#allocation3] sm:$0xff]
    %v1605 = vld [vmem:[#allocation3 + $0x8] sm:$0xff]
    %v1606 = vld [vmem:[#allocation3 + $0x10] sm:$0xff]
    %v1607 = vld [vmem:[#allocation3 + $0x18] sm:$0xff]
    %v1608 = vld [vmem:[%s6] sm:$0x1]
    %v1610 = vperm.slane %v1608, 0
    %v1613 = vsel %vm102, %v1602, 0
    %v1616 = vsel %vm102, %v1603, 0
    %1618 = vmatpush.msra.mxu0 0.0
    %1619 = vmatpush.msra.mxu0 0.0
    %1620 = vmatpush.msra.mxu0 0.0
    %1621 = vmatpush.msra.mxu0 0.0
    %1622 = vmatpush.msra.mxu0 0.0
    %1623 = vmatpush.msra.mxu0 0.0
    %1624 = vmatpush.msra.mxu0 0.0
    %1625 = vmatpush.msra.mxu0 0.0
    %1626 = vmatpush.msra.mxu0 0.0
    %1627 = vmatpush.msra.mxu0 0.0
    %1628 = vmatpush.msra.mxu0 0.0
    %1629 = vmatpush.msra.mxu0 0.0
    %1630 = vmatpush.msra.mxu0 %v1607
    %1631 = vmatpush.msra.mxu0 %v1606
    %1632 = vmatpush.msra.mxu0 %v1605
    %1633 = vmatpush.msra.mxu0 %v1604
    %1634 = vmatmul.f32.gmra.mxu0 %v1613
    %v1635 = vpop.f32.mrf.mxu0
    %v1636 = vadd.f32 %v1610, %v1635
    %1637 = vmatmul.f32.gmra.mxu0 %v1616
    %v1638 = vpop.f32.mrf.mxu0
    %v1639 = vadd.f32 %v1610, %v1638
    %1640 = vdwg.mxu0
    %v1641 = vld [vmem:[%s3] sm:$0x1]
    %v1642 = vld [vmem:[%s3 + $0x1] sm:$0x1]
    %v1643 = vld [vmem:[%s3 + $0x2] sm:$0x1]
    %v1644 = vld [vmem:[%s3 + $0x3] sm:$0x1]
    %v1649 = vperm.slane %v1641, 0
    %v1650 = vperm.slane %v1642, 0
    %v1651 = vperm.slane %v1643, 0
    %v1652 = vperm.slane %v1644, 0
    %v1657 = vmul.f32 %v1636, %v1649
    %v1658 = vmul.f32 %v1639, %v1649
    %v1659 = vmul.f32 %v1636, %v1650
    %v1660 = vmul.f32 %v1639, %v1650
    %v1661 = vmul.f32 %v1636, %v1651
    %v1662 = vmul.f32 %v1639, %v1651
    %v1663 = vmul.f32 %v1636, %v1652
    %v1664 = vmul.f32 %v1639, %v1652
    %v1665 = vld [vmem:[%s4] sm:$0xff]
    %v1666 = vld [vmem:[%s4 + $0x8] sm:$0xff]
    %v1667 = vld [vmem:[%s4 + $0x10] sm:$0xff]
    %v1668 = vld [vmem:[%s4 + $0x18] sm:$0xff]
    %v1669 = vld [vmem:[%s4 + $0x20] sm:$0xff]
    %v1670 = vld [vmem:[%s4 + $0x28] sm:$0xff]
    %v1671 = vld [vmem:[%s4 + $0x30] sm:$0xff]
    %v1672 = vld [vmem:[%s4 + $0x38] sm:$0xff]
    %1675 = vrot.lane.b32.xlu0 %v1636, 96
    %v1676 = vpop.permute.xlu0 %1675
    %1677 = vrot.lane.b32.xlu0 %v1639, 96
    %v1678 = vpop.permute.xlu0 %1677
    %v1680 = vsel %vm102, %v1657, 0
    %v1683 = vsel %vm102, %v1658, 0
    %v1686 = vsel %vm102, %v1659, 0
    %v1689 = vsel %vm102, %v1660, 0
    %v1692 = vsel %vm102, %v1661, 0
    %v1695 = vsel %vm102, %v1662, 0
    %v1698 = vsel %vm102, %v1663, 0
    %v1701 = vsel %vm102, %v1664, 0
    %v1703 = vsel %vm102, %v1676, 0
    %v1705 = vsel %vm102, %v1678, 0
    %1707 = vmatpush.xpose.msra.mxu0 0.0
    %1708 = vmatpush.xpose.msra.mxu0 0.0
    %1709 = vmatpush.xpose.msra.mxu0 0.0
    %1710 = vmatpush.xpose.msra.mxu0 0.0
    %1711 = vmatpush.xpose.msra.mxu0 0.0
    %1712 = vmatpush.xpose.msra.mxu0 0.0
    %1713 = vmatpush.xpose.msra.mxu0 0.0
    %1714 = vmatpush.xpose.msra.mxu0 0.0
    %1715 = vmatpush.xpose.msra.mxu0 0.0
    %1716 = vmatpush.xpose.msra.mxu0 0.0
    %1717 = vmatpush.xpose.msra.mxu0 0.0
    %1718 = vmatpush.xpose.msra.mxu0 0.0
    %1719 = vmatpush.xpose.msra.mxu0 0.0
    %1720 = vmatpush.xpose.msra.mxu0 0.0
    %1721 = vmatpush.xpose.msra.mxu0 %v1705
    %1722 = vmatpush.xpose.msra.mxu0 %v1703
    %1723 = vmatmul.f32.gmra.mxu0 %v1680
    %v1724 = vpop.f32.mrf.mxu0
    %v1725 = vadd.f32 %v1665, %v1724
    %1726 = vmatmul.f32.gmra.mxu0 %v1683
    %v1727 = vpop.f32.mrf.mxu0
    %v1728 = vadd.f32 %v1666, %v1727
    %1729 = vmatmul.f32.gmra.mxu0 %v1686
    %v1730 = vpop.f32.mrf.mxu0
    %v1731 = vadd.f32 %v1667, %v1730
    %1732 = vmatmul.f32.gmra.mxu0 %v1689
    %v1733 = vpop.f32.mrf.mxu0
    %v1734 = vadd.f32 %v1668, %v1733
    %1735 = vmatmul.f32.gmra.mxu0 %v1692
    %v1736 = vpop.f32.mrf.mxu0
    %v1737 = vadd.f32 %v1669, %v1736
    %1738 = vmatmul.f32.gmra.mxu0 %v1695
    %v1739 = vpop.f32.mrf.mxu0
    %v1740 = vadd.f32 %v1670, %v1739
    %1741 = vmatmul.f32.gmra.mxu0 %v1698
    %v1742 = vpop.f32.mrf.mxu0
    %v1743 = vadd.f32 %v1671, %v1742
    %1744 = vmatmul.f32.gmra.mxu0 %v1701
    %v1745 = vpop.f32.mrf.mxu0
    %v1746 = vadd.f32 %v1672, %v1745
    %1747 = vdwg.mxu0
    %v1748 = vsel %vm341, %v1725, -inf
    %1749 = vmax.xlane.f32.xlu0 %v1748
    %v1750 = vpop.xlane.xlu0 %1749
    %v1751 = vsel %vm341, %v1728, -inf
    %1752 = vmax.xlane.f32.xlu0 %v1751
    %v1753 = vpop.xlane.xlu0 %1752
    %v1754 = vsel %vm341, %v1731, -inf
    %1755 = vmax.xlane.f32.xlu0 %v1754
    %v1756 = vpop.xlane.xlu0 %1755
    %v1757 = vsel %vm341, %v1734, -inf
    %1758 = vmax.xlane.f32.xlu0 %v1757
    %v1759 = vpop.xlane.xlu0 %1758
    %v1760 = vsel %vm341, %v1737, -inf
    %1761 = vmax.xlane.f32.xlu0 %v1760
    %v1762 = vpop.xlane.xlu0 %1761
    %v1763 = vsel %vm341, %v1740, -inf
    %1764 = vmax.xlane.f32.xlu0 %v1763
    %v1765 = vpop.xlane.xlu0 %1764
    %v1766 = vsel %vm341, %v1743, -inf
    %1767 = vmax.xlane.f32.xlu0 %v1766
    %v1768 = vpop.xlane.xlu0 %1767
    %v1769 = vsel %vm341, %v1746, -inf
    %1770 = vmax.xlane.f32.xlu0 %v1769
    %v1771 = vpop.xlane.xlu0 %1770
    %v1772 = vsub.f32 %v1725, %v1750
    %v1773 = vsub.f32 %v1728, %v1753
    %v1774 = vsub.f32 %v1731, %v1756
    %v1775 = vsub.f32 %v1734, %v1759
    %v1776 = vsub.f32 %v1737, %v1762
    %v1777 = vsub.f32 %v1740, %v1765
    %v1778 = vsub.f32 %v1743, %v1768
    %v1779 = vsub.f32 %v1746, %v1771
    %v1780 = vmul.f32 %v1772, 1.442695
    %v1781 = vpow.pop %v1780
    %v1782 = vmul.f32 %v1773, 1.442695
    %v1783 = vpow.pop %v1782
    %v1784 = vmul.f32 %v1774, 1.442695
    %v1785 = vpow.pop %v1784
    %v1786 = vmul.f32 %v1775, 1.442695
    %v1787 = vpow.pop %v1786
    %v1788 = vmul.f32 %v1776, 1.442695
    %v1789 = vpow.pop %v1788
    %v1790 = vmul.f32 %v1777, 1.442695
    %v1791 = vpow.pop %v1790
    %v1792 = vmul.f32 %v1778, 1.442695
    %v1793 = vpow.pop %v1792
    %v1794 = vmul.f32 %v1779, 1.442695
    %v1795 = vpow.pop %v1794
    %v1796 = vsel %vm341, %v1781, 0.0
    %1797 = vadd.xlane.f32.xlu0 %v1796
    %v1798 = vpop.xlane.xlu0 %1797
    %v1799 = vsel %vm341, %v1783, 0.0
    %1800 = vadd.xlane.f32.xlu0 %v1799
    %v1801 = vpop.xlane.xlu0 %1800
    %v1802 = vsel %vm341, %v1785, 0.0
    %1803 = vadd.xlane.f32.xlu0 %v1802
    %v1804 = vpop.xlane.xlu0 %1803
    %v1805 = vsel %vm341, %v1787, 0.0
    %1806 = vadd.xlane.f32.xlu0 %v1805
    %v1807 = vpop.xlane.xlu0 %1806
    %v1808 = vsel %vm341, %v1789, 0.0
    %1809 = vadd.xlane.f32.xlu0 %v1808
    %v1810 = vpop.xlane.xlu0 %1809
    %v1811 = vsel %vm341, %v1791, 0.0
    %1812 = vadd.xlane.f32.xlu0 %v1811
    %v1813 = vpop.xlane.xlu0 %1812
    %v1814 = vsel %vm341, %v1793, 0.0
    %1815 = vadd.xlane.f32.xlu0 %v1814
    %v1816 = vpop.xlane.xlu0 %1815
    %v1817 = vsel %vm341, %v1795, 0.0
    %1818 = vadd.xlane.f32.xlu0 %v1817
    %v1819 = vpop.xlane.xlu0 %1818
    %v1820 = vrcp.pop %v1798
    %v1821 = vmul.f32 %v1798, %v1820
    %v1822 = vsub.f32 1.0, %v1821
    %v1823 = vmul.f32 %v1820, %v1822
    %v1824 = vadd.f32 %v1820, %v1823
    %vm1825 = vweird.f32 %v1798
    %vm1826 = vweird.f32 %v1820
    %vm1827 = vmor %vm1825, %vm1826
    %v1828 = vsel %vm1827, %v1820, %v1824
    %v1829 = vand.u32 2147483647, %v1798
    %vm1830 = vcmp.eq.f32.partialorder %v1829, 8.507059e+37
    %v1831 = vand.u32 %v1798, 2147483648
    %v1832 = vor.u32 1.1754944e-38, %v1831
    %v1833 = vsel %vm1830, %v1832, %v1828
    %v1834 = vrcp.pop %v1801
    %v1835 = vmul.f32 %v1801, %v1834
    %v1836 = vsub.f32 1.0, %v1835
    %v1837 = vmul.f32 %v1834, %v1836
    %v1838 = vadd.f32 %v1834, %v1837
    %vm1839 = vweird.f32 %v1801
    %vm1840 = vweird.f32 %v1834
    %vm1841 = vmor %vm1839, %vm1840
    %v1842 = vsel %vm1841, %v1834, %v1838
    %v1843 = vand.u32 2147483647, %v1801
    %vm1844 = vcmp.eq.f32.partialorder %v1843, 8.507059e+37
    %v1845 = vand.u32 %v1801, 2147483648
    %v1846 = vor.u32 1.1754944e-38, %v1845
    %v1847 = vsel %vm1844, %v1846, %v1842
    %v1848 = vrcp.pop %v1804
    %v1849 = vmul.f32 %v1804, %v1848
    %v1850 = vsub.f32 1.0, %v1849
    %v1851 = vmul.f32 %v1848, %v1850
    %v1852 = vadd.f32 %v1848, %v1851
    %vm1853 = vweird.f32 %v1804
    %vm1854 = vweird.f32 %v1848
    %vm1855 = vmor %vm1853, %vm1854
    %v1856 = vsel %vm1855, %v1848, %v1852
    %v1857 = vand.u32 2147483647, %v1804
    %vm1858 = vcmp.eq.f32.partialorder %v1857, 8.507059e+37
    %v1859 = vand.u32 %v1804, 2147483648
    %v1860 = vor.u32 1.1754944e-38, %v1859
    %v1861 = vsel %vm1858, %v1860, %v1856
    %v1862 = vrcp.pop %v1807
    %v1863 = vmul.f32 %v1807, %v1862
    %v1864 = vsub.f32 1.0, %v1863
    %v1865 = vmul.f32 %v1862, %v1864
    %v1866 = vadd.f32 %v1862, %v1865
    %vm1867 = vweird.f32 %v1807
    %vm1868 = vweird.f32 %v1862
    %vm1869 = vmor %vm1867, %vm1868
    %v1870 = vsel %vm1869, %v1862, %v1866
    %v1871 = vand.u32 2147483647, %v1807
    %vm1872 = vcmp.eq.f32.partialorder %v1871, 8.507059e+37
    %v1873 = vand.u32 %v1807, 2147483648
    %v1874 = vor.u32 1.1754944e-38, %v1873
    %v1875 = vsel %vm1872, %v1874, %v1870
    %v1876 = vrcp.pop %v1810
    %v1877 = vmul.f32 %v1810, %v1876
    %v1878 = vsub.f32 1.0, %v1877
    %v1879 = vmul.f32 %v1876, %v1878
    %v1880 = vadd.f32 %v1876, %v1879
    %vm1881 = vweird.f32 %v1810
    %vm1882 = vweird.f32 %v1876
    %vm1883 = vmor %vm1881, %vm1882
    %v1884 = vsel %vm1883, %v1876, %v1880
    %v1885 = vand.u32 2147483647, %v1810
    %vm1886 = vcmp.eq.f32.partialorder %v1885, 8.507059e+37
    %v1887 = vand.u32 %v1810, 2147483648
    %v1888 = vor.u32 1.1754944e-38, %v1887
    %v1889 = vsel %vm1886, %v1888, %v1884
    %v1890 = vrcp.pop %v1813
    %v1891 = vmul.f32 %v1813, %v1890
    %v1892 = vsub.f32 1.0, %v1891
    %v1893 = vmul.f32 %v1890, %v1892
    %v1894 = vadd.f32 %v1890, %v1893
    %vm1895 = vweird.f32 %v1813
    %vm1896 = vweird.f32 %v1890
    %vm1897 = vmor %vm1895, %vm1896
    %v1898 = vsel %vm1897, %v1890, %v1894
    %v1899 = vand.u32 2147483647, %v1813
    %vm1900 = vcmp.eq.f32.partialorder %v1899, 8.507059e+37
    %v1901 = vand.u32 %v1813, 2147483648
    %v1902 = vor.u32 1.1754944e-38, %v1901
    %v1903 = vsel %vm1900, %v1902, %v1898
    %v1904 = vrcp.pop %v1816
    %v1905 = vmul.f32 %v1816, %v1904
    %v1906 = vsub.f32 1.0, %v1905
    %v1907 = vmul.f32 %v1904, %v1906
    %v1908 = vadd.f32 %v1904, %v1907
    %vm1909 = vweird.f32 %v1816
    %vm1910 = vweird.f32 %v1904
    %vm1911 = vmor %vm1909, %vm1910
    %v1912 = vsel %vm1911, %v1904, %v1908
    %v1913 = vand.u32 2147483647, %v1816
    %vm1914 = vcmp.eq.f32.partialorder %v1913, 8.507059e+37
    %v1915 = vand.u32 %v1816, 2147483648
    %v1916 = vor.u32 1.1754944e-38, %v1915
    %v1917 = vsel %vm1914, %v1916, %v1912
    %v1918 = vrcp.pop %v1819
    %v1919 = vmul.f32 %v1819, %v1918
    %v1920 = vsub.f32 1.0, %v1919
    %v1921 = vmul.f32 %v1918, %v1920
    %v1922 = vadd.f32 %v1918, %v1921
    %vm1923 = vweird.f32 %v1819
    %vm1924 = vweird.f32 %v1918
    %vm1925 = vmor %vm1923, %vm1924
    %v1926 = vsel %vm1925, %v1918, %v1922
    %v1927 = vand.u32 2147483647, %v1819
    %vm1928 = vcmp.eq.f32.partialorder %v1927, 8.507059e+37
    %v1929 = vand.u32 %v1819, 2147483648
    %v1930 = vor.u32 1.1754944e-38, %v1929
    %v1931 = vsel %vm1928, %v1930, %v1926
    %v1932 = vmul.f32 %v1781, %v1833
    %v1933 = vmul.f32 %v1783, %v1847
    %v1934 = vmul.f32 %v1785, %v1861
    %v1935 = vmul.f32 %v1787, %v1875
    %v1936 = vmul.f32 %v1789, %v1889
    %v1937 = vmul.f32 %v1791, %v1903
    %v1938 = vmul.f32 %v1793, %v1917
    %v1939 = vmul.f32 %v1795, %v1931
    %1940 = vrot.lane.b32.xlu0 %v1636, 64
    %v1941 = vpop.permute.xlu0 %1940
    %1942 = vrot.lane.b32.xlu0 %v1639, 64
    %v1943 = vpop.permute.xlu0 %1942
    %v1947 = vsel %vm341, %v1932, 0
    %v1950 = vsel %vm341, %v1933, 0
    %v1953 = vsel %vm341, %v1934, 0
    %v1956 = vsel %vm341, %v1935, 0
    %v1959 = vsel %vm341, %v1936, 0
    %v1962 = vsel %vm341, %v1937, 0
    %v1965 = vsel %vm341, %v1938, 0
    %v1968 = vsel %vm341, %v1939, 0
    %1970 = vmatpush.msra.mxu0 0.0
    %1971 = vmatpush.msra.mxu0 0.0
    %1972 = vmatpush.msra.mxu0 0.0
    %1973 = vmatpush.msra.mxu0 0.0
    %1974 = vmatpush.msra.mxu0 0.0
    %1975 = vmatpush.msra.mxu0 0.0
    %1976 = vmatpush.msra.mxu0 0.0
    %1977 = vmatpush.msra.mxu0 0.0
    %1978 = vmatpush.msra.mxu0 0.0
    %1979 = vmatpush.msra.mxu0 0.0
    %1980 = vmatpush.msra.mxu0 0.0
    %1981 = vmatpush.msra.mxu0 0.0
    %1982 = vmatpush.msra.mxu0 0.0
    %1983 = vmatpush.msra.mxu0 0.0
    %1984 = vmatpush.msra.mxu0 %v1943
    %1985 = vmatpush.msra.mxu0 %v1941
    %1986 = vmatmul.f32.gmra.mxu0 %v1947
    %v1987 = vpop.f32.mrf.mxu0
    %v1988 = vadd.f32 0.0, %v1987
    %1989 = vmatmul.f32.gmra.mxu0 %v1950
    %v1990 = vpop.f32.mrf.mxu0
    %v1991 = vadd.f32 0.0, %v1990
    %1992 = vmatmul.f32.gmra.mxu0 %v1953
    %v1993 = vpop.f32.mrf.mxu0
    %v1994 = vadd.f32 0.0, %v1993
    %1995 = vmatmul.f32.gmra.mxu0 %v1956
    %v1996 = vpop.f32.mrf.mxu0
    %v1997 = vadd.f32 0.0, %v1996
    %1998 = vmatmul.f32.gmra.mxu0 %v1959
    %v1999 = vpop.f32.mrf.mxu0
    %v2000 = vadd.f32 0.0, %v1999
    %2001 = vmatmul.f32.gmra.mxu0 %v1962
    %v2002 = vpop.f32.mrf.mxu0
    %v2003 = vadd.f32 0.0, %v2002
    %2004 = vmatmul.f32.gmra.mxu0 %v1965
    %v2005 = vpop.f32.mrf.mxu0
    %v2006 = vadd.f32 0.0, %v2005
    %2007 = vmatmul.f32.gmra.mxu0 %v1968
    %v2008 = vpop.f32.mrf.mxu0
    %v2009 = vadd.f32 0.0, %v2008
    %2010 = vdwg.mxu0
    %v2011 = vmul.f32 %v1988, %v1649
    %v2012 = vmul.f32 %v1991, %v1649
    %v2013 = vmul.f32 %v1994, %v1650
    %v2014 = vmul.f32 %v1997, %v1650
    %v2015 = vmul.f32 %v2000, %v1651
    %v2016 = vmul.f32 %v2003, %v1651
    %v2017 = vmul.f32 %v2006, %v1652
    %v2018 = vmul.f32 %v2009, %v1652
    %v2019 = vsel %vm102, %v2011, 0.0
    %v2020 = vsel %vm102, %v2013, 0.0
    %v2021 = vadd.f32 %v2019, %v2020
    %v2022 = vsel %vm102, %v2015, 0.0
    %v2023 = vadd.f32 %v2021, %v2022
    %v2024 = vsel %vm102, %v2017, 0.0
    %v2025 = vadd.f32 %v2023, %v2024
    %v2026 = vsel %vm102, %v2012, 0.0
    %v2027 = vsel %vm102, %v2014, 0.0
    %v2028 = vadd.f32 %v2026, %v2027
    %v2029 = vsel %vm102, %v2016, 0.0
    %v2030 = vadd.f32 %v2028, %v2029
    %v2031 = vsel %vm102, %v2018, 0.0
    %v2032 = vadd.f32 %v2030, %v2031
    %v2033 = vld [vmem:[#allocation6] sm:$0xff]
    %v2034 = vld [vmem:[#allocation6 + $0x8] sm:$0xff]
    %v2035 = vld [vmem:[#allocation6 + $0x10] sm:$0xff]
    %v2036 = vld [vmem:[#allocation6 + $0x18] sm:$0xff]
    %v2037 = vld [vmem:[%s8] sm:$0x1]
    %v2039 = vperm.slane %v2037, 0
    %v2042 = vsel %vm102, %v2025, 0
    %v2045 = vsel %vm102, %v2032, 0
    %2047 = vmatpush.msra.mxu0 0.0
    %2048 = vmatpush.msra.mxu0 0.0
    %2049 = vmatpush.msra.mxu0 0.0
    %2050 = vmatpush.msra.mxu0 0.0
    %2051 = vmatpush.msra.mxu0 0.0
    %2052 = vmatpush.msra.mxu0 0.0
    %2053 = vmatpush.msra.mxu0 0.0
    %2054 = vmatpush.msra.mxu0 0.0
    %2055 = vmatpush.msra.mxu0 0.0
    %2056 = vmatpush.msra.mxu0 0.0
    %2057 = vmatpush.msra.mxu0 0.0
    %2058 = vmatpush.msra.mxu0 0.0
    %2059 = vmatpush.msra.mxu0 %v2036
    %2060 = vmatpush.msra.mxu0 %v2035
    %2061 = vmatpush.msra.mxu0 %v2034
    %2062 = vmatpush.msra.mxu0 %v2033
    %2063 = vmatmul.f32.gmra.mxu0 %v2042
    %v2064 = vpop.f32.mrf.mxu0
    %v2065 = vadd.f32 %v2039, %v2064
    %2066 = vmatmul.f32.gmra.mxu0 %v2045
    %v2067 = vpop.f32.mrf.mxu0
    %v2068 = vadd.f32 %v2039, %v2067
    %2069 = vdwg.mxu0
    %v2070 = vadd.f32 %v1602, %v2065
    %v2071 = vadd.f32 %v1603, %v2068
    %2076 = vrot.lane.b32.xlu0 %v2033, 96
    %v2077 = vpop.permute.xlu0 %2076
    %2078 = vrot.lane.b32.xlu0 %v2034, 96
    %v2079 = vpop.permute.xlu0 %2078
    %2080 = vrot.lane.b32.xlu0 %v2035, 96
    %v2081 = vpop.permute.xlu0 %2080
    %2082 = vrot.lane.b32.xlu0 %v2036, 96
    %v2083 = vpop.permute.xlu0 %2082
    %2088 = vrot.lane.b32.xlu0 %v2039, 96
    %v2089 = vpop.permute.xlu0 %2088
    %v2092 = vsel %vm102, %v2070, 0
    %v2095 = vsel %vm102, %v2071, 0
    %2097 = vmatpush.msra.mxu0 0.0
    %2098 = vmatpush.msra.mxu0 0.0
    %2099 = vmatpush.msra.mxu0 0.0
    %2100 = vmatpush.msra.mxu0 0.0
    %2101 = vmatpush.msra.mxu0 0.0
    %2102 = vmatpush.msra.mxu0 0.0
    %2103 = vmatpush.msra.mxu0 0.0
    %2104 = vmatpush.msra.mxu0 0.0
    %2105 = vmatpush.msra.mxu0 0.0
    %2106 = vmatpush.msra.mxu0 0.0
    %2107 = vmatpush.msra.mxu0 0.0
    %2108 = vmatpush.msra.mxu0 0.0
    %2109 = vmatpush.msra.mxu0 %v2083
    %2110 = vmatpush.msra.mxu0 %v2081
    %2111 = vmatpush.msra.mxu0 %v2079
    %2112 = vmatpush.msra.mxu0 %v2077
    %2113 = vmatmul.f32.gmra.mxu0 %v2092
    %v2114 = vpop.f32.mrf.mxu0
    %v2115 = vadd.f32 %v2089, %v2114
    %2116 = vmatmul.f32.gmra.mxu0 %v2095
    %v2117 = vpop.f32.mrf.mxu0
    %v2118 = vadd.f32 %v2089, %v2117
    %2119 = vdwg.mxu0
    %v2120 = vmax.f32 %v2115, 0.0
    %v2121 = vmax.f32 %v2118, 0.0
    %2122 = vrot.lane.b32.xlu0 %v2033, 64
    %v2123 = vpop.permute.xlu0 %2122
    %2124 = vrot.lane.b32.xlu0 %v2034, 64
    %v2125 = vpop.permute.xlu0 %2124
    %2126 = vrot.lane.b32.xlu0 %v2035, 64
    %v2127 = vpop.permute.xlu0 %2126
    %2128 = vrot.lane.b32.xlu0 %v2036, 64
    %v2129 = vpop.permute.xlu0 %2128
    %2134 = vrot.lane.b32.xlu0 %v2039, 64
    %v2135 = vpop.permute.xlu0 %2134
    %v2138 = vsel %vm102, %v2120, 0
    %v2141 = vsel %vm102, %v2121, 0
    %2143 = vmatpush.msra.mxu0 0.0
    %2144 = vmatpush.msra.mxu0 0.0
    %2145 = vmatpush.msra.mxu0 0.0
    %2146 = vmatpush.msra.mxu0 0.0
    %2147 = vmatpush.msra.mxu0 0.0
    %2148 = vmatpush.msra.mxu0 0.0
    %2149 = vmatpush.msra.mxu0 0.0
    %2150 = vmatpush.msra.mxu0 0.0
    %2151 = vmatpush.msra.mxu0 0.0
    %2152 = vmatpush.msra.mxu0 0.0
    %2153 = vmatpush.msra.mxu0 0.0
    %2154 = vmatpush.msra.mxu0 0.0
    %2155 = vmatpush.msra.mxu0 %v2129
    %2156 = vmatpush.msra.mxu0 %v2127
    %2157 = vmatpush.msra.mxu0 %v2125
    %2158 = vmatpush.msra.mxu0 %v2123
    %2159 = vmatmul.f32.gmra.mxu0 %v2138
    %v2160 = vpop.f32.mrf.mxu0
    %v2161 = vadd.f32 %v2135, %v2160
    %2162 = vmatmul.f32.gmra.mxu0 %v2141
    %v2163 = vpop.f32.mrf.mxu0
    %v2164 = vadd.f32 %v2135, %v2163
    %2165 = vdwg.mxu0
    %v2166 = vmax.f32 %v2161, 0.0
    %v2167 = vmax.f32 %v2164, 0.0
    %v2168 = vadd.f32 %v2070, %v2166
    %v2169 = vadd.f32 %v2071, %v2167
    %s2170 = scalar_lea.vmem [#allocation2], 32
    %v2171 = vld [vmem:[%s2170] sm:$0xff]
    %v2172 = vld [vmem:[%s2170 + $0x8] sm:$0xff]
    %v2173 = vtanh.pop %v1602
    %v2174 = vtanh.pop %v1603
    %v2175 = vld [vmem:[#allocation8] sm:$0xff]
    %v2176 = vld [vmem:[#allocation8 + $0x8] sm:$0xff]
    %v2177 = vld [vmem:[#allocation8 + $0x10] sm:$0xff]
    %v2178 = vld [vmem:[#allocation8 + $0x18] sm:$0xff]
    %2183 = vrot.lane.b32.xlu0 %v2175, 64
    %v2184 = vpop.permute.xlu0 %2183
    %2185 = vrot.lane.b32.xlu0 %v2176, 64
    %v2186 = vpop.permute.xlu0 %2185
    %2187 = vrot.lane.b32.xlu0 %v2177, 64
    %v2188 = vpop.permute.xlu0 %2187
    %2189 = vrot.lane.b32.xlu0 %v2178, 64
    %v2190 = vpop.permute.xlu0 %2189
    %v2196 = vsel %vm102, %v2173, 0
    %v2199 = vsel %vm102, %v2174, 0
    %2201 = vmatpush.msra.mxu0 0.0
    %2202 = vmatpush.msra.mxu0 0.0
    %2203 = vmatpush.msra.mxu0 0.0
    %2204 = vmatpush.msra.mxu0 0.0
    %2205 = vmatpush.msra.mxu0 0.0
    %2206 = vmatpush.msra.mxu0 0.0
    %2207 = vmatpush.msra.mxu0 0.0
    %2208 = vmatpush.msra.mxu0 0.0
    %2209 = vmatpush.msra.mxu0 0.0
    %2210 = vmatpush.msra.mxu0 0.0
    %2211 = vmatpush.msra.mxu0 0.0
    %2212 = vmatpush.msra.mxu0 0.0
    %2213 = vmatpush.msra.mxu0 %v2190
    %2214 = vmatpush.msra.mxu0 %v2188
    %2215 = vmatpush.msra.mxu0 %v2186
    %2216 = vmatpush.msra.mxu0 %v2184
    %2217 = vmatmul.f32.gmra.mxu0 %v2196
    %v2218 = vpop.f32.mrf.mxu0
    %v2219 = vadd.f32 0.0, %v2218
    %2220 = vmatmul.f32.gmra.mxu0 %v2199
    %v2221 = vpop.f32.mrf.mxu0
    %v2222 = vadd.f32 0.0, %v2221
    %2223 = vdwg.mxu0
    %v2224 = vadd.f32 %v2171, %v2219
    %v2225 = vadd.f32 %v2172, %v2222
    %v2226 = vxor.u32 %v2224, 2147483648
    %v2227 = vxor.u32 %v2225, 2147483648
    %v2228 = vmul.f32 %v2226, 1.442695
    %v2229 = vpow.pop %v2228
    %v2230 = vmul.f32 %v2227, 1.442695
    %v2231 = vpow.pop %v2230
    %v2232 = vadd.f32 %v2229, 1.0
    %v2233 = vadd.f32 %v2231, 1.0
    %v2234 = vrcp.pop %v2232
    %v2235 = vmul.f32 %v2232, %v2234
    %v2236 = vsub.f32 1.0, %v2235
    %v2237 = vmul.f32 %v2234, %v2236
    %v2238 = vadd.f32 %v2234, %v2237
    %vm2239 = vweird.f32 %v2232
    %vm2240 = vweird.f32 %v2234
    %vm2241 = vmor %vm2239, %vm2240
    %v2242 = vsel %vm2241, %v2234, %v2238
    %v2243 = vand.u32 2147483647, %v2232
    %vm2244 = vcmp.eq.f32.partialorder %v2243, 8.507059e+37
    %v2245 = vand.u32 %v2232, 2147483648
    %v2246 = vor.u32 1.1754944e-38, %v2245
    %v2247 = vsel %vm2244, %v2246, %v2242
    %v2248 = vmul.f32 1.0, %v2247
    %v2249 = vrcp.pop %v2233
    %v2250 = vmul.f32 %v2233, %v2249
    %v2251 = vsub.f32 1.0, %v2250
    %v2252 = vmul.f32 %v2249, %v2251
    %v2253 = vadd.f32 %v2249, %v2252
    %vm2254 = vweird.f32 %v2233
    %vm2255 = vweird.f32 %v2249
    %vm2256 = vmor %vm2254, %vm2255
    %v2257 = vsel %vm2256, %v2249, %v2253
    %v2258 = vand.u32 2147483647, %v2233
    %vm2259 = vcmp.eq.f32.partialorder %v2258, 8.507059e+37
    %v2260 = vand.u32 %v2233, 2147483648
    %v2261 = vor.u32 1.1754944e-38, %v2260
    %v2262 = vsel %vm2259, %v2261, %v2257
    %v2263 = vmul.f32 1.0, %v2262
    %v2264 = vtanh.pop %v2168
    %v2265 = vtanh.pop %v2169
    %v2266 = vmul.f32 %v2248, %v2264
    %v2267 = vmul.f32 %v2263, %v2265
    %2268 = vrot.lane.b32.xlu0 %v1602, 32
    %v2269 = vpop.permute.xlu0 %2268
    %2270 = vrot.lane.b32.xlu0 %v1603, 32
    %v2271 = vpop.permute.xlu0 %2270
    %v2274 = vmul.f32 %v2248, %v2269
    %v2275 = vmul.f32 %v2263, %v2271
    %2278 = vrot.lane.b32.xlu0 %v2274, 96
    %v2279 = vpop.permute.xlu0 %2278
    %2280 = vrot.lane.b32.xlu0 %v2275, 96
    %v2281 = vpop.permute.xlu0 %2280
    %v2284 = vadd.f32 %v2266, %v2279
    %v2285 = vadd.f32 %v2267, %v2281
    %s2286 = scalar_lea.vmem [#allocation9], 32
    %2287 = vst.msk [vmem:[%s2286] sm:$0xff] %vm102, %v2284
    %2288 = vst.msk [vmem:[%s2286 + $0x8] sm:$0xff] %vm102, %v2285
    %s2289 = scalar_lea.vmem %s0, 48
    %v2290 = vld [vmem:[%s2289] sm:$0xff]
    %v2291 = vld [vmem:[%s2289 + $0x8] sm:$0xff]
    %v2292 = vld [vmem:[%s2] sm:$0xff]
    %v2293 = vld [vmem:[%s2 + $0x8] sm:$0xff]
    %vm2294 = vcmp.gt.f32.partialorder %v2292, 0.5
    %vm2295 = vcmp.gt.f32.partialorder %v2293, 0.5
    %v2296 = vsel %vm2294, 1, 0
    %v2297 = vsel %vm2295, 1, 0
    %2298 = vset.pattern.permute.xlu0 0
    %2299 = vperm.xlu0 %2298, %v2296
    %v2300 = vpop.permute.xlu0 %2299
    %2301 = vset.pattern.permute.xlu0 0
    %2302 = vperm.xlu0 %2301, %v2297
    %v2303 = vpop.permute.xlu0 %2302
    %vm2304 = vcmp.eq.s32.totalorder %v2300, 1
    %vm2305 = vcmp.eq.s32.totalorder %v2303, 1
    %v2306 = vsel %vm2304, %v2290, %v2284
    %v2307 = vsel %vm2305, %v2291, %v2285
    %v2308 = vld [vmem:[#allocation3] sm:$0xff]
    %v2309 = vld [vmem:[#allocation3 + $0x8] sm:$0xff]
    %v2310 = vld [vmem:[#allocation3 + $0x10] sm:$0xff]
    %v2311 = vld [vmem:[#allocation3 + $0x18] sm:$0xff]
    %v2312 = vld [vmem:[%s6] sm:$0x1]
    %v2314 = vperm.slane %v2312, 0
    %v2317 = vsel %vm102, %v2306, 0
    %v2320 = vsel %vm102, %v2307, 0
    %2322 = vmatpush.msra.mxu0 0.0
    %2323 = vmatpush.msra.mxu0 0.0
    %2324 = vmatpush.msra.mxu0 0.0
    %2325 = vmatpush.msra.mxu0 0.0
    %2326 = vmatpush.msra.mxu0 0.0
    %2327 = vmatpush.msra.mxu0 0.0
    %2328 = vmatpush.msra.mxu0 0.0
    %2329 = vmatpush.msra.mxu0 0.0
    %2330 = vmatpush.msra.mxu0 0.0
    %2331 = vmatpush.msra.mxu0 0.0
    %2332 = vmatpush.msra.mxu0 0.0
    %2333 = vmatpush.msra.mxu0 0.0
    %2334 = vmatpush.msra.mxu0 %v2311
    %2335 = vmatpush.msra.mxu0 %v2310
    %2336 = vmatpush.msra.mxu0 %v2309
    %2337 = vmatpush.msra.mxu0 %v2308
    %2338 = vmatmul.f32.gmra.mxu0 %v2317
    %v2339 = vpop.f32.mrf.mxu0
    %v2340 = vadd.f32 %v2314, %v2339
    %2341 = vmatmul.f32.gmra.mxu0 %v2320
    %v2342 = vpop.f32.mrf.mxu0
    %v2343 = vadd.f32 %v2314, %v2342
    %2344 = vdwg.mxu0
    %v2345 = vld [vmem:[%s3] sm:$0x1]
    %v2346 = vld [vmem:[%s3 + $0x1] sm:$0x1]
    %v2347 = vld [vmem:[%s3 + $0x2] sm:$0x1]
    %v2348 = vld [vmem:[%s3 + $0x3] sm:$0x1]
    %v2353 = vperm.slane %v2345, 0
    %v2354 = vperm.slane %v2346, 0
    %v2355 = vperm.slane %v2347, 0
    %v2356 = vperm.slane %v2348, 0
    %v2361 = vmul.f32 %v2340, %v2353
    %v2362 = vmul.f32 %v2343, %v2353
    %v2363 = vmul.f32 %v2340, %v2354
    %v2364 = vmul.f32 %v2343, %v2354
    %v2365 = vmul.f32 %v2340, %v2355
    %v2366 = vmul.f32 %v2343, %v2355
    %v2367 = vmul.f32 %v2340, %v2356
    %v2368 = vmul.f32 %v2343, %v2356
    %v2369 = vld [vmem:[%s4] sm:$0xff]
    %v2370 = vld [vmem:[%s4 + $0x8] sm:$0xff]
    %v2371 = vld [vmem:[%s4 + $0x10] sm:$0xff]
    %v2372 = vld [vmem:[%s4 + $0x18] sm:$0xff]
    %v2373 = vld [vmem:[%s4 + $0x20] sm:$0xff]
    %v2374 = vld [vmem:[%s4 + $0x28] sm:$0xff]
    %v2375 = vld [vmem:[%s4 + $0x30] sm:$0xff]
    %v2376 = vld [vmem:[%s4 + $0x38] sm:$0xff]
    %2379 = vrot.lane.b32.xlu0 %v2340, 96
    %v2380 = vpop.permute.xlu0 %2379
    %2381 = vrot.lane.b32.xlu0 %v2343, 96
    %v2382 = vpop.permute.xlu0 %2381
    %v2384 = vsel %vm102, %v2361, 0
    %v2387 = vsel %vm102, %v2362, 0
    %v2390 = vsel %vm102, %v2363, 0
    %v2393 = vsel %vm102, %v2364, 0
    %v2396 = vsel %vm102, %v2365, 0
    %v2399 = vsel %vm102, %v2366, 0
    %v2402 = vsel %vm102, %v2367, 0
    %v2405 = vsel %vm102, %v2368, 0
    %v2407 = vsel %vm102, %v2380, 0
    %v2409 = vsel %vm102, %v2382, 0
    %2411 = vmatpush.xpose.msra.mxu0 0.0
    %2412 = vmatpush.xpose.msra.mxu0 0.0
    %2413 = vmatpush.xpose.msra.mxu0 0.0
    %2414 = vmatpush.xpose.msra.mxu0 0.0
    %2415 = vmatpush.xpose.msra.mxu0 0.0
    %2416 = vmatpush.xpose.msra.mxu0 0.0
    %2417 = vmatpush.xpose.msra.mxu0 0.0
    %2418 = vmatpush.xpose.msra.mxu0 0.0
    %2419 = vmatpush.xpose.msra.mxu0 0.0
    %2420 = vmatpush.xpose.msra.mxu0 0.0
    %2421 = vmatpush.xpose.msra.mxu0 0.0
    %2422 = vmatpush.xpose.msra.mxu0 0.0
    %2423 = vmatpush.xpose.msra.mxu0 0.0
    %2424 = vmatpush.xpose.msra.mxu0 0.0
    %2425 = vmatpush.xpose.msra.mxu0 %v2409
    %2426 = vmatpush.xpose.msra.mxu0 %v2407
    %2427 = vmatmul.f32.gmra.mxu0 %v2384
    %v2428 = vpop.f32.mrf.mxu0
    %v2429 = vadd.f32 %v2369, %v2428
    %2430 = vmatmul.f32.gmra.mxu0 %v2387
    %v2431 = vpop.f32.mrf.mxu0
    %v2432 = vadd.f32 %v2370, %v2431
    %2433 = vmatmul.f32.gmra.mxu0 %v2390
    %v2434 = vpop.f32.mrf.mxu0
    %v2435 = vadd.f32 %v2371, %v2434
    %2436 = vmatmul.f32.gmra.mxu0 %v2393
    %v2437 = vpop.f32.mrf.mxu0
    %v2438 = vadd.f32 %v2372, %v2437
    %2439 = vmatmul.f32.gmra.mxu0 %v2396
    %v2440 = vpop.f32.mrf.mxu0
    %v2441 = vadd.f32 %v2373, %v2440
    %2442 = vmatmul.f32.gmra.mxu0 %v2399
    %v2443 = vpop.f32.mrf.mxu0
    %v2444 = vadd.f32 %v2374, %v2443
    %2445 = vmatmul.f32.gmra.mxu0 %v2402
    %v2446 = vpop.f32.mrf.mxu0
    %v2447 = vadd.f32 %v2375, %v2446
    %2448 = vmatmul.f32.gmra.mxu0 %v2405
    %v2449 = vpop.f32.mrf.mxu0
    %v2450 = vadd.f32 %v2376, %v2449
    %2451 = vdwg.mxu0
    %v2452 = vsel %vm341, %v2429, -inf
    %2453 = vmax.xlane.f32.xlu0 %v2452
    %v2454 = vpop.xlane.xlu0 %2453
    %v2455 = vsel %vm341, %v2432, -inf
    %2456 = vmax.xlane.f32.xlu0 %v2455
    %v2457 = vpop.xlane.xlu0 %2456
    %v2458 = vsel %vm341, %v2435, -inf
    %2459 = vmax.xlane.f32.xlu0 %v2458
    %v2460 = vpop.xlane.xlu0 %2459
    %v2461 = vsel %vm341, %v2438, -inf
    %2462 = vmax.xlane.f32.xlu0 %v2461
    %v2463 = vpop.xlane.xlu0 %2462
    %v2464 = vsel %vm341, %v2441, -inf
    %2465 = vmax.xlane.f32.xlu0 %v2464
    %v2466 = vpop.xlane.xlu0 %2465
    %v2467 = vsel %vm341, %v2444, -inf
    %2468 = vmax.xlane.f32.xlu0 %v2467
    %v2469 = vpop.xlane.xlu0 %2468
    %v2470 = vsel %vm341, %v2447, -inf
    %2471 = vmax.xlane.f32.xlu0 %v2470
    %v2472 = vpop.xlane.xlu0 %2471
    %v2473 = vsel %vm341, %v2450, -inf
    %2474 = vmax.xlane.f32.xlu0 %v2473
    %v2475 = vpop.xlane.xlu0 %2474
    %v2476 = vsub.f32 %v2429, %v2454
    %v2477 = vsub.f32 %v2432, %v2457
    %v2478 = vsub.f32 %v2435, %v2460
    %v2479 = vsub.f32 %v2438, %v2463
    %v2480 = vsub.f32 %v2441, %v2466
    %v2481 = vsub.f32 %v2444, %v2469
    %v2482 = vsub.f32 %v2447, %v2472
    %v2483 = vsub.f32 %v2450, %v2475
    %v2484 = vmul.f32 %v2476, 1.442695
    %v2485 = vpow.pop %v2484
    %v2486 = vmul.f32 %v2477, 1.442695
    %v2487 = vpow.pop %v2486
    %v2488 = vmul.f32 %v2478, 1.442695
    %v2489 = vpow.pop %v2488
    %v2490 = vmul.f32 %v2479, 1.442695
    %v2491 = vpow.pop %v2490
    %v2492 = vmul.f32 %v2480, 1.442695
    %v2493 = vpow.pop %v2492
    %v2494 = vmul.f32 %v2481, 1.442695
    %v2495 = vpow.pop %v2494
    %v2496 = vmul.f32 %v2482, 1.442695
    %v2497 = vpow.pop %v2496
    %v2498 = vmul.f32 %v2483, 1.442695
    %v2499 = vpow.pop %v2498
    %v2500 = vsel %vm341, %v2485, 0.0
    %2501 = vadd.xlane.f32.xlu0 %v2500
    %v2502 = vpop.xlane.xlu0 %2501
    %v2503 = vsel %vm341, %v2487, 0.0
    %2504 = vadd.xlane.f32.xlu0 %v2503
    %v2505 = vpop.xlane.xlu0 %2504
    %v2506 = vsel %vm341, %v2489, 0.0
    %2507 = vadd.xlane.f32.xlu0 %v2506
    %v2508 = vpop.xlane.xlu0 %2507
    %v2509 = vsel %vm341, %v2491, 0.0
    %2510 = vadd.xlane.f32.xlu0 %v2509
    %v2511 = vpop.xlane.xlu0 %2510
    %v2512 = vsel %vm341, %v2493, 0.0
    %2513 = vadd.xlane.f32.xlu0 %v2512
    %v2514 = vpop.xlane.xlu0 %2513
    %v2515 = vsel %vm341, %v2495, 0.0
    %2516 = vadd.xlane.f32.xlu0 %v2515
    %v2517 = vpop.xlane.xlu0 %2516
    %v2518 = vsel %vm341, %v2497, 0.0
    %2519 = vadd.xlane.f32.xlu0 %v2518
    %v2520 = vpop.xlane.xlu0 %2519
    %v2521 = vsel %vm341, %v2499, 0.0
    %2522 = vadd.xlane.f32.xlu0 %v2521
    %v2523 = vpop.xlane.xlu0 %2522
    %v2524 = vrcp.pop %v2502
    %v2525 = vmul.f32 %v2502, %v2524
    %v2526 = vsub.f32 1.0, %v2525
    %v2527 = vmul.f32 %v2524, %v2526
    %v2528 = vadd.f32 %v2524, %v2527
    %vm2529 = vweird.f32 %v2502
    %vm2530 = vweird.f32 %v2524
    %vm2531 = vmor %vm2529, %vm2530
    %v2532 = vsel %vm2531, %v2524, %v2528
    %v2533 = vand.u32 2147483647, %v2502
    %vm2534 = vcmp.eq.f32.partialorder %v2533, 8.507059e+37
    %v2535 = vand.u32 %v2502, 2147483648
    %v2536 = vor.u32 1.1754944e-38, %v2535
    %v2537 = vsel %vm2534, %v2536, %v2532
    %v2538 = vrcp.pop %v2505
    %v2539 = vmul.f32 %v2505, %v2538
    %v2540 = vsub.f32 1.0, %v2539
    %v2541 = vmul.f32 %v2538, %v2540
    %v2542 = vadd.f32 %v2538, %v2541
    %vm2543 = vweird.f32 %v2505
    %vm2544 = vweird.f32 %v2538
    %vm2545 = vmor %vm2543, %vm2544
    %v2546 = vsel %vm2545, %v2538, %v2542
    %v2547 = vand.u32 2147483647, %v2505
    %vm2548 = vcmp.eq.f32.partialorder %v2547, 8.507059e+37
    %v2549 = vand.u32 %v2505, 2147483648
    %v2550 = vor.u32 1.1754944e-38, %v2549
    %v2551 = vsel %vm2548, %v2550, %v2546
    %v2552 = vrcp.pop %v2508
    %v2553 = vmul.f32 %v2508, %v2552
    %v2554 = vsub.f32 1.0, %v2553
    %v2555 = vmul.f32 %v2552, %v2554
    %v2556 = vadd.f32 %v2552, %v2555
    %vm2557 = vweird.f32 %v2508
    %vm2558 = vweird.f32 %v2552
    %vm2559 = vmor %vm2557, %vm2558
    %v2560 = vsel %vm2559, %v2552, %v2556
    %v2561 = vand.u32 2147483647, %v2508
    %vm2562 = vcmp.eq.f32.partialorder %v2561, 8.507059e+37
    %v2563 = vand.u32 %v2508, 2147483648
    %v2564 = vor.u32 1.1754944e-38, %v2563
    %v2565 = vsel %vm2562, %v2564, %v2560
    %v2566 = vrcp.pop %v2511
    %v2567 = vmul.f32 %v2511, %v2566
    %v2568 = vsub.f32 1.0, %v2567
    %v2569 = vmul.f32 %v2566, %v2568
    %v2570 = vadd.f32 %v2566, %v2569
    %vm2571 = vweird.f32 %v2511
    %vm2572 = vweird.f32 %v2566
    %vm2573 = vmor %vm2571, %vm2572
    %v2574 = vsel %vm2573, %v2566, %v2570
    %v2575 = vand.u32 2147483647, %v2511
    %vm2576 = vcmp.eq.f32.partialorder %v2575, 8.507059e+37
    %v2577 = vand.u32 %v2511, 2147483648
    %v2578 = vor.u32 1.1754944e-38, %v2577
    %v2579 = vsel %vm2576, %v2578, %v2574
    %v2580 = vrcp.pop %v2514
    %v2581 = vmul.f32 %v2514, %v2580
    %v2582 = vsub.f32 1.0, %v2581
    %v2583 = vmul.f32 %v2580, %v2582
    %v2584 = vadd.f32 %v2580, %v2583
    %vm2585 = vweird.f32 %v2514
    %vm2586 = vweird.f32 %v2580
    %vm2587 = vmor %vm2585, %vm2586
    %v2588 = vsel %vm2587, %v2580, %v2584
    %v2589 = vand.u32 2147483647, %v2514
    %vm2590 = vcmp.eq.f32.partialorder %v2589, 8.507059e+37
    %v2591 = vand.u32 %v2514, 2147483648
    %v2592 = vor.u32 1.1754944e-38, %v2591
    %v2593 = vsel %vm2590, %v2592, %v2588
    %v2594 = vrcp.pop %v2517
    %v2595 = vmul.f32 %v2517, %v2594
    %v2596 = vsub.f32 1.0, %v2595
    %v2597 = vmul.f32 %v2594, %v2596
    %v2598 = vadd.f32 %v2594, %v2597
    %vm2599 = vweird.f32 %v2517
    %vm2600 = vweird.f32 %v2594
    %vm2601 = vmor %vm2599, %vm2600
    %v2602 = vsel %vm2601, %v2594, %v2598
    %v2603 = vand.u32 2147483647, %v2517
    %vm2604 = vcmp.eq.f32.partialorder %v2603, 8.507059e+37
    %v2605 = vand.u32 %v2517, 2147483648
    %v2606 = vor.u32 1.1754944e-38, %v2605
    %v2607 = vsel %vm2604, %v2606, %v2602
    %v2608 = vrcp.pop %v2520
    %v2609 = vmul.f32 %v2520, %v2608
    %v2610 = vsub.f32 1.0, %v2609
    %v2611 = vmul.f32 %v2608, %v2610
    %v2612 = vadd.f32 %v2608, %v2611
    %vm2613 = vweird.f32 %v2520
    %vm2614 = vweird.f32 %v2608
    %vm2615 = vmor %vm2613, %vm2614
    %v2616 = vsel %vm2615, %v2608, %v2612
    %v2617 = vand.u32 2147483647, %v2520
    %vm2618 = vcmp.eq.f32.partialorder %v2617, 8.507059e+37
    %v2619 = vand.u32 %v2520, 2147483648
    %v2620 = vor.u32 1.1754944e-38, %v2619
    %v2621 = vsel %vm2618, %v2620, %v2616
    %v2622 = vrcp.pop %v2523
    %v2623 = vmul.f32 %v2523, %v2622
    %v2624 = vsub.f32 1.0, %v2623
    %v2625 = vmul.f32 %v2622, %v2624
    %v2626 = vadd.f32 %v2622, %v2625
    %vm2627 = vweird.f32 %v2523
    %vm2628 = vweird.f32 %v2622
    %vm2629 = vmor %vm2627, %vm2628
    %v2630 = vsel %vm2629, %v2622, %v2626
    %v2631 = vand.u32 2147483647, %v2523
    %vm2632 = vcmp.eq.f32.partialorder %v2631, 8.507059e+37
    %v2633 = vand.u32 %v2523, 2147483648
    %v2634 = vor.u32 1.1754944e-38, %v2633
    %v2635 = vsel %vm2632, %v2634, %v2630
    %v2636 = vmul.f32 %v2485, %v2537
    %v2637 = vmul.f32 %v2487, %v2551
    %v2638 = vmul.f32 %v2489, %v2565
    %v2639 = vmul.f32 %v2491, %v2579
    %v2640 = vmul.f32 %v2493, %v2593
    %v2641 = vmul.f32 %v2495, %v2607
    %v2642 = vmul.f32 %v2497, %v2621
    %v2643 = vmul.f32 %v2499, %v2635
    %2644 = vrot.lane.b32.xlu0 %v2340, 64
    %v2645 = vpop.permute.xlu0 %2644
    %2646 = vrot.lane.b32.xlu0 %v2343, 64
    %v2647 = vpop.permute.xlu0 %2646
    %v2651 = vsel %vm341, %v2636, 0
    %v2654 = vsel %vm341, %v2637, 0
    %v2657 = vsel %vm341, %v2638, 0
    %v2660 = vsel %vm341, %v2639, 0
    %v2663 = vsel %vm341, %v2640, 0
    %v2666 = vsel %vm341, %v2641, 0
    %v2669 = vsel %vm341, %v2642, 0
    %v2672 = vsel %vm341, %v2643, 0
    %2674 = vmatpush.msra.mxu0 0.0
    %2675 = vmatpush.msra.mxu0 0.0
    %2676 = vmatpush.msra.mxu0 0.0
    %2677 = vmatpush.msra.mxu0 0.0
    %2678 = vmatpush.msra.mxu0 0.0
    %2679 = vmatpush.msra.mxu0 0.0
    %2680 = vmatpush.msra.mxu0 0.0
    %2681 = vmatpush.msra.mxu0 0.0
    %2682 = vmatpush.msra.mxu0 0.0
    %2683 = vmatpush.msra.mxu0 0.0
    %2684 = vmatpush.msra.mxu0 0.0
    %2685 = vmatpush.msra.mxu0 0.0
    %2686 = vmatpush.msra.mxu0 0.0
    %2687 = vmatpush.msra.mxu0 0.0
    %2688 = vmatpush.msra.mxu0 %v2647
    %2689 = vmatpush.msra.mxu0 %v2645
    %2690 = vmatmul.f32.gmra.mxu0 %v2651
    %v2691 = vpop.f32.mrf.mxu0
    %v2692 = vadd.f32 0.0, %v2691
    %2693 = vmatmul.f32.gmra.mxu0 %v2654
    %v2694 = vpop.f32.mrf.mxu0
    %v2695 = vadd.f32 0.0, %v2694
    %2696 = vmatmul.f32.gmra.mxu0 %v2657
    %v2697 = vpop.f32.mrf.mxu0
    %v2698 = vadd.f32 0.0, %v2697
    %2699 = vmatmul.f32.gmra.mxu0 %v2660
    %v2700 = vpop.f32.mrf.mxu0
    %v2701 = vadd.f32 0.0, %v2700
    %2702 = vmatmul.f32.gmra.mxu0 %v2663
    %v2703 = vpop.f32.mrf.mxu0
    %v2704 = vadd.f32 0.0, %v2703
    %2705 = vmatmul.f32.gmra.mxu0 %v2666
    %v2706 = vpop.f32.mrf.mxu0
    %v2707 = vadd.f32 0.0, %v2706
    %2708 = vmatmul.f32.gmra.mxu0 %v2669
    %v2709 = vpop.f32.mrf.mxu0
    %v2710 = vadd.f32 0.0, %v2709
    %2711 = vmatmul.f32.gmra.mxu0 %v2672
    %v2712 = vpop.f32.mrf.mxu0
    %v2713 = vadd.f32 0.0, %v2712
    %2714 = vdwg.mxu0
    %v2715 = vmul.f32 %v2692, %v2353
    %v2716 = vmul.f32 %v2695, %v2353
    %v2717 = vmul.f32 %v2698, %v2354
    %v2718 = vmul.f32 %v2701, %v2354
    %v2719 = vmul.f32 %v2704, %v2355
    %v2720 = vmul.f32 %v2707, %v2355
    %v2721 = vmul.f32 %v2710, %v2356
    %v2722 = vmul.f32 %v2713, %v2356
    %v2723 = vsel %vm102, %v2715, 0.0
    %v2724 = vsel %vm102, %v2717, 0.0
    %v2725 = vadd.f32 %v2723, %v2724
    %v2726 = vsel %vm102, %v2719, 0.0
    %v2727 = vadd.f32 %v2725, %v2726
    %v2728 = vsel %vm102, %v2721, 0.0
    %v2729 = vadd.f32 %v2727, %v2728
    %v2730 = vsel %vm102, %v2716, 0.0
    %v2731 = vsel %vm102, %v2718, 0.0
    %v2732 = vadd.f32 %v2730, %v2731
    %v2733 = vsel %vm102, %v2720, 0.0
    %v2734 = vadd.f32 %v2732, %v2733
    %v2735 = vsel %vm102, %v2722, 0.0
    %v2736 = vadd.f32 %v2734, %v2735
    %v2737 = vld [vmem:[#allocation6] sm:$0xff]
    %v2738 = vld [vmem:[#allocation6 + $0x8] sm:$0xff]
    %v2739 = vld [vmem:[#allocation6 + $0x10] sm:$0xff]
    %v2740 = vld [vmem:[#allocation6 + $0x18] sm:$0xff]
    %v2741 = vld [vmem:[%s8] sm:$0x1]
    %v2743 = vperm.slane %v2741, 0
    %v2746 = vsel %vm102, %v2729, 0
    %v2749 = vsel %vm102, %v2736, 0
    %2751 = vmatpush.msra.mxu0 0.0
    %2752 = vmatpush.msra.mxu0 0.0
    %2753 = vmatpush.msra.mxu0 0.0
    %2754 = vmatpush.msra.mxu0 0.0
    %2755 = vmatpush.msra.mxu0 0.0
    %2756 = vmatpush.msra.mxu0 0.0
    %2757 = vmatpush.msra.mxu0 0.0
    %2758 = vmatpush.msra.mxu0 0.0
    %2759 = vmatpush.msra.mxu0 0.0
    %2760 = vmatpush.msra.mxu0 0.0
    %2761 = vmatpush.msra.mxu0 0.0
    %2762 = vmatpush.msra.mxu0 0.0
    %2763 = vmatpush.msra.mxu0 %v2740
    %2764 = vmatpush.msra.mxu0 %v2739
    %2765 = vmatpush.msra.mxu0 %v2738
    %2766 = vmatpush.msra.mxu0 %v2737
    %2767 = vmatmul.f32.gmra.mxu0 %v2746
    %v2768 = vpop.f32.mrf.mxu0
    %v2769 = vadd.f32 %v2743, %v2768
    %2770 = vmatmul.f32.gmra.mxu0 %v2749
    %v2771 = vpop.f32.mrf.mxu0
    %v2772 = vadd.f32 %v2743, %v2771
    %2773 = vdwg.mxu0
    %v2774 = vadd.f32 %v2306, %v2769
    %v2775 = vadd.f32 %v2307, %v2772
    %2780 = vrot.lane.b32.xlu0 %v2737, 96
    %v2781 = vpop.permute.xlu0 %2780
    %2782 = vrot.lane.b32.xlu0 %v2738, 96
    %v2783 = vpop.permute.xlu0 %2782
    %2784 = vrot.lane.b32.xlu0 %v2739, 96
    %v2785 = vpop.permute.xlu0 %2784
    %2786 = vrot.lane.b32.xlu0 %v2740, 96
    %v2787 = vpop.permute.xlu0 %2786
    %2792 = vrot.lane.b32.xlu0 %v2743, 96
    %v2793 = vpop.permute.xlu0 %2792
    %v2796 = vsel %vm102, %v2774, 0
    %v2799 = vsel %vm102, %v2775, 0
    %2801 = vmatpush.msra.mxu0 0.0
    %2802 = vmatpush.msra.mxu0 0.0
    %2803 = vmatpush.msra.mxu0 0.0
    %2804 = vmatpush.msra.mxu0 0.0
    %2805 = vmatpush.msra.mxu0 0.0
    %2806 = vmatpush.msra.mxu0 0.0
    %2807 = vmatpush.msra.mxu0 0.0
    %2808 = vmatpush.msra.mxu0 0.0
    %2809 = vmatpush.msra.mxu0 0.0
    %2810 = vmatpush.msra.mxu0 0.0
    %2811 = vmatpush.msra.mxu0 0.0
    %2812 = vmatpush.msra.mxu0 0.0
    %2813 = vmatpush.msra.mxu0 %v2787
    %2814 = vmatpush.msra.mxu0 %v2785
    %2815 = vmatpush.msra.mxu0 %v2783
    %2816 = vmatpush.msra.mxu0 %v2781
    %2817 = vmatmul.f32.gmra.mxu0 %v2796
    %v2818 = vpop.f32.mrf.mxu0
    %v2819 = vadd.f32 %v2793, %v2818
    %2820 = vmatmul.f32.gmra.mxu0 %v2799
    %v2821 = vpop.f32.mrf.mxu0
    %v2822 = vadd.f32 %v2793, %v2821
    %2823 = vdwg.mxu0
    %v2824 = vmax.f32 %v2819, 0.0
    %v2825 = vmax.f32 %v2822, 0.0
    %2826 = vrot.lane.b32.xlu0 %v2737, 64
    %v2827 = vpop.permute.xlu0 %2826
    %2828 = vrot.lane.b32.xlu0 %v2738, 64
    %v2829 = vpop.permute.xlu0 %2828
    %2830 = vrot.lane.b32.xlu0 %v2739, 64
    %v2831 = vpop.permute.xlu0 %2830
    %2832 = vrot.lane.b32.xlu0 %v2740, 64
    %v2833 = vpop.permute.xlu0 %2832
    %2838 = vrot.lane.b32.xlu0 %v2743, 64
    %v2839 = vpop.permute.xlu0 %2838
    %v2842 = vsel %vm102, %v2824, 0
    %v2845 = vsel %vm102, %v2825, 0
    %2847 = vmatpush.msra.mxu0 0.0
    %2848 = vmatpush.msra.mxu0 0.0
    %2849 = vmatpush.msra.mxu0 0.0
    %2850 = vmatpush.msra.mxu0 0.0
    %2851 = vmatpush.msra.mxu0 0.0
    %2852 = vmatpush.msra.mxu0 0.0
    %2853 = vmatpush.msra.mxu0 0.0
    %2854 = vmatpush.msra.mxu0 0.0
    %2855 = vmatpush.msra.mxu0 0.0
    %2856 = vmatpush.msra.mxu0 0.0
    %2857 = vmatpush.msra.mxu0 0.0
    %2858 = vmatpush.msra.mxu0 0.0
    %2859 = vmatpush.msra.mxu0 %v2833
    %2860 = vmatpush.msra.mxu0 %v2831
    %2861 = vmatpush.msra.mxu0 %v2829
    %2862 = vmatpush.msra.mxu0 %v2827
    %2863 = vmatmul.f32.gmra.mxu0 %v2842
    %v2864 = vpop.f32.mrf.mxu0
    %v2865 = vadd.f32 %v2839, %v2864
    %2866 = vmatmul.f32.gmra.mxu0 %v2845
    %v2867 = vpop.f32.mrf.mxu0
    %v2868 = vadd.f32 %v2839, %v2867
    %2869 = vdwg.mxu0
    %v2870 = vmax.f32 %v2865, 0.0
    %v2871 = vmax.f32 %v2868, 0.0
    %v2872 = vadd.f32 %v2774, %v2870
    %v2873 = vadd.f32 %v2775, %v2871
    %s2874 = scalar_lea.vmem [#allocation2], 48
    %v2875 = vld [vmem:[%s2874] sm:$0xff]
    %v2876 = vld [vmem:[%s2874 + $0x8] sm:$0xff]
    %v2877 = vtanh.pop %v2306
    %v2878 = vtanh.pop %v2307
    %v2879 = vld [vmem:[#allocation8] sm:$0xff]
    %v2880 = vld [vmem:[#allocation8 + $0x8] sm:$0xff]
    %v2881 = vld [vmem:[#allocation8 + $0x10] sm:$0xff]
    %v2882 = vld [vmem:[#allocation8 + $0x18] sm:$0xff]
    %2887 = vrot.lane.b32.xlu0 %v2879, 64
    %v2888 = vpop.permute.xlu0 %2887
    %2889 = vrot.lane.b32.xlu0 %v2880, 64
    %v2890 = vpop.permute.xlu0 %2889
    %2891 = vrot.lane.b32.xlu0 %v2881, 64
    %v2892 = vpop.permute.xlu0 %2891
    %2893 = vrot.lane.b32.xlu0 %v2882, 64
    %v2894 = vpop.permute.xlu0 %2893
    %v2900 = vsel %vm102, %v2877, 0
    %v2903 = vsel %vm102, %v2878, 0
    %2905 = vmatpush.msra.mxu0 0.0
    %2906 = vmatpush.msra.mxu0 0.0
    %2907 = vmatpush.msra.mxu0 0.0
    %2908 = vmatpush.msra.mxu0 0.0
    %2909 = vmatpush.msra.mxu0 0.0
    %2910 = vmatpush.msra.mxu0 0.0
    %2911 = vmatpush.msra.mxu0 0.0
    %2912 = vmatpush.msra.mxu0 0.0
    %2913 = vmatpush.msra.mxu0 0.0
    %2914 = vmatpush.msra.mxu0 0.0
    %2915 = vmatpush.msra.mxu0 0.0
    %2916 = vmatpush.msra.mxu0 0.0
    %2917 = vmatpush.msra.mxu0 %v2894
    %2918 = vmatpush.msra.mxu0 %v2892
    %2919 = vmatpush.msra.mxu0 %v2890
    %2920 = vmatpush.msra.mxu0 %v2888
    %2921 = vmatmul.f32.gmra.mxu0 %v2900
    %v2922 = vpop.f32.mrf.mxu0
    %v2923 = vadd.f32 0.0, %v2922
    %2924 = vmatmul.f32.gmra.mxu0 %v2903
    %v2925 = vpop.f32.mrf.mxu0
    %v2926 = vadd.f32 0.0, %v2925
    %2927 = vdwg.mxu0
    %v2928 = vadd.f32 %v2875, %v2923
    %v2929 = vadd.f32 %v2876, %v2926
    %v2930 = vxor.u32 %v2928, 2147483648
    %v2931 = vxor.u32 %v2929, 2147483648
    %v2932 = vmul.f32 %v2930, 1.442695
    %v2933 = vpow.pop %v2932
    %v2934 = vmul.f32 %v2931, 1.442695
    %v2935 = vpow.pop %v2934
    %v2936 = vadd.f32 %v2933, 1.0
    %v2937 = vadd.f32 %v2935, 1.0
    %v2938 = vrcp.pop %v2936
    %v2939 = vmul.f32 %v2936, %v2938
    %v2940 = vsub.f32 1.0, %v2939
    %v2941 = vmul.f32 %v2938, %v2940
    %v2942 = vadd.f32 %v2938, %v2941
    %vm2943 = vweird.f32 %v2936
    %vm2944 = vweird.f32 %v2938
    %vm2945 = vmor %vm2943, %vm2944
    %v2946 = vsel %vm2945, %v2938, %v2942
    %v2947 = vand.u32 2147483647, %v2936
    %vm2948 = vcmp.eq.f32.partialorder %v2947, 8.507059e+37
    %v2949 = vand.u32 %v2936, 2147483648
    %v2950 = vor.u32 1.1754944e-38, %v2949
    %v2951 = vsel %vm2948, %v2950, %v2946
    %v2952 = vmul.f32 1.0, %v2951
    %v2953 = vrcp.pop %v2937
    %v2954 = vmul.f32 %v2937, %v2953
    %v2955 = vsub.f32 1.0, %v2954
    %v2956 = vmul.f32 %v2953, %v2955
    %v2957 = vadd.f32 %v2953, %v2956
    %vm2958 = vweird.f32 %v2937
    %vm2959 = vweird.f32 %v2953
    %vm2960 = vmor %vm2958, %vm2959
    %v2961 = vsel %vm2960, %v2953, %v2957
    %v2962 = vand.u32 2147483647, %v2937
    %vm2963 = vcmp.eq.f32.partialorder %v2962, 8.507059e+37
    %v2964 = vand.u32 %v2937, 2147483648
    %v2965 = vor.u32 1.1754944e-38, %v2964
    %v2966 = vsel %vm2963, %v2965, %v2961
    %v2967 = vmul.f32 1.0, %v2966
    %v2968 = vtanh.pop %v2872
    %v2969 = vtanh.pop %v2873
    %v2970 = vmul.f32 %v2952, %v2968
    %v2971 = vmul.f32 %v2967, %v2969
    %2972 = vrot.lane.b32.xlu0 %v2306, 32
    %v2973 = vpop.permute.xlu0 %2972
    %2974 = vrot.lane.b32.xlu0 %v2307, 32
    %v2975 = vpop.permute.xlu0 %2974
    %v2978 = vmul.f32 %v2952, %v2973
    %v2979 = vmul.f32 %v2967, %v2975
    %2982 = vrot.lane.b32.xlu0 %v2978, 96
    %v2983 = vpop.permute.xlu0 %2982
    %2984 = vrot.lane.b32.xlu0 %v2979, 96
    %v2985 = vpop.permute.xlu0 %2984
    %v2988 = vadd.f32 %v2970, %v2983
    %v2989 = vadd.f32 %v2971, %v2985
    %s2990 = scalar_lea.vmem [#allocation9], 48
    %2991 = vst.msk [vmem:[%s2990] sm:$0xff] %vm102, %v2988
    %2992 = vst.msk [vmem:[%s2990 + $0x8] sm:$0xff] %vm102, %v2989
    // Predicated region
    $region58: #{tpu_custom_call.1} parent=1 // pred_check
      _
    $region59: #{tpu_custom_call.1} parent=1 // pred_check_branch
      %2994 = sbr.rel (0) target = $region61
    $region60: #{tpu_custom_call.1} parent=1 // pred_region
      %2996 = vsyncadd [#allocation5], 0
      %s2997 = sshll.u32 [#allocation9], 4
      %s2998 = int_to_ptr.vmem [resolvable:$true] %s2997
      %s2999 = sshll.u32 %s11, 4
      %s3000 = int_to_ptr.hbm [resolvable:$true] %s2999
      %3005 = dma.vmem_to_hbm [thread:$0]  %s2998, 1024, %s3000, [#allocation5], 128, 128, 8
    $region61: #{tpu_custom_call.1} parent=1 // pred_fallthru
      _
    // Predicated region
    $region62: #{tpu_custom_call.1} parent=1 // pred_check
      _
    $region63: #{tpu_custom_call.1} parent=1 // pred_check_branch
      %3007 = sbr.rel (0) target = $region65
    $region64: #{tpu_custom_call.1} parent=1 // pred_region
      %3009 = dma.done [#allocation5], 1024
    $region65: #{tpu_custom_call.1} parent=1 // pred_fallthru
      _
    %3010 = vsyncpa [#allocation4], 1
    %3011 = vsyncpa [#allocation7], 1
    %3012 = vsyncpa [#allocation5], 1

</llo_original>
